<compile_context>
chip_gen: v6e
topology: v6e:2x2x1
jax: 0.10.0
libtpu: 0.0.40
codegen_flags: <defaults>
</compile_context>

<pallas_src>
import math

import jax
import jax.numpy as jnp
from jax.experimental import pallas as pl
from jax.experimental.pallas import tpu as pltpu

_EPS = 1e-4
_LOG_LO = math.log(_EPS)            # log(1e-4): lower clamp from _sigmoid()'s clip
_LANE = 128
_MAX_COLS = 2048                    # lane-dense block width (16 vregs)
_MAX_TILE_R = 128                   # <= 128 x 2048 x 4B = 1 MiB per input block
_INPUT_VMEM_BUDGET = 20 * 1024 * 1024   # double-buffered heatmap blocks
_VMEM_LIMIT = 32 * 1024 * 1024          # fits v7x (64 MiB physical) with headroom


def _round_up(x, m):
    return ((x + m - 1) // m) * m


def _plan_layout(L, n_streams):
    """Lane-dense (rows, ccols) view + row tiling + optional 2-way parallel split."""
    if L % _LANE == 0:
        ccols = _LANE
        for cand in (_MAX_COLS, 1024, 512, 256, _LANE):
            if L % cand == 0:
                ccols = cand
                break
    else:
        ccols = min(_MAX_COLS, _round_up(L, _LANE))
    rows = -(-L // ccols)
    if rows > 8 and rows % 8 != 0:
        rows = _round_up(rows, 8)                     # rare: needs a pad copy
    if rows <= 8:
        tile_r = rows
    else:
        cap = max(8, _INPUT_VMEM_BUDGET // (n_streams * ccols * 4 * 2))
        tile_r = 8
        for cand in (_MAX_TILE_R, 64, 32, 16, 8):
            if cand <= cap and rows % cand == 0:
                tile_r = cand
                break
    total_steps = rows // tile_r
    n_par = 2 if (total_steps >= 2 and total_steps % 2 == 0) else 1
    n_steps = total_steps // n_par
    return rows, ccols, tile_r, n_par, n_steps


def _prep_map(x, rows, ccols, pad_val):
    """(B,C,H,W) -> (rows, ccols). Metadata-only reshape when no padding is needed."""
    flat = jnp.reshape(x.astype(jnp.float32), (-1,))
    L = flat.shape[0]
    if rows * ccols != L:
        # pred padding 0.0 is harmless; gt padding 2.0 => neither pos nor neg.
        flat = jnp.pad(flat, (0, rows * ccols - L), constant_values=pad_val)
    return flat.reshape(rows, ccols)


def _fold_lanes(v):
    """(tile_r, k*128) -> (tile_r, 128) via pairwise (tree) lane-aligned VPU adds."""
    parts = [v[:, i * _LANE:(i + 1) * _LANE] for i in range(v.shape[1] // _LANE)]
    while len(parts) > 1:
        nxt = [parts[i] + parts[i + 1] for i in range(0, len(parts) - 1, 2)]
        if len(parts) % 2:
            nxt.append(parts[-1])
        parts = nxt
    return parts[0]


# ----------------------------------------------------------------------------
# Fused kernel: focal-loss partial sums for all heatmaps + (on the last grid
# step) AE pull/push and masked smooth-L1 regression.
# Accumulator layout (lane slices of a 2-D VMEM scratch):
#   slice 2*m   : pos_loss sum for map m          (m = head*nstack + stack)
#   slice 2*m+1 : neg_loss sum for map m
#   slice 2*n_maps + h : num_pos for head h (shared gt => computed once/head)
# Output rows: [n_acc focal rows | pull | push | regr], each 128 lanes wide.
# ----------------------------------------------------------------------------
def _build_kernel(n_maps, n_gts, nstack, n_acc, n_regr):
    def kernel(*refs):
        pred_refs = refs[:n_maps]
        gt_refs = refs[n_maps:n_maps + n_gts]
        (t0_ref, t1_ref, m_ref, m2_ref, rp_ref, rg_ref) = refs[n_maps + n_gts:
                                                               n_maps + n_gts + 6]
        out_ref = refs[n_maps + n_gts + 6]
        acc_ref = refs[n_maps + n_gts + 7]

        j = pl.program_id(1)

        @pl.when(j == 0)
        def _init():
            acc_ref[...] = jnp.zeros_like(acc_ref)

        def acc_add(idx, val):
            sl = slice(idx * _LANE, (idx + 1) * _LANE)
            acc_ref[:, sl] = acc_ref[:, sl] + val

        for h in range(n_gts):
            gt = gt_refs[h][...]                        # (tile_r, ccols)
            pos = (gt == 1.0).astype(jnp.float32)       # pos_inds
            neg = (gt < 1.0).astype(jnp.float32)        # neg_inds (pad gt=2 -> 0)
            one_m_gt = 1.0 - gt
            neg_w = jnp.square(jnp.square(one_m_gt)) * neg   # (1-gt)^4 * neg
            acc_add(2 * n_maps + h, _fold_lanes(pos))   # num_pos: once per head

            for s in range(nstack):
                m_idx = h * nstack + s
                x = pred_refs[m_idx][...]               # (tile_r, ccols) logits
                # Stable sigmoid + log-sigmoid sharing one exp and one log:
                #   a = exp(-|x|); sigmoid(x) = where(x>=0, 1/(1+a), a/(1+a))
                #   1 - sigmoid(x) = where(x>=0, a/(1+a), 1/(1+a))
                #   log(sigmoid(x))   = min(x,0) - log(1+a)
                #   log(1-sigmoid(x)) = -max(x,0) - log(1+a)
                a = jnp.exp(-jnp.abs(x))
                opa = 1.0 + a
                lp = jnp.log(opa)
                r = pl.reciprocal(opa, approx=True)
                ar = a * r
                x_nonneg = x >= 0.0
                pred = jnp.where(x_nonneg, r, ar)       # sigmoid(x)
                omp = jnp.where(x_nonneg, ar, r)        # 1 - sigmoid(x)
                log_p = jnp.maximum(jnp.minimum(x, 0.0) - lp, _LOG_LO)
                log_1mp = jnp.maximum(-jnp.maximum(x, 0.0) - lp, _LOG_LO)

                pos_loss = log_p * (omp * omp) * pos
                neg_loss = log_1mp * (pred * pred) * neg_w
                acc_add(2 * m_idx, _fold_lanes(pos_loss))
                acc_add(2 * m_idx + 1, _fold_lanes(neg_loss))

        @pl.when(j == pl.num_programs(1) - 1)
        def _finalize():
            # Focal partial sums: reduce sublanes here, lanes + parallel axis in JAX.
            for i in range(n_acc):
                sl = slice(i * _LANE, (i + 1) * _LANE)
                out_ref[0, pl.ds(i, 1), :] = jnp.sum(
                    acc_ref[:, sl], axis=0, keepdims=True)

            # Tiny AE pull/push + smooth-L1 regression (data is resident, <1 KB).
            m = m_ref[...]                               # (B, M) float 0/1
            num = jnp.sum(m, axis=1, keepdims=True)      # (B, 1)
            pull = jnp.float32(0.0)
            push = jnp.float32(0.0)
            for s in range(nstack):
                t0 = t0_ref[s]                           # (B, M)
                t1 = t1_ref[s]
                mean = (t0 + t1) * 0.5
                pull = pull + jnp.sum(
                    m * (jnp.square(t0 - mean) + jnp.square(t1 - mean)) / (num + _EPS))
                dist = jnp.abs(mean[:, None, :] - mean[:, :, None])  # (B, M, M)
                dist = jnp.maximum(1.0 - dist, 0.0)
                num_e = num[:, :, None]
                dist = (dist - 1.0 / (num_e + _EPS)) / ((num_e - 1.0) * num_e + _EPS)
                pair_m = m[:, :, None] * m[:, None, :]
                push = push + jnp.sum(jnp.where(pair_m > 0.0, dist, 0.0))

            m2 = m2_ref[...]                             # (B, 2M) per-coordinate mask
            num_all = jnp.sum(m)
            regr_num = jnp.float32(0.0)
            for idx in range(n_regr):
                head = idx // nstack                     # static python index
                d = rp_ref[idx] - rg_ref[head]           # (B, 2M)
                ad = jnp.abs(d)
                sl1 = jnp.where(ad < 1.0, 0.5 * d * d, ad - 0.5)
                regr_num = regr_num + jnp.sum(sl1 * m2)
            regr = regr_num / (num_all + _EPS)

            out_ref[0, pl.ds(n_acc + 0, 1), :] = jnp.full((1, _LANE), pull, jnp.float32)
            out_ref[0, pl.ds(n_acc + 1, 1), :] = jnp.full((1, _LANE), push, jnp.float32)
            out_ref[0, pl.ds(n_acc + 2, 1), :] = jnp.full((1, _LANE), regr, jnp.float32)

    return kernel


def _fused_losses(preds, gts, nstack, t0, t1, mask_f, mask2, rp, rg):
    """preds: 3*nstack (B,C,H,W) logits, head-major; gts: 3 unique heatmaps."""
    n_maps = len(preds)
    n_gts = len(gts)
    n_regr = rp.shape[0]
    n_acc = 2 * n_maps + n_gts
    n_out_rows = n_acc + 3
    L = math.prod(preds[0].shape)

    rows, ccols, tile_r, n_par, n_steps = _plan_layout(L, n_maps + n_gts)

    pred_arrs = [_prep_map(x, rows, ccols, 0.0) for x in preds]
    gt_arrs = [_prep_map(x, rows, ccols, 2.0) for x in gts]

    hm_spec = pl.BlockSpec((tile_r, ccols), lambda p, j: (p * n_steps + j, 0))

    def const_spec(arr):
        nd = arr.ndim
        return pl.BlockSpec(arr.shape, lambda p, j, _nd=nd: (0,) * _nd)

    small_in = [t0, t1, mask_f, mask2, rp, rg]
    kernel = _build_kernel(n_maps, n_gts, nstack, n_acc, n_regr)

    out = pl.pallas_call(
        kernel,
        out_shape=jax.ShapeDtypeStruct((n_par, n_out_rows, _LANE), jnp.float32),
        grid=(n_par, n_steps),
        in_specs=[hm_spec] * (n_maps + n_gts) + [const_spec(a) for a in small_in],
        out_specs=pl.BlockSpec((1, n_out_rows, _LANE), lambda p, j: (p, 0, 0)),
        scratch_shapes=[pltpu.VMEM((tile_r, n_acc * _LANE), jnp.float32)],
        compiler_params=pltpu.CompilerParams(
            dimension_semantics=("parallel", "arbitrary"),
            vmem_limit_bytes=_VMEM_LIMIT,
        ),
    )(*(pred_arrs + gt_arrs + small_in))

    sums = jnp.sum(out[:, :n_acc, :], axis=(0, 2))        # (n_acc,)
    pos_s = sums[0:2 * n_maps:2]
    neg_s = sums[1:2 * n_maps:2]
    npos_h = sums[2 * n_maps:]
    npos = jnp.repeat(npos_h, nstack)                     # per-map num_pos
    pull_s = out[0, n_acc + 0, 0]
    push_s = out[0, n_acc + 1, 0]
    regr_s = out[0, n_acc + 2, 0]
    return pos_s, neg_s, npos, pull_s, push_s, regr_s


# ----------------------------------------------------------------------------
# AELoss forward (glue in plain JAX, mirroring the PyTorch module exactly)
# ----------------------------------------------------------------------------
def ae_loss_forward(outs, targets, pull_weight=1.0, push_weight=1.0, regr_weight=1.0):
    stride = 8
    tl_heats = outs[0::stride]
    br_heats = outs[1::stride]
    ct_heats = outs[2::stride]
    tl_tags = outs[3::stride]
    br_tags = outs[4::stride]
    tl_regrs = outs[5::stride]
    br_regrs = outs[6::stride]
    ct_regrs = outs[7::stride]

    gt_tl_heat, gt_br_heat, gt_ct_heat, gt_mask = targets[0], targets[1], targets[2], targets[3]
    gt_tl_regr, gt_br_regr, gt_ct_regr = targets[4], targets[5], targets[6]

    nstack = len(tl_heats)
    mask_f = gt_mask.astype(jnp.float32)
    B, M = mask_f.shape

    # Tiny tag/regression tensors (sub-KB) for the fused kernel's final step.
    t0 = jnp.stack([t.reshape(B, M) for t in tl_tags]).astype(jnp.float32)
    t1 = jnp.stack([t.reshape(B, M) for t in br_tags]).astype(jnp.float32)
    rp = jnp.stack([r.reshape(B, 2 * M)
                    for r in (tl_regrs + br_regrs + ct_regrs)]).astype(jnp.float32)
    rg = jnp.stack([r.reshape(B, 2 * M)
                    for r in (gt_tl_regr, gt_br_regr, gt_ct_regr)]).astype(jnp.float32)
    mask2 = jnp.repeat(mask_f, 2, axis=-1)               # (B, M, 2) -> (B, 2M)

    pos_s, neg_s, npos, pull_s, push_s, regr_s = _fused_losses(
        tl_heats + br_heats + ct_heats,
        [gt_tl_heat, gt_br_heat, gt_ct_heat],
        nstack, t0, t1, mask_f, mask2, rp, rg)

    safe_npos = jnp.maximum(npos, 1.0)
    per_map = jnp.where(npos > 0.0, -(pos_s + neg_s) / safe_npos, -neg_s)
    focal_loss = jnp.sum(per_map)

    pull_loss = pull_weight * pull_s
    push_loss = push_weight * push_s
    regr_loss = regr_weight * regr_s

    n = nstack
    loss = (focal_loss + pull_loss + push_loss + regr_loss) / n
    return (
        loss[None],
        (focal_loss / n)[None],
        (pull_loss / n)[None],
        (push_loss / n)[None],
        (regr_loss / n)[None],
    )


# ----------------------------------------------------------------------------
# Pure-JAX reference (mirrors the PyTorch helper functions) for validation
# ----------------------------------------------------------------------------
def _ref_sigmoid(x):
    return jnp.clip(jax.nn.sigmoid(x), 1e-4, 1.0 - 1e-4)


def _ref_neg_loss(preds, gt):
    pos = gt == 1.0
    neg = gt < 1.0
    neg_w = (1.0 - gt) ** 4
    num_pos = jnp.sum(pos.astype(jnp.float32))
    loss = jnp.float32(0.0)
    for p in preds:
        pos_l = jnp.sum(jnp.where(pos, jnp.log(p) * (1.0 - p) ** 2, 0.0))
        neg_l = jnp.sum(jnp.where(neg, jnp.log(1.0 - p) * p ** 2 * neg_w, 0.0))
        loss = loss + jnp.where(num_pos > 0.0, -(pos_l + neg_l) / num_pos, -neg_l)
    return loss


def _ref_ae_loss(tag0, tag1, mask):
    mask_f = mask.astype(jnp.float32)
    num = jnp.sum(mask_f, axis=1, keepdims=True)
    mean = (tag0 + tag1) / 2.0
    t0 = (tag0 - mean) ** 2 / (num + 1e-4)
    t1 = (tag1 - mean) ** 2 / (num + 1e-4)
    pull = jnp.sum(jnp.where(mask, t0, 0.0)) + jnp.sum(jnp.where(mask, t1, 0.0))
    pm = mask[:, None, :] & mask[:, :, None]
    num_e = num[:, :, None]
    num2 = (num_e - 1.0) * num_e
    dist = mean[:, None, :] - mean[:, :, None]
    dist = jnp.maximum(1.0 - jnp.abs(dist), 0.0)
    dist = (dist - 1.0 / (num_e + 1e-4)) / (num2 + 1e-4)
    push = jnp.sum(jnp.where(pm, dist, 0.0))
    return pull, push


def _ref_regr_loss(regr, gt_regr, mask):
    num = jnp.sum(mask.astype(jnp.float32))
    m = mask[:, :, None].astype(jnp.float32)
    d = regr - gt_regr
    ad = jnp.abs(d)
    sl1 = jnp.where(ad < 1.0, 0.5 * d * d, ad - 0.5)
    return jnp.sum(sl1 * m) / (num + 1e-4)


def ae_loss_reference(outs, targets):
    stride = 8
    tl_heats = [_ref_sigmoid(t) for t in outs[0::stride]]
    br_heats = [_ref_sigmoid(t) for t in outs[1::stride]]
    ct_heats = [_ref_sigmoid(t) for t in outs[2::stride]]
    tl_tags, br_tags = outs[3::stride], outs[4::stride]
    tl_regrs, br_regrs, ct_regrs = outs[5::stride], outs[6::stride], outs[7::stride]
    gt_tl_heat, gt_br_heat, gt_ct_heat, gt_mask = targets[0], targets[1], targets[2], targets[3]
    gt_tl_regr, gt_br_regr, gt_ct_regr = targets[4], targets[5], targets[6]

    focal = _ref_neg_loss(tl_heats, gt_tl_heat)
    focal += _ref_neg_loss(br_heats, gt_br_heat)
    focal += _ref_neg_loss(ct_heats, gt_ct_heat)

    pull = jnp.float32(0.0)
    push = jnp.float32(0.0)
    for t0, t1 in zip(tl_tags, br_tags):
        B, M = t0.shape[0], t0.shape[1]
        p0, p1 = _ref_ae_loss(t0.reshape(B, M), t1.reshape(B, M), gt_mask)
        pull += p0
        push += p1

    regr = jnp.float32(0.0)
    for a, b, c in zip(tl_regrs, br_regrs, ct_regrs):
        regr += _ref_regr_loss(a, gt_tl_regr, gt_mask)
        regr += _ref_regr_loss(b, gt_br_regr, gt_mask)
        regr += _ref_regr_loss(c, gt_ct_regr, gt_mask)

    n = len(tl_heats)
    loss = (focal + pull + push + regr) / n
    return (loss[None], (focal / n)[None], (pull / n)[None], (push / n)[None], (regr / n)[None])


# ----------------------------------------------------------------------------
if __name__ == "__main__":
    key = jax.random.PRNGKey(0)
    B, C, H, W, M = 2, 4, 16, 16, 8
    nstack = 2

    keys = list(jax.random.split(key, 64))
    ki = iter(keys)

    outs = []
    for _ in range(nstack):
        tl_heat = jax.random.normal(next(ki), (B, C, H, W), jnp.float32)
        br_heat = jax.random.normal(next(ki), (B, C, H, W), jnp.float32)
        ct_heat = jax.random.normal(next(ki), (B, C, H, W), jnp.float32)
        tl_tag = jax.random.normal(next(ki), (B, M, 1), jnp.float32)
        br_tag = jax.random.normal(next(ki), (B, M, 1), jnp.float32)
        tl_regr = jax.random.uniform(next(ki), (B, M, 2), jnp.float32)
        br_regr = jax.random.uniform(next(ki), (B, M, 2), jnp.float32)
        ct_regr = jax.random.uniform(next(ki), (B, M, 2), jnp.float32)
        outs += [tl_heat, br_heat, ct_heat, tl_tag, br_tag, tl_regr, br_regr, ct_regr]

    def make_gt_heat(k):
        g = jax.random.uniform(k, (B, C, H, W), jnp.float32) * 0.9
        g = g.at[:, :, 4, 7].set(1.0)      # exact positives (gt == 1)
        g = g.at[:, :, 10, 3].set(1.0)
        return g

    gt_tl_heat = make_gt_heat(next(ki))
    gt_br_heat = make_gt_heat(next(ki))
    gt_ct_heat = make_gt_heat(next(ki))
    gt_mask = jnp.array([[1, 1, 1, 1, 1, 0, 0, 0],
                         [1, 1, 1, 0, 0, 0, 0, 0]], dtype=bool)
    gt_tl_regr = jax.random.uniform(next(ki), (B, M, 2), jnp.float32)
    gt_br_regr = jax.random.uniform(next(ki), (B, M, 2), jnp.float32)
    gt_ct_regr = jax.random.uniform(next(ki), (B, M, 2), jnp.float32)
    targets = [gt_tl_heat, gt_br_heat, gt_ct_heat, gt_mask,
               gt_tl_regr, gt_br_regr, gt_ct_regr]

    result = ae_loss_forward(outs, targets)
    result = jax.block_until_ready(result)

    reference = ae_loss_reference(outs, targets)
    for got, want in zip(result, reference):
        assert jnp.allclose(got, want, rtol=5e-3, atol=1e-3), (got, want)

    print("KERNEL_OK")
</pallas_src>

<mosaic_0001>
module attributes {stable_mosaic.version = 11 : i64} {
  func.func @kernel(%arg0: i32, %arg1: i32, %arg2: memref<1x2048xf32, #tpu.memory_space<vmem>>, %arg3: memref<1x2048xf32, #tpu.memory_space<vmem>>, %arg4: memref<1x2048xf32, #tpu.memory_space<vmem>>, %arg5: memref<1x2048xf32, #tpu.memory_space<vmem>>, %arg6: memref<1x2048xf32, #tpu.memory_space<vmem>>, %arg7: memref<1x2048xf32, #tpu.memory_space<vmem>>, %arg8: memref<1x2048xf32, #tpu.memory_space<vmem>>, %arg9: memref<1x2048xf32, #tpu.memory_space<vmem>>, %arg10: memref<1x2048xf32, #tpu.memory_space<vmem>>, %arg11: memref<2x2x8xf32, #tpu.memory_space<vmem>>, %arg12: memref<2x2x8xf32, #tpu.memory_space<vmem>>, %arg13: memref<2x8xf32, #tpu.memory_space<vmem>>, %arg14: memref<2x16xf32, #tpu.memory_space<vmem>>, %arg15: memref<6x2x16xf32, #tpu.memory_space<vmem>>, %arg16: memref<3x2x16xf32, #tpu.memory_space<vmem>>, %arg17: memref<1x18x128xf32, #tpu.memory_space<vmem>>, %arg18: memref<1x1920xf32, #tpu.memory_space<vmem>>) attributes {dimension_semantics = [#tpu.dimension_semantics<parallel>, #tpu.dimension_semantics<arbitrary>], iteration_bounds = array<i64: 1, 1>, scalar_prefetch = 0 : i64, scratch_operands = 1 : i64, tpu.core_type = #tpu.core_type<tc>, window_params = [{transform_indices = @transform_0, window_bounds = array<i64: 1, 2048>}, {transform_indices = @transform_1, window_bounds = array<i64: 1, 2048>}, {transform_indices = @transform_2, window_bounds = array<i64: 1, 2048>}, {transform_indices = @transform_3, window_bounds = array<i64: 1, 2048>}, {transform_indices = @transform_4, window_bounds = array<i64: 1, 2048>}, {transform_indices = @transform_5, window_bounds = array<i64: 1, 2048>}, {transform_indices = @transform_6, window_bounds = array<i64: 1, 2048>}, {transform_indices = @transform_7, window_bounds = array<i64: 1, 2048>}, {transform_indices = @transform_8, window_bounds = array<i64: 1, 2048>}, {pipeline_mode = #tpu.pipeline_mode<synchronous>, transform_indices = @transform_9, window_bounds = array<i64: 2, 2, 8>}, {pipeline_mode = #tpu.pipeline_mode<synchronous>, transform_indices = @transform_10, window_bounds = array<i64: 2, 2, 8>}, {pipeline_mode = #tpu.pipeline_mode<synchronous>, transform_indices = @transform_11, window_bounds = array<i64: 2, 8>}, {pipeline_mode = #tpu.pipeline_mode<synchronous>, transform_indices = @transform_12, window_bounds = array<i64: 2, 16>}, {pipeline_mode = #tpu.pipeline_mode<synchronous>, transform_indices = @transform_13, window_bounds = array<i64: 6, 2, 16>}, {pipeline_mode = #tpu.pipeline_mode<synchronous>, transform_indices = @transform_14, window_bounds = array<i64: 3, 2, 16>}, {transform_indices = @transform_15, window_bounds = array<i64: 1, 18, 128>}]} {
    %c0_i32 = arith.constant 0 : i32
    %0 = arith.cmpi eq, %arg1, %c0_i32 : i32
    %1 = arith.extui %0 : i1 to i32
    %c0_i32_0 = arith.constant 0 : i32
    %2 = arith.cmpi ne, %1, %c0_i32_0 : i32
    scf.if %2 {
      %cst_122 = arith.constant 0.000000e+00 : f32
      %750 = vector.broadcast %cst_122 : f32 to vector<1x1920xf32>
      %c0_123 = arith.constant 0 : index
      %c0_124 = arith.constant 0 : index
      %751 = vector.load %arg18[%c0_123, %c0_124] : memref<1x1920xf32, #tpu.memory_space<vmem>>, vector<1x1920xf32>
      tpu.vector_store %arg18[%c0_123, %c0_124], %750 {strides = array<i32>} : memref<1x1920xf32, #tpu.memory_space<vmem>>, vector<1x1920xf32>,
    } else {
    }
    %c0 = arith.constant 0 : index
    %c0_1 = arith.constant 0 : index
    %3 = vector.load %arg8[%c0, %c0_1] : memref<1x2048xf32, #tpu.memory_space<vmem>>, vector<1x2048xf32>
    %cst = arith.constant 1.000000e+00 : f32
    %4 = vector.broadcast %cst : f32 to vector<1x2048xf32>
    %5 = arith.cmpf oeq, %3, %4 : vector<1x2048xf32>
    %6 = arith.extui %5 : vector<1x2048xi1> to vector<1x2048xi32>
    %7 = arith.sitofp %6 : vector<1x2048xi32> to vector<1x2048xf32>
    %cst_2 = arith.constant 1.000000e+00 : f32
    %8 = vector.broadcast %cst_2 : f32 to vector<1x2048xf32>
    %9 = arith.cmpf olt, %3, %8 : vector<1x2048xf32>
    %10 = arith.extui %9 : vector<1x2048xi1> to vector<1x2048xi32>
    %11 = arith.sitofp %10 : vector<1x2048xi32> to vector<1x2048xf32>
    %cst_3 = arith.constant 1.000000e+00 : f32
    %12 = vector.broadcast %cst_3 : f32 to vector<1x2048xf32>
    %13 = arith.subf %12, %3 : vector<1x2048xf32>
    %14 = arith.mulf %13, %13 : vector<1x2048xf32>
    %15 = arith.mulf %14, %14 : vector<1x2048xf32>
    %16 = arith.mulf %15, %11 : vector<1x2048xf32>
    %17 = vector.extract_strided_slice %7 {offsets = [0, 0], sizes = [1, 128], strides = [1, 1]} : vector<1x2048xf32> to vector<1x128xf32>
    %18 = vector.extract_strided_slice %7 {offsets = [0, 128], sizes = [1, 128], strides = [1, 1]} : vector<1x2048xf32> to vector<1x128xf32>
    %19 = vector.extract_strided_slice %7 {offsets = [0, 256], sizes = [1, 128], strides = [1, 1]} : vector<1x2048xf32> to vector<1x128xf32>
    %20 = vector.extract_strided_slice %7 {offsets = [0, 384], sizes = [1, 128], strides = [1, 1]} : vector<1x2048xf32> to vector<1x128xf32>
    %21 = vector.extract_strided_slice %7 {offsets = [0, 512], sizes = [1, 128], strides = [1, 1]} : vector<1x2048xf32> to vector<1x128xf32>
    %22 = vector.extract_strided_slice %7 {offsets = [0, 640], sizes = [1, 128], strides = [1, 1]} : vector<1x2048xf32> to vector<1x128xf32>
    %23 = vector.extract_strided_slice %7 {offsets = [0, 768], sizes = [1, 128], strides = [1, 1]} : vector<1x2048xf32> to vector<1x128xf32>
    %24 = vector.extract_strided_slice %7 {offsets = [0, 896], sizes = [1, 128], strides = [1, 1]} : vector<1x2048xf32> to vector<1x128xf32>
    %25 = vector.extract_strided_slice %7 {offsets = [0, 1024], sizes = [1, 128], strides = [1, 1]} : vector<1x2048xf32> to vector<1x128xf32>
    %26 = vector.extract_strided_slice %7 {offsets = [0, 1152], sizes = [1, 128], strides = [1, 1]} : vector<1x2048xf32> to vector<1x128xf32>
    %27 = vector.extract_strided_slice %7 {offsets = [0, 1280], sizes = [1, 128], strides = [1, 1]} : vector<1x2048xf32> to vector<1x128xf32>
    %28 = vector.extract_strided_slice %7 {offsets = [0, 1408], sizes = [1, 128], strides = [1, 1]} : vector<1x2048xf32> to vector<1x128xf32>
    %29 = vector.extract_strided_slice %7 {offsets = [0, 1536], sizes = [1, 128], strides = [1, 1]} : vector<1x2048xf32> to vector<1x128xf32>
    %30 = vector.extract_strided_slice %7 {offsets = [0, 1664], sizes = [1, 128], strides = [1, 1]} : vector<1x2048xf32> to vector<1x128xf32>
    %31 = vector.extract_strided_slice %7 {offsets = [0, 1792], sizes = [1, 128], strides = [1, 1]} : vector<1x2048xf32> to vector<1x128xf32>
    %32 = vector.extract_strided_slice %7 {offsets = [0, 1920], sizes = [1, 128], strides = [1, 1]} : vector<1x2048xf32> to vector<1x128xf32>
    %33 = arith.addf %17, %18 : vector<1x128xf32>
    %34 = arith.addf %19, %20 : vector<1x128xf32>
    %35 = arith.addf %21, %22 : vector<1x128xf32>
    %36 = arith.addf %23, %24 : vector<1x128xf32>
    %37 = arith.addf %25, %26 : vector<1x128xf32>
    %38 = arith.addf %27, %28 : vector<1x128xf32>
    %39 = arith.addf %29, %30 : vector<1x128xf32>
    %40 = arith.addf %31, %32 : vector<1x128xf32>
    %41 = arith.addf %33, %34 : vector<1x128xf32>
    %42 = arith.addf %35, %36 : vector<1x128xf32>
    %43 = arith.addf %37, %38 : vector<1x128xf32>
    %44 = arith.addf %39, %40 : vector<1x128xf32>
    %45 = arith.addf %41, %42 : vector<1x128xf32>
    %46 = arith.addf %43, %44 : vector<1x128xf32>
    %47 = arith.addf %45, %46 : vector<1x128xf32>
    %c0_4 = arith.constant 0 : index
    %c1536 = arith.constant 1536 : index
    %48 = vector.load %arg18[%c0_4, %c1536] : memref<1x1920xf32, #tpu.memory_space<vmem>>, vector<1x128xf32>
    %49 = arith.addf %48, %47 : vector<1x128xf32>
    %c0_5 = arith.constant 0 : index
    %c1536_6 = arith.constant 1536 : index
    %50 = vector.load %arg18[%c0_5, %c1536_6] : memref<1x1920xf32, #tpu.memory_space<vmem>>, vector<1x128xf32>
    tpu.vector_store %arg18[%c0_5, %c1536_6], %49 {strides = array<i32>} : memref<1x1920xf32, #tpu.memory_space<vmem>>, vector<1x128xf32>,
    %c0_7 = arith.constant 0 : index
    %c0_8 = arith.constant 0 : index
    %51 = vector.load %arg2[%c0_7, %c0_8] : memref<1x2048xf32, #tpu.memory_space<vmem>>, vector<1x2048xf32>
    %52 = math.absf %51 : vector<1x2048xf32>
    %cst_9 = arith.constant 0.000000e+00 : f32
    %53 = vector.broadcast %cst_9 : f32 to vector<1x2048xf32>
    %54 = arith.subf %53, %52 : vector<1x2048xf32>
    %55 = math.exp %54 : vector<1x2048xf32>
    %cst_10 = arith.constant 1.000000e+00 : f32
    %56 = vector.broadcast %cst_10 : f32 to vector<1x2048xf32>
    %57 = arith.addf %56, %55 : vector<1x2048xf32>
    %58 = math.log %57 : vector<1x2048xf32>
    %59 = tpu.reciprocal %57 {approx = true} : vector<1x2048xf32> -> vector<1x2048xf32>
    %60 = arith.mulf %55, %59 : vector<1x2048xf32>
    %cst_11 = arith.constant 0.000000e+00 : f32
    %61 = vector.broadcast %cst_11 : f32 to vector<1x2048xf32>
    %62 = arith.cmpf oge, %51, %61 : vector<1x2048xf32>
    %63 = arith.select %62, %59, %60 : vector<1x2048xi1>, vector<1x2048xf32>
    %64 = arith.select %62, %60, %59 : vector<1x2048xi1>, vector<1x2048xf32>
    %cst_12 = arith.constant 0.000000e+00 : f32
    %65 = vector.broadcast %cst_12 : f32 to vector<1x2048xf32>
    %66 = arith.minimumf %51, %65 : vector<1x2048xf32>
    %67 = arith.subf %66, %58 : vector<1x2048xf32>
    %cst_13 = arith.constant -9.21034049 : f32
    %68 = vector.broadcast %cst_13 : f32 to vector<1x2048xf32>
    %69 = arith.maximumf %67, %68 : vector<1x2048xf32>
    %cst_14 = arith.constant 0.000000e+00 : f32
    %70 = vector.broadcast %cst_14 : f32 to vector<1x2048xf32>
    %71 = arith.maximumf %51, %70 : vector<1x2048xf32>
    %cst_15 = arith.constant 0.000000e+00 : f32
    %72 = vector.broadcast %cst_15 : f32 to vector<1x2048xf32>
    %73 = arith.subf %72, %71 : vector<1x2048xf32>
    %74 = arith.subf %73, %58 : vector<1x2048xf32>
    %cst_16 = arith.constant -9.21034049 : f32
    %75 = vector.broadcast %cst_16 : f32 to vector<1x2048xf32>
    %76 = arith.maximumf %74, %75 : vector<1x2048xf32>
    %77 = arith.mulf %64, %64 : vector<1x2048xf32>
    %78 = arith.mulf %69, %77 : vector<1x2048xf32>
    %79 = arith.mulf %78, %7 : vector<1x2048xf32>
    %80 = arith.mulf %63, %63 : vector<1x2048xf32>
    %81 = arith.mulf %76, %80 : vector<1x2048xf32>
    %82 = arith.mulf %81, %16 : vector<1x2048xf32>
    %83 = vector.extract_strided_slice %79 {offsets = [0, 0], sizes = [1, 128], strides = [1, 1]} : vector<1x2048xf32> to vector<1x128xf32>
    %84 = vector.extract_strided_slice %79 {offsets = [0, 128], sizes = [1, 128], strides = [1, 1]} : vector<1x2048xf32> to vector<1x128xf32>
    %85 = vector.extract_strided_slice %79 {offsets = [0, 256], sizes = [1, 128], strides = [1, 1]} : vector<1x2048xf32> to vector<1x128xf32>
    %86 = vector.extract_strided_slice %79 {offsets = [0, 384], sizes = [1, 128], strides = [1, 1]} : vector<1x2048xf32> to vector<1x128xf32>
    %87 = vector.extract_strided_slice %79 {offsets = [0, 512], sizes = [1, 128], strides = [1, 1]} : vector<1x2048xf32> to vector<1x128xf32>
    %88 = vector.extract_strided_slice %79 {offsets = [0, 640], sizes = [1, 128], strides = [1, 1]} : vector<1x2048xf32> to vector<1x128xf32>
    %89 = vector.extract_strided_slice %79 {offsets = [0, 768], sizes = [1, 128], strides = [1, 1]} : vector<1x2048xf32> to vector<1x128xf32>
    %90 = vector.extract_strided_slice %79 {offsets = [0, 896], sizes = [1, 128], strides = [1, 1]} : vector<1x2048xf32> to vector<1x128xf32>
    %91 = vector.extract_strided_slice %79 {offsets = [0, 1024], sizes = [1, 128], strides = [1, 1]} : vector<1x2048xf32> to vector<1x128xf32>
    %92 = vector.extract_strided_slice %79 {offsets = [0, 1152], sizes = [1, 128], strides = [1, 1]} : vector<1x2048xf32> to vector<1x128xf32>
    %93 = vector.extract_strided_slice %79 {offsets = [0, 1280], sizes = [1, 128], strides = [1, 1]} : vector<1x2048xf32> to vector<1x128xf32>
    %94 = vector.extract_strided_slice %79 {offsets = [0, 1408], sizes = [1, 128], strides = [1, 1]} : vector<1x2048xf32> to vector<1x128xf32>
    %95 = vector.extract_strided_slice %79 {offsets = [0, 1536], sizes = [1, 128], strides = [1, 1]} : vector<1x2048xf32> to vector<1x128xf32>
    %96 = vector.extract_strided_slice %79 {offsets = [0, 1664], sizes = [1, 128], strides = [1, 1]} : vector<1x2048xf32> to vector<1x128xf32>
    %97 = vector.extract_strided_slice %79 {offsets = [0, 1792], sizes = [1, 128], strides = [1, 1]} : vector<1x2048xf32> to vector<1x128xf32>
    %98 = vector.extract_strided_slice %79 {offsets = [0, 1920], sizes = [1, 128], strides = [1, 1]} : vector<1x2048xf32> to vector<1x128xf32>
    %99 = arith.addf %83, %84 : vector<1x128xf32>
    %100 = arith.addf %85, %86 : vector<1x128xf32>
    %101 = arith.addf %87, %88 : vector<1x128xf32>
    %102 = arith.addf %89, %90 : vector<1x128xf32>
    %103 = arith.addf %91, %92 : vector<1x128xf32>
    %104 = arith.addf %93, %94 : vector<1x128xf32>
    %105 = arith.addf %95, %96 : vector<1x128xf32>
    %106 = arith.addf %97, %98 : vector<1x128xf32>
    %107 = arith.addf %99, %100 : vector<1x128xf32>
    %108 = arith.addf %101, %102 : vector<1x128xf32>
    %109 = arith.addf %103, %104 : vector<1x128xf32>
    %110 = arith.addf %105, %106 : vector<1x128xf32>
    %111 = arith.addf %107, %108 : vector<1x128xf32>
    %112 = arith.addf %109, %110 : vector<1x128xf32>
    %113 = arith.addf %111, %112 : vector<1x128xf32>
    %c0_17 = arith.constant 0 : index
    %c0_18 = arith.constant 0 : index
    %114 = vector.load %arg18[%c0_17, %c0_18] : memref<1x1920xf32, #tpu.memory_space<vmem>>, vector<1x128xf32>
    %115 = arith.addf %114, %113 : vector<1x128xf32>
    %c0_19 = arith.constant 0 : index
    %c0_20 = arith.constant 0 : index
    %116 = vector.load %arg18[%c0_19, %c0_20] : memref<1x1920xf32, #tpu.memory_space<vmem>>, vector<1x128xf32>
    tpu.vector_store %arg18[%c0_19, %c0_20], %115 {strides = array<i32>} : memref<1x1920xf32, #tpu.memory_space<vmem>>, vector<1x128xf32>,
    %117 = vector.extract_strided_slice %82 {offsets = [0, 0], sizes = [1, 128], strides = [1, 1]} : vector<1x2048xf32> to vector<1x128xf32>
    %118 = vector.extract_strided_slice %82 {offsets = [0, 128], sizes = [1, 128], strides = [1, 1]} : vector<1x2048xf32> to vector<1x128xf32>
    %119 = vector.extract_strided_slice %82 {offsets = [0, 256], sizes = [1, 128], strides = [1, 1]} : vector<1x2048xf32> to vector<1x128xf32>
    %120 = vector.extract_strided_slice %82 {offsets = [0, 384], sizes = [1, 128], strides = [1, 1]} : vector<1x2048xf32> to vector<1x128xf32>
    %121 = vector.extract_strided_slice %82 {offsets = [0, 512], sizes = [1, 128], strides = [1, 1]} : vector<1x2048xf32> to vector<1x128xf32>
    %122 = vector.extract_strided_slice %82 {offsets = [0, 640], sizes = [1, 128], strides = [1, 1]} : vector<1x2048xf32> to vector<1x128xf32>
    %123 = vector.extract_strided_slice %82 {offsets = [0, 768], sizes = [1, 128], strides = [1, 1]} : vector<1x2048xf32> to vector<1x128xf32>
    %124 = vector.extract_strided_slice %82 {offsets = [0, 896], sizes = [1, 128], strides = [1, 1]} : vector<1x2048xf32> to vector<1x128xf32>
    %125 = vector.extract_strided_slice %82 {offsets = [0, 1024], sizes = [1, 128], strides = [1, 1]} : vector<1x2048xf32> to vector<1x128xf32>
    %126 = vector.extract_strided_slice %82 {offsets = [0, 1152], sizes = [1, 128], strides = [1, 1]} : vector<1x2048xf32> to vector<1x128xf32>
    %127 = vector.extract_strided_slice %82 {offsets = [0, 1280], sizes = [1, 128], strides = [1, 1]} : vector<1x2048xf32> to vector<1x128xf32>
    %128 = vector.extract_strided_slice %82 {offsets = [0, 1408], sizes = [1, 128], strides = [1, 1]} : vector<1x2048xf32> to vector<1x128xf32>
    %129 = vector.extract_strided_slice %82 {offsets = [0, 1536], sizes = [1, 128], strides = [1, 1]} : vector<1x2048xf32> to vector<1x128xf32>
    %130 = vector.extract_strided_slice %82 {offsets = [0, 1664], sizes = [1, 128], strides = [1, 1]} : vector<1x2048xf32> to vector<1x128xf32>
    %131 = vector.extract_strided_slice %82 {offsets = [0, 1792], sizes = [1, 128], strides = [1, 1]} : vector<1x2048xf32> to vector<1x128xf32>
    %132 = vector.extract_strided_slice %82 {offsets = [0, 1920], sizes = [1, 128], strides = [1, 1]} : vector<1x2048xf32> to vector<1x128xf32>
    %133 = arith.addf %117, %118 : vector<1x128xf32>
    %134 = arith.addf %119, %120 : vector<1x128xf32>
    %135 = arith.addf %121, %122 : vector<1x128xf32>
    %136 = arith.addf %123, %124 : vector<1x128xf32>
    %137 = arith.addf %125, %126 : vector<1x128xf32>
    %138 = arith.addf %127, %128 : vector<1x128xf32>
    %139 = arith.addf %129, %130 : vector<1x128xf32>
    %140 = arith.addf %131, %132 : vector<1x128xf32>
    %141 = arith.addf %133, %134 : vector<1x128xf32>
    %142 = arith.addf %135, %136 : vector<1x128xf32>
    %143 = arith.addf %137, %138 : vector<1x128xf32>
    %144 = arith.addf %139, %140 : vector<1x128xf32>
    %145 = arith.addf %141, %142 : vector<1x128xf32>
    %146 = arith.addf %143, %144 : vector<1x128xf32>
    %147 = arith.addf %145, %146 : vector<1x128xf32>
    %c0_21 = arith.constant 0 : index
    %c128 = arith.constant 128 : index
    %148 = vector.load %arg18[%c0_21, %c128] : memref<1x1920xf32, #tpu.memory_space<vmem>>, vector<1x128xf32>
    %149 = arith.addf %148, %147 : vector<1x128xf32>
    %c0_22 = arith.constant 0 : index
    %c128_23 = arith.constant 128 : index
    %150 = vector.load %arg18[%c0_22, %c128_23] : memref<1x1920xf32, #tpu.memory_space<vmem>>, vector<1x128xf32>
    tpu.vector_store %arg18[%c0_22, %c128_23], %149 {strides = array<i32>} : memref<1x1920xf32, #tpu.memory_space<vmem>>, vector<1x128xf32>,
    %c0_24 = arith.constant 0 : index
    %c0_25 = arith.constant 0 : index
    %151 = vector.load %arg3[%c0_24, %c0_25] : memref<1x2048xf32, #tpu.memory_space<vmem>>, vector<1x2048xf32>
    %152 = math.absf %151 : vector<1x2048xf32>
    %cst_26 = arith.constant 0.000000e+00 : f32
    %153 = vector.broadcast %cst_26 : f32 to vector<1x2048xf32>
    %154 = arith.subf %153, %152 : vector<1x2048xf32>
    %155 = math.exp %154 : vector<1x2048xf32>
    %cst_27 = arith.constant 1.000000e+00 : f32
    %156 = vector.broadcast %cst_27 : f32 to vector<1x2048xf32>
    %157 = arith.addf %156, %155 : vector<1x2048xf32>
    %158 = math.log %157 : vector<1x2048xf32>
    %159 = tpu.reciprocal %157 {approx = true} : vector<1x2048xf32> -> vector<1x2048xf32>
    %160 = arith.mulf %155, %159 : vector<1x2048xf32>
    %cst_28 = arith.constant 0.000000e+00 : f32
    %161 = vector.broadcast %cst_28 : f32 to vector<1x2048xf32>
    %162 = arith.cmpf oge, %151, %161 : vector<1x2048xf32>
    %163 = arith.select %162, %159, %160 : vector<1x2048xi1>, vector<1x2048xf32>
    %164 = arith.select %162, %160, %159 : vector<1x2048xi1>, vector<1x2048xf32>
    %cst_29 = arith.constant 0.000000e+00 : f32
    %165 = vector.broadcast %cst_29 : f32 to vector<1x2048xf32>
    %166 = arith.minimumf %151, %165 : vector<1x2048xf32>
    %167 = arith.subf %166, %158 : vector<1x2048xf32>
    %cst_30 = arith.constant -9.21034049 : f32
    %168 = vector.broadcast %cst_30 : f32 to vector<1x2048xf32>
    %169 = arith.maximumf %167, %168 : vector<1x2048xf32>
    %cst_31 = arith.constant 0.000000e+00 : f32
    %170 = vector.broadcast %cst_31 : f32 to vector<1x2048xf32>
    %171 = arith.maximumf %151, %170 : vector<1x2048xf32>
    %cst_32 = arith.constant 0.000000e+00 : f32
    %172 = vector.broadcast %cst_32 : f32 to vector<1x2048xf32>
    %173 = arith.subf %172, %171 : vector<1x2048xf32>
    %174 = arith.subf %173, %158 : vector<1x2048xf32>
    %cst_33 = arith.constant -9.21034049 : f32
    %175 = vector.broadcast %cst_33 : f32 to vector<1x2048xf32>
    %176 = arith.maximumf %174, %175 : vector<1x2048xf32>
    %177 = arith.mulf %164, %164 : vector<1x2048xf32>
    %178 = arith.mulf %169, %177 : vector<1x2048xf32>
    %179 = arith.mulf %178, %7 : vector<1x2048xf32>
    %180 = arith.mulf %163, %163 : vector<1x2048xf32>
    %181 = arith.mulf %176, %180 : vector<1x2048xf32>
    %182 = arith.mulf %181, %16 : vector<1x2048xf32>
    %183 = vector.extract_strided_slice %179 {offsets = [0, 0], sizes = [1, 128], strides = [1, 1]} : vector<1x2048xf32> to vector<1x128xf32>
    %184 = vector.extract_strided_slice %179 {offsets = [0, 128], sizes = [1, 128], strides = [1, 1]} : vector<1x2048xf32> to vector<1x128xf32>
    %185 = vector.extract_strided_slice %179 {offsets = [0, 256], sizes = [1, 128], strides = [1, 1]} : vector<1x2048xf32> to vector<1x128xf32>
    %186 = vector.extract_strided_slice %179 {offsets = [0, 384], sizes = [1, 128], strides = [1, 1]} : vector<1x2048xf32> to vector<1x128xf32>
    %187 = vector.extract_strided_slice %179 {offsets = [0, 512], sizes = [1, 128], strides = [1, 1]} : vector<1x2048xf32> to vector<1x128xf32>
    %188 = vector.extract_strided_slice %179 {offsets = [0, 640], sizes = [1, 128], strides = [1, 1]} : vector<1x2048xf32> to vector<1x128xf32>
    %189 = vector.extract_strided_slice %179 {offsets = [0, 768], sizes = [1, 128], strides = [1, 1]} : vector<1x2048xf32> to vector<1x128xf32>
    %190 = vector.extract_strided_slice %179 {offsets = [0, 896], sizes = [1, 128], strides = [1, 1]} : vector<1x2048xf32> to vector<1x128xf32>
    %191 = vector.extract_strided_slice %179 {offsets = [0, 1024], sizes = [1, 128], strides = [1, 1]} : vector<1x2048xf32> to vector<1x128xf32>
    %192 = vector.extract_strided_slice %179 {offsets = [0, 1152], sizes = [1, 128], strides = [1, 1]} : vector<1x2048xf32> to vector<1x128xf32>
    %193 = vector.extract_strided_slice %179 {offsets = [0, 1280], sizes = [1, 128], strides = [1, 1]} : vector<1x2048xf32> to vector<1x128xf32>
    %194 = vector.extract_strided_slice %179 {offsets = [0, 1408], sizes = [1, 128], strides = [1, 1]} : vector<1x2048xf32> to vector<1x128xf32>
    %195 = vector.extract_strided_slice %179 {offsets = [0, 1536], sizes = [1, 128], strides = [1, 1]} : vector<1x2048xf32> to vector<1x128xf32>
    %196 = vector.extract_strided_slice %179 {offsets = [0, 1664], sizes = [1, 128], strides = [1, 1]} : vector<1x2048xf32> to vector<1x128xf32>
    %197 = vector.extract_strided_slice %179 {offsets = [0, 1792], sizes = [1, 128], strides = [1, 1]} : vector<1x2048xf32> to vector<1x128xf32>
    %198 = vector.extract_strided_slice %179 {offsets = [0, 1920], sizes = [1, 128], strides = [1, 1]} : vector<1x2048xf32> to vector<1x128xf32>
    %199 = arith.addf %183, %184 : vector<1x128xf32>
    %200 = arith.addf %185, %186 : vector<1x128xf32>
    %201 = arith.addf %187, %188 : vector<1x128xf32>
    %202 = arith.addf %189, %190 : vector<1x128xf32>
    %203 = arith.addf %191, %192 : vector<1x128xf32>
    %204 = arith.addf %193, %194 : vector<1x128xf32>
    %205 = arith.addf %195, %196 : vector<1x128xf32>
    %206 = arith.addf %197, %198 : vector<1x128xf32>
    %207 = arith.addf %199, %200 : vector<1x128xf32>
    %208 = arith.addf %201, %202 : vector<1x128xf32>
    %209 = arith.addf %203, %204 : vector<1x128xf32>
    %210 = arith.addf %205, %206 : vector<1x128xf32>
    %211 = arith.addf %207, %208 : vector<1x128xf32>
    %212 = arith.addf %209, %210 : vector<1x128xf32>
    %213 = arith.addf %211, %212 : vector<1x128xf32>
    %c0_34 = arith.constant 0 : index
    %c256 = arith.constant 256 : index
    %214 = vector.load %arg18[%c0_34, %c256] : memref<1x1920xf32, #tpu.memory_space<vmem>>, vector<1x128xf32>
    %215 = arith.addf %214, %213 : vector<1x128xf32>
    %c0_35 = arith.constant 0 : index
    %c256_36 = arith.constant 256 : index
    %216 = vector.load %arg18[%c0_35, %c256_36] : memref<1x1920xf32, #tpu.memory_space<vmem>>, vector<1x128xf32>
    tpu.vector_store %arg18[%c0_35, %c256_36], %215 {strides = array<i32>} : memref<1x1920xf32, #tpu.memory_space<vmem>>, vector<1x128xf32>,
    %217 = vector.extract_strided_slice %182 {offsets = [0, 0], sizes = [1, 128], strides = [1, 1]} : vector<1x2048xf32> to vector<1x128xf32>
    %218 = vector.extract_strided_slice %182 {offsets = [0, 128], sizes = [1, 128], strides = [1, 1]} : vector<1x2048xf32> to vector<1x128xf32>
    %219 = vector.extract_strided_slice %182 {offsets = [0, 256], sizes = [1, 128], strides = [1, 1]} : vector<1x2048xf32> to vector<1x128xf32>
    %220 = vector.extract_strided_slice %182 {offsets = [0, 384], sizes = [1, 128], strides = [1, 1]} : vector<1x2048xf32> to vector<1x128xf32>
    %221 = vector.extract_strided_slice %182 {offsets = [0, 512], sizes = [1, 128], strides = [1, 1]} : vector<1x2048xf32> to vector<1x128xf32>
    %222 = vector.extract_strided_slice %182 {offsets = [0, 640], sizes = [1, 128], strides = [1, 1]} : vector<1x2048xf32> to vector<1x128xf32>
    %223 = vector.extract_strided_slice %182 {offsets = [0, 768], sizes = [1, 128], strides = [1, 1]} : vector<1x2048xf32> to vector<1x128xf32>
    %224 = vector.extract_strided_slice %182 {offsets = [0, 896], sizes = [1, 128], strides = [1, 1]} : vector<1x2048xf32> to vector<1x128xf32>
    %225 = vector.extract_strided_slice %182 {offsets = [0, 1024], sizes = [1, 128], strides = [1, 1]} : vector<1x2048xf32> to vector<1x128xf32>
    %226 = vector.extract_strided_slice %182 {offsets = [0, 1152], sizes = [1, 128], strides = [1, 1]} : vector<1x2048xf32> to vector<1x128xf32>
    %227 = vector.extract_strided_slice %182 {offsets = [0, 1280], sizes = [1, 128], strides = [1, 1]} : vector<1x2048xf32> to vector<1x128xf32>
    %228 = vector.extract_strided_slice %182 {offsets = [0, 1408], sizes = [1, 128], strides = [1, 1]} : vector<1x2048xf32> to vector<1x128xf32>
    %229 = vector.extract_strided_slice %182 {offsets = [0, 1536], sizes = [1, 128], strides = [1, 1]} : vector<1x2048xf32> to vector<1x128xf32>
    %230 = vector.extract_strided_slice %182 {offsets = [0, 1664], sizes = [1, 128], strides = [1, 1]} : vector<1x2048xf32> to vector<1x128xf32>
    %231 = vector.extract_strided_slice %182 {offsets = [0, 1792], sizes = [1, 128], strides = [1, 1]} : vector<1x2048xf32> to vector<1x128xf32>
    %232 = vector.extract_strided_slice %182 {offsets = [0, 1920], sizes = [1, 128], strides = [1, 1]} : vector<1x2048xf32> to vector<1x128xf32>
    %233 = arith.addf %217, %218 : vector<1x128xf32>
    %234 = arith.addf %219, %220 : vector<1x128xf32>
    %235 = arith.addf %221, %222 : vector<1x128xf32>
    %236 = arith.addf %223, %224 : vector<1x128xf32>
    %237 = arith.addf %225, %226 : vector<1x128xf32>
    %238 = arith.addf %227, %228 : vector<1x128xf32>
    %239 = arith.addf %229, %230 : vector<1x128xf32>
    %240 = arith.addf %231, %232 : vector<1x128xf32>
    %241 = arith.addf %233, %234 : vector<1x128xf32>
    %242 = arith.addf %235, %236 : vector<1x128xf32>
    %243 = arith.addf %237, %238 : vector<1x128xf32>
    %244 = arith.addf %239, %240 : vector<1x128xf32>
    %245 = arith.addf %241, %242 : vector<1x128xf32>
    %246 = arith.addf %243, %244 : vector<1x128xf32>
    %247 = arith.addf %245, %246 : vector<1x128xf32>
    %c0_37 = arith.constant 0 : index
    %c384 = arith.constant 384 : index
    %248 = vector.load %arg18[%c0_37, %c384] : memref<1x1920xf32, #tpu.memory_space<vmem>>, vector<1x128xf32>
    %249 = arith.addf %248, %247 : vector<1x128xf32>
    %c0_38 = arith.constant 0 : index
    %c384_39 = arith.constant 384 : index
    %250 = vector.load %arg18[%c0_38, %c384_39] : memref<1x1920xf32, #tpu.memory_space<vmem>>, vector<1x128xf32>
    tpu.vector_store %arg18[%c0_38, %c384_39], %249 {strides = array<i32>} : memref<1x1920xf32, #tpu.memory_space<vmem>>, vector<1x128xf32>,
    %c0_40 = arith.constant 0 : index
    %c0_41 = arith.constant 0 : index
    %251 = vector.load %arg9[%c0_40, %c0_41] : memref<1x2048xf32, #tpu.memory_space<vmem>>, vector<1x2048xf32>
    %cst_42 = arith.constant 1.000000e+00 : f32
    %252 = vector.broadcast %cst_42 : f32 to vector<1x2048xf32>
    %253 = arith.cmpf oeq, %251, %252 : vector<1x2048xf32>
    %254 = arith.extui %253 : vector<1x2048xi1> to vector<1x2048xi32>
    %255 = arith.sitofp %254 : vector<1x2048xi32> to vector<1x2048xf32>
    %cst_43 = arith.constant 1.000000e+00 : f32
    %256 = vector.broadcast %cst_43 : f32 to vector<1x2048xf32>
    %257 = arith.cmpf olt, %251, %256 : vector<1x2048xf32>
    %258 = arith.extui %257 : vector<1x2048xi1> to vector<1x2048xi32>
    %259 = arith.sitofp %258 : vector<1x2048xi32> to vector<1x2048xf32>
    %cst_44 = arith.constant 1.000000e+00 : f32
    %260 = vector.broadcast %cst_44 : f32 to vector<1x2048xf32>
    %261 = arith.subf %260, %251 : vector<1x2048xf32>
    %262 = arith.mulf %261, %261 : vector<1x2048xf32>
    %263 = arith.mulf %262, %262 : vector<1x2048xf32>
    %264 = arith.mulf %263, %259 : vector<1x2048xf32>
    %265 = vector.extract_strided_slice %255 {offsets = [0, 0], sizes = [1, 128], strides = [1, 1]} : vector<1x2048xf32> to vector<1x128xf32>
    %266 = vector.extract_strided_slice %255 {offsets = [0, 128], sizes = [1, 128], strides = [1, 1]} : vector<1x2048xf32> to vector<1x128xf32>
    %267 = vector.extract_strided_slice %255 {offsets = [0, 256], sizes = [1, 128], strides = [1, 1]} : vector<1x2048xf32> to vector<1x128xf32>
    %268 = vector.extract_strided_slice %255 {offsets = [0, 384], sizes = [1, 128], strides = [1, 1]} : vector<1x2048xf32> to vector<1x128xf32>
    %269 = vector.extract_strided_slice %255 {offsets = [0, 512], sizes = [1, 128], strides = [1, 1]} : vector<1x2048xf32> to vector<1x128xf32>
    %270 = vector.extract_strided_slice %255 {offsets = [0, 640], sizes = [1, 128], strides = [1, 1]} : vector<1x2048xf32> to vector<1x128xf32>
    %271 = vector.extract_strided_slice %255 {offsets = [0, 768], sizes = [1, 128], strides = [1, 1]} : vector<1x2048xf32> to vector<1x128xf32>
    %272 = vector.extract_strided_slice %255 {offsets = [0, 896], sizes = [1, 128], strides = [1, 1]} : vector<1x2048xf32> to vector<1x128xf32>
    %273 = vector.extract_strided_slice %255 {offsets = [0, 1024], sizes = [1, 128], strides = [1, 1]} : vector<1x2048xf32> to vector<1x128xf32>
    %274 = vector.extract_strided_slice %255 {offsets = [0, 1152], sizes = [1, 128], strides = [1, 1]} : vector<1x2048xf32> to vector<1x128xf32>
    %275 = vector.extract_strided_slice %255 {offsets = [0, 1280], sizes = [1, 128], strides = [1, 1]} : vector<1x2048xf32> to vector<1x128xf32>
    %276 = vector.extract_strided_slice %255 {offsets = [0, 1408], sizes = [1, 128], strides = [1, 1]} : vector<1x2048xf32> to vector<1x128xf32>
    %277 = vector.extract_strided_slice %255 {offsets = [0, 1536], sizes = [1, 128], strides = [1, 1]} : vector<1x2048xf32> to vector<1x128xf32>
    %278 = vector.extract_strided_slice %255 {offsets = [0, 1664], sizes = [1, 128], strides = [1, 1]} : vector<1x2048xf32> to vector<1x128xf32>
    %279 = vector.extract_strided_slice %255 {offsets = [0, 1792], sizes = [1, 128], strides = [1, 1]} : vector<1x2048xf32> to vector<1x128xf32>
    %280 = vector.extract_strided_slice %255 {offsets = [0, 1920], sizes = [1, 128], strides = [1, 1]} : vector<1x2048xf32> to vector<1x128xf32>
    %281 = arith.addf %265, %266 : vector<1x128xf32>
    %282 = arith.addf %267, %268 : vector<1x128xf32>
    %283 = arith.addf %269, %270 : vector<1x128xf32>
    %284 = arith.addf %271, %272 : vector<1x128xf32>
    %285 = arith.addf %273, %274 : vector<1x128xf32>
    %286 = arith.addf %275, %276 : vector<1x128xf32>
    %287 = arith.addf %277, %278 : vector<1x128xf32>
    %288 = arith.addf %279, %280 : vector<1x128xf32>
    %289 = arith.addf %281, %282 : vector<1x128xf32>
    %290 = arith.addf %283, %284 : vector<1x128xf32>
    %291 = arith.addf %285, %286 : vector<1x128xf32>
    %292 = arith.addf %287, %288 : vector<1x128xf32>
    %293 = arith.addf %289, %290 : vector<1x128xf32>
    %294 = arith.addf %291, %292 : vector<1x128xf32>
    %295 = arith.addf %293, %294 : vector<1x128xf32>
    %c0_45 = arith.constant 0 : index
    %c1664 = arith.constant 1664 : index
    %296 = vector.load %arg18[%c0_45, %c1664] : memref<1x1920xf32, #tpu.memory_space<vmem>>, vector<1x128xf32>
    %297 = arith.addf %296, %295 : vector<1x128xf32>
    %c0_46 = arith.constant 0 : index
    %c1664_47 = arith.constant 1664 : index
    %298 = vector.load %arg18[%c0_46, %c1664_47] : memref<1x1920xf32, #tpu.memory_space<vmem>>, vector<1x128xf32>
    tpu.vector_store %arg18[%c0_46, %c1664_47], %297 {strides = array<i32>} : memref<1x1920xf32, #tpu.memory_space<vmem>>, vector<1x128xf32>,
    %c0_48 = arith.constant 0 : index
    %c0_49 = arith.constant 0 : index
    %299 = vector.load %arg4[%c0_48, %c0_49] : memref<1x2048xf32, #tpu.memory_space<vmem>>, vector<1x2048xf32>
    %300 = math.absf %299 : vector<1x2048xf32>
    %cst_50 = arith.constant 0.000000e+00 : f32
    %301 = vector.broadcast %cst_50 : f32 to vector<1x2048xf32>
    %302 = arith.subf %301, %300 : vector<1x2048xf32>
    %303 = math.exp %302 : vector<1x2048xf32>
    %cst_51 = arith.constant 1.000000e+00 : f32
    %304 = vector.broadcast %cst_51 : f32 to vector<1x2048xf32>
    %305 = arith.addf %304, %303 : vector<1x2048xf32>
    %306 = math.log %305 : vector<1x2048xf32>
    %307 = tpu.reciprocal %305 {approx = true} : vector<1x2048xf32> -> vector<1x2048xf32>
    %308 = arith.mulf %303, %307 : vector<1x2048xf32>
    %cst_52 = arith.constant 0.000000e+00 : f32
    %309 = vector.broadcast %cst_52 : f32 to vector<1x2048xf32>
    %310 = arith.cmpf oge, %299, %309 : vector<1x2048xf32>
    %311 = arith.select %310, %307, %308 : vector<1x2048xi1>, vector<1x2048xf32>
    %312 = arith.select %310, %308, %307 : vector<1x2048xi1>, vector<1x2048xf32>
    %cst_53 = arith.constant 0.000000e+00 : f32
    %313 = vector.broadcast %cst_53 : f32 to vector<1x2048xf32>
    %314 = arith.minimumf %299, %313 : vector<1x2048xf32>
    %315 = arith.subf %314, %306 : vector<1x2048xf32>
    %cst_54 = arith.constant -9.21034049 : f32
    %316 = vector.broadcast %cst_54 : f32 to vector<1x2048xf32>
    %317 = arith.maximumf %315, %316 : vector<1x2048xf32>
    %cst_55 = arith.constant 0.000000e+00 : f32
    %318 = vector.broadcast %cst_55 : f32 to vector<1x2048xf32>
    %319 = arith.maximumf %299, %318 : vector<1x2048xf32>
    %cst_56 = arith.constant 0.000000e+00 : f32
    %320 = vector.broadcast %cst_56 : f32 to vector<1x2048xf32>
    %321 = arith.subf %320, %319 : vector<1x2048xf32>
    %322 = arith.subf %321, %306 : vector<1x2048xf32>
    %cst_57 = arith.constant -9.21034049 : f32
    %323 = vector.broadcast %cst_57 : f32 to vector<1x2048xf32>
    %324 = arith.maximumf %322, %323 : vector<1x2048xf32>
    %325 = arith.mulf %312, %312 : vector<1x2048xf32>
    %326 = arith.mulf %317, %325 : vector<1x2048xf32>
    %327 = arith.mulf %326, %255 : vector<1x2048xf32>
    %328 = arith.mulf %311, %311 : vector<1x2048xf32>
    %329 = arith.mulf %324, %328 : vector<1x2048xf32>
    %330 = arith.mulf %329, %264 : vector<1x2048xf32>
    %331 = vector.extract_strided_slice %327 {offsets = [0, 0], sizes = [1, 128], strides = [1, 1]} : vector<1x2048xf32> to vector<1x128xf32>
    %332 = vector.extract_strided_slice %327 {offsets = [0, 128], sizes = [1, 128], strides = [1, 1]} : vector<1x2048xf32> to vector<1x128xf32>
    %333 = vector.extract_strided_slice %327 {offsets = [0, 256], sizes = [1, 128], strides = [1, 1]} : vector<1x2048xf32> to vector<1x128xf32>
    %334 = vector.extract_strided_slice %327 {offsets = [0, 384], sizes = [1, 128], strides = [1, 1]} : vector<1x2048xf32> to vector<1x128xf32>
    %335 = vector.extract_strided_slice %327 {offsets = [0, 512], sizes = [1, 128], strides = [1, 1]} : vector<1x2048xf32> to vector<1x128xf32>
    %336 = vector.extract_strided_slice %327 {offsets = [0, 640], sizes = [1, 128], strides = [1, 1]} : vector<1x2048xf32> to vector<1x128xf32>
    %337 = vector.extract_strided_slice %327 {offsets = [0, 768], sizes = [1, 128], strides = [1, 1]} : vector<1x2048xf32> to vector<1x128xf32>
    %338 = vector.extract_strided_slice %327 {offsets = [0, 896], sizes = [1, 128], strides = [1, 1]} : vector<1x2048xf32> to vector<1x128xf32>
    %339 = vector.extract_strided_slice %327 {offsets = [0, 1024], sizes = [1, 128], strides = [1, 1]} : vector<1x2048xf32> to vector<1x128xf32>
    %340 = vector.extract_strided_slice %327 {offsets = [0, 1152], sizes = [1, 128], strides = [1, 1]} : vector<1x2048xf32> to vector<1x128xf32>
    %341 = vector.extract_strided_slice %327 {offsets = [0, 1280], sizes = [1, 128], strides = [1, 1]} : vector<1x2048xf32> to vector<1x128xf32>
    %342 = vector.extract_strided_slice %327 {offsets = [0, 1408], sizes = [1, 128], strides = [1, 1]} : vector<1x2048xf32> to vector<1x128xf32>
    %343 = vector.extract_strided_slice %327 {offsets = [0, 1536], sizes = [1, 128], strides = [1, 1]} : vector<1x2048xf32> to vector<1x128xf32>
    %344 = vector.extract_strided_slice %327 {offsets = [0, 1664], sizes = [1, 128], strides = [1, 1]} : vector<1x2048xf32> to vector<1x128xf32>
    %345 = vector.extract_strided_slice %327 {offsets = [0, 1792], sizes = [1, 128], strides = [1, 1]} : vector<1x2048xf32> to vector<1x128xf32>
    %346 = vector.extract_strided_slice %327 {offsets = [0, 1920], sizes = [1, 128], strides = [1, 1]} : vector<1x2048xf32> to vector<1x128xf32>
    %347 = arith.addf %331, %332 : vector<1x128xf32>
    %348 = arith.addf %333, %334 : vector<1x128xf32>
    %349 = arith.addf %335, %336 : vector<1x128xf32>
    %350 = arith.addf %337, %338 : vector<1x128xf32>
    %351 = arith.addf %339, %340 : vector<1x128xf32>
    %352 = arith.addf %341, %342 : vector<1x128xf32>
    %353 = arith.addf %343, %344 : vector<1x128xf32>
    %354 = arith.addf %345, %346 : vector<1x128xf32>
    %355 = arith.addf %347, %348 : vector<1x128xf32>
    %356 = arith.addf %349, %350 : vector<1x128xf32>
    %357 = arith.addf %351, %352 : vector<1x128xf32>
    %358 = arith.addf %353, %354 : vector<1x128xf32>
    %359 = arith.addf %355, %356 : vector<1x128xf32>
    %360 = arith.addf %357, %358 : vector<1x128xf32>
    %361 = arith.addf %359, %360 : vector<1x128xf32>
    %c0_58 = arith.constant 0 : index
    %c512 = arith.constant 512 : index
    %362 = vector.load %arg18[%c0_58, %c512] : memref<1x1920xf32, #tpu.memory_space<vmem>>, vector<1x128xf32>
    %363 = arith.addf %362, %361 : vector<1x128xf32>
    %c0_59 = arith.constant 0 : index
    %c512_60 = arith.constant 512 : index
    %364 = vector.load %arg18[%c0_59, %c512_60] : memref<1x1920xf32, #tpu.memory_space<vmem>>, vector<1x128xf32>
    tpu.vector_store %arg18[%c0_59, %c512_60], %363 {strides = array<i32>} : memref<1x1920xf32, #tpu.memory_space<vmem>>, vector<1x128xf32>,
    %365 = vector.extract_strided_slice %330 {offsets = [0, 0], sizes = [1, 128], strides = [1, 1]} : vector<1x2048xf32> to vector<1x128xf32>
    %366 = vector.extract_strided_slice %330 {offsets = [0, 128], sizes = [1, 128], strides = [1, 1]} : vector<1x2048xf32> to vector<1x128xf32>
    %367 = vector.extract_strided_slice %330 {offsets = [0, 256], sizes = [1, 128], strides = [1, 1]} : vector<1x2048xf32> to vector<1x128xf32>
    %368 = vector.extract_strided_slice %330 {offsets = [0, 384], sizes = [1, 128], strides = [1, 1]} : vector<1x2048xf32> to vector<1x128xf32>
    %369 = vector.extract_strided_slice %330 {offsets = [0, 512], sizes = [1, 128], strides = [1, 1]} : vector<1x2048xf32> to vector<1x128xf32>
    %370 = vector.extract_strided_slice %330 {offsets = [0, 640], sizes = [1, 128], strides = [1, 1]} : vector<1x2048xf32> to vector<1x128xf32>
    %371 = vector.extract_strided_slice %330 {offsets = [0, 768], sizes = [1, 128], strides = [1, 1]} : vector<1x2048xf32> to vector<1x128xf32>
    %372 = vector.extract_strided_slice %330 {offsets = [0, 896], sizes = [1, 128], strides = [1, 1]} : vector<1x2048xf32> to vector<1x128xf32>
    %373 = vector.extract_strided_slice %330 {offsets = [0, 1024], sizes = [1, 128], strides = [1, 1]} : vector<1x2048xf32> to vector<1x128xf32>
    %374 = vector.extract_strided_slice %330 {offsets = [0, 1152], sizes = [1, 128], strides = [1, 1]} : vector<1x2048xf32> to vector<1x128xf32>
    %375 = vector.extract_strided_slice %330 {offsets = [0, 1280], sizes = [1, 128], strides = [1, 1]} : vector<1x2048xf32> to vector<1x128xf32>
    %376 = vector.extract_strided_slice %330 {offsets = [0, 1408], sizes = [1, 128], strides = [1, 1]} : vector<1x2048xf32> to vector<1x128xf32>
    %377 = vector.extract_strided_slice %330 {offsets = [0, 1536], sizes = [1, 128], strides = [1, 1]} : vector<1x2048xf32> to vector<1x128xf32>
    %378 = vector.extract_strided_slice %330 {offsets = [0, 1664], sizes = [1, 128], strides = [1, 1]} : vector<1x2048xf32> to vector<1x128xf32>
    %379 = vector.extract_strided_slice %330 {offsets = [0, 1792], sizes = [1, 128], strides = [1, 1]} : vector<1x2048xf32> to vector<1x128xf32>
    %380 = vector.extract_strided_slice %330 {offsets = [0, 1920], sizes = [1, 128], strides = [1, 1]} : vector<1x2048xf32> to vector<1x128xf32>
    %381 = arith.addf %365, %366 : vector<1x128xf32>
    %382 = arith.addf %367, %368 : vector<1x128xf32>
    %383 = arith.addf %369, %370 : vector<1x128xf32>
    %384 = arith.addf %371, %372 : vector<1x128xf32>
    %385 = arith.addf %373, %374 : vector<1x128xf32>
    %386 = arith.addf %375, %376 : vector<1x128xf32>
    %387 = arith.addf %377, %378 : vector<1x128xf32>
    %388 = arith.addf %379, %380 : vector<1x128xf32>
    %389 = arith.addf %381, %382 : vector<1x128xf32>
    %390 = arith.addf %383, %384 : vector<1x128xf32>
    %391 = arith.addf %385, %386 : vector<1x128xf32>
    %392 = arith.addf %387, %388 : vector<1x128xf32>
    %393 = arith.addf %389, %390 : vector<1x128xf32>
    %394 = arith.addf %391, %392 : vector<1x128xf32>
    %395 = arith.addf %393, %394 : vector<1x128xf32>
    %c0_61 = arith.constant 0 : index
    %c640 = arith.constant 640 : index
    %396 = vector.load %arg18[%c0_61, %c640] : memref<1x1920xf32, #tpu.memory_space<vmem>>, vector<1x128xf32>
    %397 = arith.addf %396, %395 : vector<1x128xf32>
    %c0_62 = arith.constant 0 : index
    %c640_63 = arith.constant 640 : index
    %398 = vector.load %arg18[%c0_62, %c640_63] : memref<1x1920xf32, #tpu.memory_space<vmem>>, vector<1x128xf32>
    tpu.vector_store %arg18[%c0_62, %c640_63], %397 {strides = array<i32>} : memref<1x1920xf32, #tpu.memory_space<vmem>>, vector<1x128xf32>,
    %c0_64 = arith.constant 0 : index
    %c0_65 = arith.constant 0 : index
    %399 = vector.load %arg5[%c0_64, %c0_65] : memref<1x2048xf32, #tpu.memory_space<vmem>>, vector<1x2048xf32>
    %400 = math.absf %399 : vector<1x2048xf32>
    %cst_66 = arith.constant 0.000000e+00 : f32
    %401 = vector.broadcast %cst_66 : f32 to vector<1x2048xf32>
    %402 = arith.subf %401, %400 : vector<1x2048xf32>
    %403 = math.exp %402 : vector<1x2048xf32>
    %cst_67 = arith.constant 1.000000e+00 : f32
    %404 = vector.broadcast %cst_67 : f32 to vector<1x2048xf32>
    %405 = arith.addf %404, %403 : vector<1x2048xf32>
    %406 = math.log %405 : vector<1x2048xf32>
    %407 = tpu.reciprocal %405 {approx = true} : vector<1x2048xf32> -> vector<1x2048xf32>
    %408 = arith.mulf %403, %407 : vector<1x2048xf32>
    %cst_68 = arith.constant 0.000000e+00 : f32
    %409 = vector.broadcast %cst_68 : f32 to vector<1x2048xf32>
    %410 = arith.cmpf oge, %399, %409 : vector<1x2048xf32>
    %411 = arith.select %410, %407, %408 : vector<1x2048xi1>, vector<1x2048xf32>
    %412 = arith.select %410, %408, %407 : vector<1x2048xi1>, vector<1x2048xf32>
    %cst_69 = arith.constant 0.000000e+00 : f32
    %413 = vector.broadcast %cst_69 : f32 to vector<1x2048xf32>
    %414 = arith.minimumf %399, %413 : vector<1x2048xf32>
    %415 = arith.subf %414, %406 : vector<1x2048xf32>
    %cst_70 = arith.constant -9.21034049 : f32
    %416 = vector.broadcast %cst_70 : f32 to vector<1x2048xf32>
    %417 = arith.maximumf %415, %416 : vector<1x2048xf32>
    %cst_71 = arith.constant 0.000000e+00 : f32
    %418 = vector.broadcast %cst_71 : f32 to vector<1x2048xf32>
    %419 = arith.maximumf %399, %418 : vector<1x2048xf32>
    %cst_72 = arith.constant 0.000000e+00 : f32
    %420 = vector.broadcast %cst_72 : f32 to vector<1x2048xf32>
    %421 = arith.subf %420, %419 : vector<1x2048xf32>
    %422 = arith.subf %421, %406 : vector<1x2048xf32>
    %cst_73 = arith.constant -9.21034049 : f32
    %423 = vector.broadcast %cst_73 : f32 to vector<1x2048xf32>
    %424 = arith.maximumf %422, %423 : vector<1x2048xf32>
    %425 = arith.mulf %412, %412 : vector<1x2048xf32>
    %426 = arith.mulf %417, %425 : vector<1x2048xf32>
    %427 = arith.mulf %426, %255 : vector<1x2048xf32>
    %428 = arith.mulf %411, %411 : vector<1x2048xf32>
    %429 = arith.mulf %424, %428 : vector<1x2048xf32>
    %430 = arith.mulf %429, %264 : vector<1x2048xf32>
    %431 = vector.extract_strided_slice %427 {offsets = [0, 0], sizes = [1, 128], strides = [1, 1]} : vector<1x2048xf32> to vector<1x128xf32>
    %432 = vector.extract_strided_slice %427 {offsets = [0, 128], sizes = [1, 128], strides = [1, 1]} : vector<1x2048xf32> to vector<1x128xf32>
    %433 = vector.extract_strided_slice %427 {offsets = [0, 256], sizes = [1, 128], strides = [1, 1]} : vector<1x2048xf32> to vector<1x128xf32>
    %434 = vector.extract_strided_slice %427 {offsets = [0, 384], sizes = [1, 128], strides = [1, 1]} : vector<1x2048xf32> to vector<1x128xf32>
    %435 = vector.extract_strided_slice %427 {offsets = [0, 512], sizes = [1, 128], strides = [1, 1]} : vector<1x2048xf32> to vector<1x128xf32>
    %436 = vector.extract_strided_slice %427 {offsets = [0, 640], sizes = [1, 128], strides = [1, 1]} : vector<1x2048xf32> to vector<1x128xf32>
    %437 = vector.extract_strided_slice %427 {offsets = [0, 768], sizes = [1, 128], strides = [1, 1]} : vector<1x2048xf32> to vector<1x128xf32>
    %438 = vector.extract_strided_slice %427 {offsets = [0, 896], sizes = [1, 128], strides = [1, 1]} : vector<1x2048xf32> to vector<1x128xf32>
    %439 = vector.extract_strided_slice %427 {offsets = [0, 1024], sizes = [1, 128], strides = [1, 1]} : vector<1x2048xf32> to vector<1x128xf32>
    %440 = vector.extract_strided_slice %427 {offsets = [0, 1152], sizes = [1, 128], strides = [1, 1]} : vector<1x2048xf32> to vector<1x128xf32>
    %441 = vector.extract_strided_slice %427 {offsets = [0, 1280], sizes = [1, 128], strides = [1, 1]} : vector<1x2048xf32> to vector<1x128xf32>
    %442 = vector.extract_strided_slice %427 {offsets = [0, 1408], sizes = [1, 128], strides = [1, 1]} : vector<1x2048xf32> to vector<1x128xf32>
    %443 = vector.extract_strided_slice %427 {offsets = [0, 1536], sizes = [1, 128], strides = [1, 1]} : vector<1x2048xf32> to vector<1x128xf32>
    %444 = vector.extract_strided_slice %427 {offsets = [0, 1664], sizes = [1, 128], strides = [1, 1]} : vector<1x2048xf32> to vector<1x128xf32>
    %445 = vector.extract_strided_slice %427 {offsets = [0, 1792], sizes = [1, 128], strides = [1, 1]} : vector<1x2048xf32> to vector<1x128xf32>
    %446 = vector.extract_strided_slice %427 {offsets = [0, 1920], sizes = [1, 128], strides = [1, 1]} : vector<1x2048xf32> to vector<1x128xf32>
    %447 = arith.addf %431, %432 : vector<1x128xf32>
    %448 = arith.addf %433, %434 : vector<1x128xf32>
    %449 = arith.addf %435, %436 : vector<1x128xf32>
    %450 = arith.addf %437, %438 : vector<1x128xf32>
    %451 = arith.addf %439, %440 : vector<1x128xf32>
    %452 = arith.addf %441, %442 : vector<1x128xf32>
    %453 = arith.addf %443, %444 : vector<1x128xf32>
    %454 = arith.addf %445, %446 : vector<1x128xf32>
    %455 = arith.addf %447, %448 : vector<1x128xf32>
    %456 = arith.addf %449, %450 : vector<1x128xf32>
    %457 = arith.addf %451, %452 : vector<1x128xf32>
    %458 = arith.addf %453, %454 : vector<1x128xf32>
    %459 = arith.addf %455, %456 : vector<1x128xf32>
    %460 = arith.addf %457, %458 : vector<1x128xf32>
    %461 = arith.addf %459, %460 : vector<1x128xf32>
    %c0_74 = arith.constant 0 : index
    %c768 = arith.constant 768 : index
    %462 = vector.load %arg18[%c0_74, %c768] : memref<1x1920xf32, #tpu.memory_space<vmem>>, vector<1x128xf32>
    %463 = arith.addf %462, %461 : vector<1x128xf32>
    %c0_75 = arith.constant 0 : index
    %c768_76 = arith.constant 768 : index
    %464 = vector.load %arg18[%c0_75, %c768_76] : memref<1x1920xf32, #tpu.memory_space<vmem>>, vector<1x128xf32>
    tpu.vector_store %arg18[%c0_75, %c768_76], %463 {strides = array<i32>} : memref<1x1920xf32, #tpu.memory_space<vmem>>, vector<1x128xf32>,
    %465 = vector.extract_strided_slice %430 {offsets = [0, 0], sizes = [1, 128], strides = [1, 1]} : vector<1x2048xf32> to vector<1x128xf32>
    %466 = vector.extract_strided_slice %430 {offsets = [0, 128], sizes = [1, 128], strides = [1, 1]} : vector<1x2048xf32> to vector<1x128xf32>
    %467 = vector.extract_strided_slice %430 {offsets = [0, 256], sizes = [1, 128], strides = [1, 1]} : vector<1x2048xf32> to vector<1x128xf32>
    %468 = vector.extract_strided_slice %430 {offsets = [0, 384], sizes = [1, 128], strides = [1, 1]} : vector<1x2048xf32> to vector<1x128xf32>
    %469 = vector.extract_strided_slice %430 {offsets = [0, 512], sizes = [1, 128], strides = [1, 1]} : vector<1x2048xf32> to vector<1x128xf32>
    %470 = vector.extract_strided_slice %430 {offsets = [0, 640], sizes = [1, 128], strides = [1, 1]} : vector<1x2048xf32> to vector<1x128xf32>
    %471 = vector.extract_strided_slice %430 {offsets = [0, 768], sizes = [1, 128], strides = [1, 1]} : vector<1x2048xf32> to vector<1x128xf32>
    %472 = vector.extract_strided_slice %430 {offsets = [0, 896], sizes = [1, 128], strides = [1, 1]} : vector<1x2048xf32> to vector<1x128xf32>
    %473 = vector.extract_strided_slice %430 {offsets = [0, 1024], sizes = [1, 128], strides = [1, 1]} : vector<1x2048xf32> to vector<1x128xf32>
    %474 = vector.extract_strided_slice %430 {offsets = [0, 1152], sizes = [1, 128], strides = [1, 1]} : vector<1x2048xf32> to vector<1x128xf32>
    %475 = vector.extract_strided_slice %430 {offsets = [0, 1280], sizes = [1, 128], strides = [1, 1]} : vector<1x2048xf32> to vector<1x128xf32>
    %476 = vector.extract_strided_slice %430 {offsets = [0, 1408], sizes = [1, 128], strides = [1, 1]} : vector<1x2048xf32> to vector<1x128xf32>
    %477 = vector.extract_strided_slice %430 {offsets = [0, 1536], sizes = [1, 128], strides = [1, 1]} : vector<1x2048xf32> to vector<1x128xf32>
    %478 = vector.extract_strided_slice %430 {offsets = [0, 1664], sizes = [1, 128], strides = [1, 1]} : vector<1x2048xf32> to vector<1x128xf32>
    %479 = vector.extract_strided_slice %430 {offsets = [0, 1792], sizes = [1, 128], strides = [1, 1]} : vector<1x2048xf32> to vector<1x128xf32>
    %480 = vector.extract_strided_slice %430 {offsets = [0, 1920], sizes = [1, 128], strides = [1, 1]} : vector<1x2048xf32> to vector<1x128xf32>
    %481 = arith.addf %465, %466 : vector<1x128xf32>
    %482 = arith.addf %467, %468 : vector<1x128xf32>
    %483 = arith.addf %469, %470 : vector<1x128xf32>
    %484 = arith.addf %471, %472 : vector<1x128xf32>
    %485 = arith.addf %473, %474 : vector<1x128xf32>
    %486 = arith.addf %475, %476 : vector<1x128xf32>
    %487 = arith.addf %477, %478 : vector<1x128xf32>
    %488 = arith.addf %479, %480 : vector<1x128xf32>
    %489 = arith.addf %481, %482 : vector<1x128xf32>
    %490 = arith.addf %483, %484 : vector<1x128xf32>
    %491 = arith.addf %485, %486 : vector<1x128xf32>
    %492 = arith.addf %487, %488 : vector<1x128xf32>
    %493 = arith.addf %489, %490 : vector<1x128xf32>
    %494 = arith.addf %491, %492 : vector<1x128xf32>
    %495 = arith.addf %493, %494 : vector<1x128xf32>
    %c0_77 = arith.constant 0 : index
    %c896 = arith.constant 896 : index
    %496 = vector.load %arg18[%c0_77, %c896] : memref<1x1920xf32, #tpu.memory_space<vmem>>, vector<1x128xf32>
    %497 = arith.addf %496, %495 : vector<1x128xf32>
    %c0_78 = arith.constant 0 : index
    %c896_79 = arith.constant 896 : index
    %498 = vector.load %arg18[%c0_78, %c896_79] : memref<1x1920xf32, #tpu.memory_space<vmem>>, vector<1x128xf32>
    tpu.vector_store %arg18[%c0_78, %c896_79], %497 {strides = array<i32>} : memref<1x1920xf32, #tpu.memory_space<vmem>>, vector<1x128xf32>,
    %c0_80 = arith.constant 0 : index
    %c0_81 = arith.constant 0 : index
    %499 = vector.load %arg10[%c0_80, %c0_81] : memref<1x2048xf32, #tpu.memory_space<vmem>>, vector<1x2048xf32>
    %cst_82 = arith.constant 1.000000e+00 : f32
    %500 = vector.broadcast %cst_82 : f32 to vector<1x2048xf32>
    %501 = arith.cmpf oeq, %499, %500 : vector<1x2048xf32>
    %502 = arith.extui %501 : vector<1x2048xi1> to vector<1x2048xi32>
    %503 = arith.sitofp %502 : vector<1x2048xi32> to vector<1x2048xf32>
    %cst_83 = arith.constant 1.000000e+00 : f32
    %504 = vector.broadcast %cst_83 : f32 to vector<1x2048xf32>
    %505 = arith.cmpf olt, %499, %504 : vector<1x2048xf32>
    %506 = arith.extui %505 : vector<1x2048xi1> to vector<1x2048xi32>
    %507 = arith.sitofp %506 : vector<1x2048xi32> to vector<1x2048xf32>
    %cst_84 = arith.constant 1.000000e+00 : f32
    %508 = vector.broadcast %cst_84 : f32 to vector<1x2048xf32>
    %509 = arith.subf %508, %499 : vector<1x2048xf32>
    %510 = arith.mulf %509, %509 : vector<1x2048xf32>
    %511 = arith.mulf %510, %510 : vector<1x2048xf32>
    %512 = arith.mulf %511, %507 : vector<1x2048xf32>
    %513 = vector.extract_strided_slice %503 {offsets = [0, 0], sizes = [1, 128], strides = [1, 1]} : vector<1x2048xf32> to vector<1x128xf32>
    %514 = vector.extract_strided_slice %503 {offsets = [0, 128], sizes = [1, 128], strides = [1, 1]} : vector<1x2048xf32> to vector<1x128xf32>
    %515 = vector.extract_strided_slice %503 {offsets = [0, 256], sizes = [1, 128], strides = [1, 1]} : vector<1x2048xf32> to vector<1x128xf32>
    %516 = vector.extract_strided_slice %503 {offsets = [0, 384], sizes = [1, 128], strides = [1, 1]} : vector<1x2048xf32> to vector<1x128xf32>
    %517 = vector.extract_strided_slice %503 {offsets = [0, 512], sizes = [1, 128], strides = [1, 1]} : vector<1x2048xf32> to vector<1x128xf32>
    %518 = vector.extract_strided_slice %503 {offsets = [0, 640], sizes = [1, 128], strides = [1, 1]} : vector<1x2048xf32> to vector<1x128xf32>
    %519 = vector.extract_strided_slice %503 {offsets = [0, 768], sizes = [1, 128], strides = [1, 1]} : vector<1x2048xf32> to vector<1x128xf32>
    %520 = vector.extract_strided_slice %503 {offsets = [0, 896], sizes = [1, 128], strides = [1, 1]} : vector<1x2048xf32> to vector<1x128xf32>
    %521 = vector.extract_strided_slice %503 {offsets = [0, 1024], sizes = [1, 128], strides = [1, 1]} : vector<1x2048xf32> to vector<1x128xf32>
    %522 = vector.extract_strided_slice %503 {offsets = [0, 1152], sizes = [1, 128], strides = [1, 1]} : vector<1x2048xf32> to vector<1x128xf32>
    %523 = vector.extract_strided_slice %503 {offsets = [0, 1280], sizes = [1, 128], strides = [1, 1]} : vector<1x2048xf32> to vector<1x128xf32>
    %524 = vector.extract_strided_slice %503 {offsets = [0, 1408], sizes = [1, 128], strides = [1, 1]} : vector<1x2048xf32> to vector<1x128xf32>
    %525 = vector.extract_strided_slice %503 {offsets = [0, 1536], sizes = [1, 128], strides = [1, 1]} : vector<1x2048xf32> to vector<1x128xf32>
    %526 = vector.extract_strided_slice %503 {offsets = [0, 1664], sizes = [1, 128], strides = [1, 1]} : vector<1x2048xf32> to vector<1x128xf32>
    %527 = vector.extract_strided_slice %503 {offsets = [0, 1792], sizes = [1, 128], strides = [1, 1]} : vector<1x2048xf32> to vector<1x128xf32>
    %528 = vector.extract_strided_slice %503 {offsets = [0, 1920], sizes = [1, 128], strides = [1, 1]} : vector<1x2048xf32> to vector<1x128xf32>
    %529 = arith.addf %513, %514 : vector<1x128xf32>
    %530 = arith.addf %515, %516 : vector<1x128xf32>
    %531 = arith.addf %517, %518 : vector<1x128xf32>
    %532 = arith.addf %519, %520 : vector<1x128xf32>
    %533 = arith.addf %521, %522 : vector<1x128xf32>
    %534 = arith.addf %523, %524 : vector<1x128xf32>
    %535 = arith.addf %525, %526 : vector<1x128xf32>
    %536 = arith.addf %527, %528 : vector<1x128xf32>
    %537 = arith.addf %529, %530 : vector<1x128xf32>
    %538 = arith.addf %531, %532 : vector<1x128xf32>
    %539 = arith.addf %533, %534 : vector<1x128xf32>
    %540 = arith.addf %535, %536 : vector<1x128xf32>
    %541 = arith.addf %537, %538 : vector<1x128xf32>
    %542 = arith.addf %539, %540 : vector<1x128xf32>
    %543 = arith.addf %541, %542 : vector<1x128xf32>
    %c0_85 = arith.constant 0 : index
    %c1792 = arith.constant 1792 : index
    %544 = vector.load %arg18[%c0_85, %c1792] : memref<1x1920xf32, #tpu.memory_space<vmem>>, vector<1x128xf32>
    %545 = arith.addf %544, %543 : vector<1x128xf32>
    %c0_86 = arith.constant 0 : index
    %c1792_87 = arith.constant 1792 : index
    %546 = vector.load %arg18[%c0_86, %c1792_87] : memref<1x1920xf32, #tpu.memory_space<vmem>>, vector<1x128xf32>
    tpu.vector_store %arg18[%c0_86, %c1792_87], %545 {strides = array<i32>} : memref<1x1920xf32, #tpu.memory_space<vmem>>, vector<1x128xf32>,
    %c0_88 = arith.constant 0 : index
    %c0_89 = arith.constant 0 : index
    %547 = vector.load %arg6[%c0_88, %c0_89] : memref<1x2048xf32, #tpu.memory_space<vmem>>, vector<1x2048xf32>
    %548 = math.absf %547 : vector<1x2048xf32>
    %cst_90 = arith.constant 0.000000e+00 : f32
    %549 = vector.broadcast %cst_90 : f32 to vector<1x2048xf32>
    %550 = arith.subf %549, %548 : vector<1x2048xf32>
    %551 = math.exp %550 : vector<1x2048xf32>
    %cst_91 = arith.constant 1.000000e+00 : f32
    %552 = vector.broadcast %cst_91 : f32 to vector<1x2048xf32>
    %553 = arith.addf %552, %551 : vector<1x2048xf32>
    %554 = math.log %553 : vector<1x2048xf32>
    %555 = tpu.reciprocal %553 {approx = true} : vector<1x2048xf32> -> vector<1x2048xf32>
    %556 = arith.mulf %551, %555 : vector<1x2048xf32>
    %cst_92 = arith.constant 0.000000e+00 : f32
    %557 = vector.broadcast %cst_92 : f32 to vector<1x2048xf32>
    %558 = arith.cmpf oge, %547, %557 : vector<1x2048xf32>
    %559 = arith.select %558, %555, %556 : vector<1x2048xi1>, vector<1x2048xf32>
    %560 = arith.select %558, %556, %555 : vector<1x2048xi1>, vector<1x2048xf32>
    %cst_93 = arith.constant 0.000000e+00 : f32
    %561 = vector.broadcast %cst_93 : f32 to vector<1x2048xf32>
    %562 = arith.minimumf %547, %561 : vector<1x2048xf32>
    %563 = arith.subf %562, %554 : vector<1x2048xf32>
    %cst_94 = arith.constant -9.21034049 : f32
    %564 = vector.broadcast %cst_94 : f32 to vector<1x2048xf32>
    %565 = arith.maximumf %563, %564 : vector<1x2048xf32>
    %cst_95 = arith.constant 0.000000e+00 : f32
    %566 = vector.broadcast %cst_95 : f32 to vector<1x2048xf32>
    %567 = arith.maximumf %547, %566 : vector<1x2048xf32>
    %cst_96 = arith.constant 0.000000e+00 : f32
    %568 = vector.broadcast %cst_96 : f32 to vector<1x2048xf32>
    %569 = arith.subf %568, %567 : vector<1x2048xf32>
    %570 = arith.subf %569, %554 : vector<1x2048xf32>
    %cst_97 = arith.constant -9.21034049 : f32
    %571 = vector.broadcast %cst_97 : f32 to vector<1x2048xf32>
    %572 = arith.maximumf %570, %571 : vector<1x2048xf32>
    %573 = arith.mulf %560, %560 : vector<1x2048xf32>
    %574 = arith.mulf %565, %573 : vector<1x2048xf32>
    %575 = arith.mulf %574, %503 : vector<1x2048xf32>
    %576 = arith.mulf %559, %559 : vector<1x2048xf32>
    %577 = arith.mulf %572, %576 : vector<1x2048xf32>
    %578 = arith.mulf %577, %512 : vector<1x2048xf32>
    %579 = vector.extract_strided_slice %575 {offsets = [0, 0], sizes = [1, 128], strides = [1, 1]} : vector<1x2048xf32> to vector<1x128xf32>
    %580 = vector.extract_strided_slice %575 {offsets = [0, 128], sizes = [1, 128], strides = [1, 1]} : vector<1x2048xf32> to vector<1x128xf32>
    %581 = vector.extract_strided_slice %575 {offsets = [0, 256], sizes = [1, 128], strides = [1, 1]} : vector<1x2048xf32> to vector<1x128xf32>
    %582 = vector.extract_strided_slice %575 {offsets = [0, 384], sizes = [1, 128], strides = [1, 1]} : vector<1x2048xf32> to vector<1x128xf32>
    %583 = vector.extract_strided_slice %575 {offsets = [0, 512], sizes = [1, 128], strides = [1, 1]} : vector<1x2048xf32> to vector<1x128xf32>
    %584 = vector.extract_strided_slice %575 {offsets = [0, 640], sizes = [1, 128], strides = [1, 1]} : vector<1x2048xf32> to vector<1x128xf32>
    %585 = vector.extract_strided_slice %575 {offsets = [0, 768], sizes = [1, 128], strides = [1, 1]} : vector<1x2048xf32> to vector<1x128xf32>
    %586 = vector.extract_strided_slice %575 {offsets = [0, 896], sizes = [1, 128], strides = [1, 1]} : vector<1x2048xf32> to vector<1x128xf32>
    %587 = vector.extract_strided_slice %575 {offsets = [0, 1024], sizes = [1, 128], strides = [1, 1]} : vector<1x2048xf32> to vector<1x128xf32>
    %588 = vector.extract_strided_slice %575 {offsets = [0, 1152], sizes = [1, 128], strides = [1, 1]} : vector<1x2048xf32> to vector<1x128xf32>
    %589 = vector.extract_strided_slice %575 {offsets = [0, 1280], sizes = [1, 128], strides = [1, 1]} : vector<1x2048xf32> to vector<1x128xf32>
    %590 = vector.extract_strided_slice %575 {offsets = [0, 1408], sizes = [1, 128], strides = [1, 1]} : vector<1x2048xf32> to vector<1x128xf32>
    %591 = vector.extract_strided_slice %575 {offsets = [0, 1536], sizes = [1, 128], strides = [1, 1]} : vector<1x2048xf32> to vector<1x128xf32>
    %592 = vector.extract_strided_slice %575 {offsets = [0, 1664], sizes = [1, 128], strides = [1, 1]} : vector<1x2048xf32> to vector<1x128xf32>
    %593 = vector.extract_strided_slice %575 {offsets = [0, 1792], sizes = [1, 128], strides = [1, 1]} : vector<1x2048xf32> to vector<1x128xf32>
    %594 = vector.extract_strided_slice %575 {offsets = [0, 1920], sizes = [1, 128], strides = [1, 1]} : vector<1x2048xf32> to vector<1x128xf32>
    %595 = arith.addf %579, %580 : vector<1x128xf32>
    %596 = arith.addf %581, %582 : vector<1x128xf32>
    %597 = arith.addf %583, %584 : vector<1x128xf32>
    %598 = arith.addf %585, %586 : vector<1x128xf32>
    %599 = arith.addf %587, %588 : vector<1x128xf32>
    %600 = arith.addf %589, %590 : vector<1x128xf32>
    %601 = arith.addf %591, %592 : vector<1x128xf32>
    %602 = arith.addf %593, %594 : vector<1x128xf32>
    %603 = arith.addf %595, %596 : vector<1x128xf32>
    %604 = arith.addf %597, %598 : vector<1x128xf32>
    %605 = arith.addf %599, %600 : vector<1x128xf32>
    %606 = arith.addf %601, %602 : vector<1x128xf32>
    %607 = arith.addf %603, %604 : vector<1x128xf32>
    %608 = arith.addf %605, %606 : vector<1x128xf32>
    %609 = arith.addf %607, %608 : vector<1x128xf32>
    %c0_98 = arith.constant 0 : index
    %c1024 = arith.constant 1024 : index
    %610 = vector.load %arg18[%c0_98, %c1024] : memref<1x1920xf32, #tpu.memory_space<vmem>>, vector<1x128xf32>
    %611 = arith.addf %610, %609 : vector<1x128xf32>
    %c0_99 = arith.constant 0 : index
    %c1024_100 = arith.constant 1024 : index
    %612 = vector.load %arg18[%c0_99, %c1024_100] : memref<1x1920xf32, #tpu.memory_space<vmem>>, vector<1x128xf32>
    tpu.vector_store %arg18[%c0_99, %c1024_100], %611 {strides = array<i32>} : memref<1x1920xf32, #tpu.memory_space<vmem>>, vector<1x128xf32>,
    %613 = vector.extract_strided_slice %578 {offsets = [0, 0], sizes = [1, 128], strides = [1, 1]} : vector<1x2048xf32> to vector<1x128xf32>
    %614 = vector.extract_strided_slice %578 {offsets = [0, 128], sizes = [1, 128], strides = [1, 1]} : vector<1x2048xf32> to vector<1x128xf32>
    %615 = vector.extract_strided_slice %578 {offsets = [0, 256], sizes = [1, 128], strides = [1, 1]} : vector<1x2048xf32> to vector<1x128xf32>
    %616 = vector.extract_strided_slice %578 {offsets = [0, 384], sizes = [1, 128], strides = [1, 1]} : vector<1x2048xf32> to vector<1x128xf32>
    %617 = vector.extract_strided_slice %578 {offsets = [0, 512], sizes = [1, 128], strides = [1, 1]} : vector<1x2048xf32> to vector<1x128xf32>
    %618 = vector.extract_strided_slice %578 {offsets = [0, 640], sizes = [1, 128], strides = [1, 1]} : vector<1x2048xf32> to vector<1x128xf32>
    %619 = vector.extract_strided_slice %578 {offsets = [0, 768], sizes = [1, 128], strides = [1, 1]} : vector<1x2048xf32> to vector<1x128xf32>
    %620 = vector.extract_strided_slice %578 {offsets = [0, 896], sizes = [1, 128], strides = [1, 1]} : vector<1x2048xf32> to vector<1x128xf32>
    %621 = vector.extract_strided_slice %578 {offsets = [0, 1024], sizes = [1, 128], strides = [1, 1]} : vector<1x2048xf32> to vector<1x128xf32>
    %622 = vector.extract_strided_slice %578 {offsets = [0, 1152], sizes = [1, 128], strides = [1, 1]} : vector<1x2048xf32> to vector<1x128xf32>
    %623 = vector.extract_strided_slice %578 {offsets = [0, 1280], sizes = [1, 128], strides = [1, 1]} : vector<1x2048xf32> to vector<1x128xf32>
    %624 = vector.extract_strided_slice %578 {offsets = [0, 1408], sizes = [1, 128], strides = [1, 1]} : vector<1x2048xf32> to vector<1x128xf32>
    %625 = vector.extract_strided_slice %578 {offsets = [0, 1536], sizes = [1, 128], strides = [1, 1]} : vector<1x2048xf32> to vector<1x128xf32>
    %626 = vector.extract_strided_slice %578 {offsets = [0, 1664], sizes = [1, 128], strides = [1, 1]} : vector<1x2048xf32> to vector<1x128xf32>
    %627 = vector.extract_strided_slice %578 {offsets = [0, 1792], sizes = [1, 128], strides = [1, 1]} : vector<1x2048xf32> to vector<1x128xf32>
    %628 = vector.extract_strided_slice %578 {offsets = [0, 1920], sizes = [1, 128], strides = [1, 1]} : vector<1x2048xf32> to vector<1x128xf32>
    %629 = arith.addf %613, %614 : vector<1x128xf32>
    %630 = arith.addf %615, %616 : vector<1x128xf32>
    %631 = arith.addf %617, %618 : vector<1x128xf32>
    %632 = arith.addf %619, %620 : vector<1x128xf32>
    %633 = arith.addf %621, %622 : vector<1x128xf32>
    %634 = arith.addf %623, %624 : vector<1x128xf32>
    %635 = arith.addf %625, %626 : vector<1x128xf32>
    %636 = arith.addf %627, %628 : vector<1x128xf32>
    %637 = arith.addf %629, %630 : vector<1x128xf32>
    %638 = arith.addf %631, %632 : vector<1x128xf32>
    %639 = arith.addf %633, %634 : vector<1x128xf32>
    %640 = arith.addf %635, %636 : vector<1x128xf32>
    %641 = arith.addf %637, %638 : vector<1x128xf32>
    %642 = arith.addf %639, %640 : vector<1x128xf32>
    %643 = arith.addf %641, %642 : vector<1x128xf32>
    %c0_101 = arith.constant 0 : index
    %c1152 = arith.constant 1152 : index
    %644 = vector.load %arg18[%c0_101, %c1152] : memref<1x1920xf32, #tpu.memory_space<vmem>>, vector<1x128xf32>
    %645 = arith.addf %644, %643 : vector<1x128xf32>
    %c0_102 = arith.constant 0 : index
    %c1152_103 = arith.constant 1152 : index
    %646 = vector.load %arg18[%c0_102, %c1152_103] : memref<1x1920xf32, #tpu.memory_space<vmem>>, vector<1x128xf32>
    tpu.vector_store %arg18[%c0_102, %c1152_103], %645 {strides = array<i32>} : memref<1x1920xf32, #tpu.memory_space<vmem>>, vector<1x128xf32>,
    %c0_104 = arith.constant 0 : index
    %c0_105 = arith.constant 0 : index
    %647 = vector.load %arg7[%c0_104, %c0_105] : memref<1x2048xf32, #tpu.memory_space<vmem>>, vector<1x2048xf32>
    %648 = math.absf %647 : vector<1x2048xf32>
    %cst_106 = arith.constant 0.000000e+00 : f32
    %649 = vector.broadcast %cst_106 : f32 to vector<1x2048xf32>
    %650 = arith.subf %649, %648 : vector<1x2048xf32>
    %651 = math.exp %650 : vector<1x2048xf32>
    %cst_107 = arith.constant 1.000000e+00 : f32
    %652 = vector.broadcast %cst_107 : f32 to vector<1x2048xf32>
    %653 = arith.addf %652, %651 : vector<1x2048xf32>
    %654 = math.log %653 : vector<1x2048xf32>
    %655 = tpu.reciprocal %653 {approx = true} : vector<1x2048xf32> -> vector<1x2048xf32>
    %656 = arith.mulf %651, %655 : vector<1x2048xf32>
    %cst_108 = arith.constant 0.000000e+00 : f32
    %657 = vector.broadcast %cst_108 : f32 to vector<1x2048xf32>
    %658 = arith.cmpf oge, %647, %657 : vector<1x2048xf32>
    %659 = arith.select %658, %655, %656 : vector<1x2048xi1>, vector<1x2048xf32>
    %660 = arith.select %658, %656, %655 : vector<1x2048xi1>, vector<1x2048xf32>
    %cst_109 = arith.constant 0.000000e+00 : f32
    %661 = vector.broadcast %cst_109 : f32 to vector<1x2048xf32>
    %662 = arith.minimumf %647, %661 : vector<1x2048xf32>
    %663 = arith.subf %662, %654 : vector<1x2048xf32>
    %cst_110 = arith.constant -9.21034049 : f32
    %664 = vector.broadcast %cst_110 : f32 to vector<1x2048xf32>
    %665 = arith.maximumf %663, %664 : vector<1x2048xf32>
    %cst_111 = arith.constant 0.000000e+00 : f32
    %666 = vector.broadcast %cst_111 : f32 to vector<1x2048xf32>
    %667 = arith.maximumf %647, %666 : vector<1x2048xf32>
    %cst_112 = arith.constant 0.000000e+00 : f32
    %668 = vector.broadcast %cst_112 : f32 to vector<1x2048xf32>
    %669 = arith.subf %668, %667 : vector<1x2048xf32>
    %670 = arith.subf %669, %654 : vector<1x2048xf32>
    %cst_113 = arith.constant -9.21034049 : f32
    %671 = vector.broadcast %cst_113 : f32 to vector<1x2048xf32>
    %672 = arith.maximumf %670, %671 : vector<1x2048xf32>
    %673 = arith.mulf %660, %660 : vector<1x2048xf32>
    %674 = arith.mulf %665, %673 : vector<1x2048xf32>
    %675 = arith.mulf %674, %503 : vector<1x2048xf32>
    %676 = arith.mulf %659, %659 : vector<1x2048xf32>
    %677 = arith.mulf %672, %676 : vector<1x2048xf32>
    %678 = arith.mulf %677, %512 : vector<1x2048xf32>
    %679 = vector.extract_strided_slice %675 {offsets = [0, 0], sizes = [1, 128], strides = [1, 1]} : vector<1x2048xf32> to vector<1x128xf32>
    %680 = vector.extract_strided_slice %675 {offsets = [0, 128], sizes = [1, 128], strides = [1, 1]} : vector<1x2048xf32> to vector<1x128xf32>
    %681 = vector.extract_strided_slice %675 {offsets = [0, 256], sizes = [1, 128], strides = [1, 1]} : vector<1x2048xf32> to vector<1x128xf32>
    %682 = vector.extract_strided_slice %675 {offsets = [0, 384], sizes = [1, 128], strides = [1, 1]} : vector<1x2048xf32> to vector<1x128xf32>
    %683 = vector.extract_strided_slice %675 {offsets = [0, 512], sizes = [1, 128], strides = [1, 1]} : vector<1x2048xf32> to vector<1x128xf32>
    %684 = vector.extract_strided_slice %675 {offsets = [0, 640], sizes = [1, 128], strides = [1, 1]} : vector<1x2048xf32> to vector<1x128xf32>
    %685 = vector.extract_strided_slice %675 {offsets = [0, 768], sizes = [1, 128], strides = [1, 1]} : vector<1x2048xf32> to vector<1x128xf32>
    %686 = vector.extract_strided_slice %675 {offsets = [0, 896], sizes = [1, 128], strides = [1, 1]} : vector<1x2048xf32> to vector<1x128xf32>
    %687 = vector.extract_strided_slice %675 {offsets = [0, 1024], sizes = [1, 128], strides = [1, 1]} : vector<1x2048xf32> to vector<1x128xf32>
    %688 = vector.extract_strided_slice %675 {offsets = [0, 1152], sizes = [1, 128], strides = [1, 1]} : vector<1x2048xf32> to vector<1x128xf32>
    %689 = vector.extract_strided_slice %675 {offsets = [0, 1280], sizes = [1, 128], strides = [1, 1]} : vector<1x2048xf32> to vector<1x128xf32>
    %690 = vector.extract_strided_slice %675 {offsets = [0, 1408], sizes = [1, 128], strides = [1, 1]} : vector<1x2048xf32> to vector<1x128xf32>
    %691 = vector.extract_strided_slice %675 {offsets = [0, 1536], sizes = [1, 128], strides = [1, 1]} : vector<1x2048xf32> to vector<1x128xf32>
    %692 = vector.extract_strided_slice %675 {offsets = [0, 1664], sizes = [1, 128], strides = [1, 1]} : vector<1x2048xf32> to vector<1x128xf32>
    %693 = vector.extract_strided_slice %675 {offsets = [0, 1792], sizes = [1, 128], strides = [1, 1]} : vector<1x2048xf32> to vector<1x128xf32>
    %694 = vector.extract_strided_slice %675 {offsets = [0, 1920], sizes = [1, 128], strides = [1, 1]} : vector<1x2048xf32> to vector<1x128xf32>
    %695 = arith.addf %679, %680 : vector<1x128xf32>
    %696 = arith.addf %681, %682 : vector<1x128xf32>
    %697 = arith.addf %683, %684 : vector<1x128xf32>
    %698 = arith.addf %685, %686 : vector<1x128xf32>
    %699 = arith.addf %687, %688 : vector<1x128xf32>
    %700 = arith.addf %689, %690 : vector<1x128xf32>
    %701 = arith.addf %691, %692 : vector<1x128xf32>
    %702 = arith.addf %693, %694 : vector<1x128xf32>
    %703 = arith.addf %695, %696 : vector<1x128xf32>
    %704 = arith.addf %697, %698 : vector<1x128xf32>
    %705 = arith.addf %699, %700 : vector<1x128xf32>
    %706 = arith.addf %701, %702 : vector<1x128xf32>
    %707 = arith.addf %703, %704 : vector<1x128xf32>
    %708 = arith.addf %705, %706 : vector<1x128xf32>
    %709 = arith.addf %707, %708 : vector<1x128xf32>
    %c0_114 = arith.constant 0 : index
    %c1280 = arith.constant 1280 : index
    %710 = vector.load %arg18[%c0_114, %c1280] : memref<1x1920xf32, #tpu.memory_space<vmem>>, vector<1x128xf32>
    %711 = arith.addf %710, %709 : vector<1x128xf32>
    %c0_115 = arith.constant 0 : index
    %c1280_116 = arith.constant 1280 : index
    %712 = vector.load %arg18[%c0_115, %c1280_116] : memref<1x1920xf32, #tpu.memory_space<vmem>>, vector<1x128xf32>
    tpu.vector_store %arg18[%c0_115, %c1280_116], %711 {strides = array<i32>} : memref<1x1920xf32, #tpu.memory_space<vmem>>, vector<1x128xf32>,
    %713 = vector.extract_strided_slice %678 {offsets = [0, 0], sizes = [1, 128], strides = [1, 1]} : vector<1x2048xf32> to vector<1x128xf32>
    %714 = vector.extract_strided_slice %678 {offsets = [0, 128], sizes = [1, 128], strides = [1, 1]} : vector<1x2048xf32> to vector<1x128xf32>
    %715 = vector.extract_strided_slice %678 {offsets = [0, 256], sizes = [1, 128], strides = [1, 1]} : vector<1x2048xf32> to vector<1x128xf32>
    %716 = vector.extract_strided_slice %678 {offsets = [0, 384], sizes = [1, 128], strides = [1, 1]} : vector<1x2048xf32> to vector<1x128xf32>
    %717 = vector.extract_strided_slice %678 {offsets = [0, 512], sizes = [1, 128], strides = [1, 1]} : vector<1x2048xf32> to vector<1x128xf32>
    %718 = vector.extract_strided_slice %678 {offsets = [0, 640], sizes = [1, 128], strides = [1, 1]} : vector<1x2048xf32> to vector<1x128xf32>
    %719 = vector.extract_strided_slice %678 {offsets = [0, 768], sizes = [1, 128], strides = [1, 1]} : vector<1x2048xf32> to vector<1x128xf32>
    %720 = vector.extract_strided_slice %678 {offsets = [0, 896], sizes = [1, 128], strides = [1, 1]} : vector<1x2048xf32> to vector<1x128xf32>
    %721 = vector.extract_strided_slice %678 {offsets = [0, 1024], sizes = [1, 128], strides = [1, 1]} : vector<1x2048xf32> to vector<1x128xf32>
    %722 = vector.extract_strided_slice %678 {offsets = [0, 1152], sizes = [1, 128], strides = [1, 1]} : vector<1x2048xf32> to vector<1x128xf32>
    %723 = vector.extract_strided_slice %678 {offsets = [0, 1280], sizes = [1, 128], strides = [1, 1]} : vector<1x2048xf32> to vector<1x128xf32>
    %724 = vector.extract_strided_slice %678 {offsets = [0, 1408], sizes = [1, 128], strides = [1, 1]} : vector<1x2048xf32> to vector<1x128xf32>
    %725 = vector.extract_strided_slice %678 {offsets = [0, 1536], sizes = [1, 128], strides = [1, 1]} : vector<1x2048xf32> to vector<1x128xf32>
    %726 = vector.extract_strided_slice %678 {offsets = [0, 1664], sizes = [1, 128], strides = [1, 1]} : vector<1x2048xf32> to vector<1x128xf32>
    %727 = vector.extract_strided_slice %678 {offsets = [0, 1792], sizes = [1, 128], strides = [1, 1]} : vector<1x2048xf32> to vector<1x128xf32>
    %728 = vector.extract_strided_slice %678 {offsets = [0, 1920], sizes = [1, 128], strides = [1, 1]} : vector<1x2048xf32> to vector<1x128xf32>
    %729 = arith.addf %713, %714 : vector<1x128xf32>
    %730 = arith.addf %715, %716 : vector<1x128xf32>
    %731 = arith.addf %717, %718 : vector<1x128xf32>
    %732 = arith.addf %719, %720 : vector<1x128xf32>
    %733 = arith.addf %721, %722 : vector<1x128xf32>
    %734 = arith.addf %723, %724 : vector<1x128xf32>
    %735 = arith.addf %725, %726 : vector<1x128xf32>
    %736 = arith.addf %727, %728 : vector<1x128xf32>
    %737 = arith.addf %729, %730 : vector<1x128xf32>
    %738 = arith.addf %731, %732 : vector<1x128xf32>
    %739 = arith.addf %733, %734 : vector<1x128xf32>
    %740 = arith.addf %735, %736 : vector<1x128xf32>
    %741 = arith.addf %737, %738 : vector<1x128xf32>
    %742 = arith.addf %739, %740 : vector<1x128xf32>
    %743 = arith.addf %741, %742 : vector<1x128xf32>
    %c0_117 = arith.constant 0 : index
    %c1408 = arith.constant 1408 : index
    %744 = vector.load %arg18[%c0_117, %c1408] : memref<1x1920xf32, #tpu.memory_space<vmem>>, vector<1x128xf32>
    %745 = arith.addf %744, %743 : vector<1x128xf32>
    %c0_118 = arith.constant 0 : index
    %c1408_119 = arith.constant 1408 : index
    %746 = vector.load %arg18[%c0_118, %c1408_119] : memref<1x1920xf32, #tpu.memory_space<vmem>>, vector<1x128xf32>
    tpu.vector_store %arg18[%c0_118, %c1408_119], %745 {strides = array<i32>} : memref<1x1920xf32, #tpu.memory_space<vmem>>, vector<1x128xf32>,
    %c0_i32_120 = arith.constant 0 : i32
    %747 = arith.cmpi eq, %arg1, %c0_i32_120 : i32
    %748 = arith.extui %747 : i1 to i32
    %c0_i32_121 = arith.constant 0 : i32
    %749 = arith.cmpi ne, %748, %c0_i32_121 : i32
    scf.if %749 {
      %c0_122 = arith.constant 0 : index
      %c0_123 = arith.constant 0 : index
      %750 = vector.load %arg18[%c0_122, %c0_123] : memref<1x1920xf32, #tpu.memory_space<vmem>>, vector<1x128xf32>
      %cst_124 = arith.constant dense<0.000000e+00> : vector<128xf32>
      %751 = vector.multi_reduction <add>, %750, %cst_124 [0] : vector<1x128xf32> to vector<128xf32>
      %752 = vector.shape_cast %751 : vector<128xf32> to vector<1x128xf32>
      %c0_125 = arith.constant 0 : index
      %c0_126 = arith.constant 0 : index
      %c0_127 = arith.constant 0 : index
      %753 = vector.load %arg17[%c0_125, %c0_126, %c0_127] : memref<1x18x128xf32, #tpu.memory_space<vmem>>, vector<1x1x128xf32>
      %754 = vector.shape_cast %753 : vector<1x1x128xf32> to vector<1x128xf32>
      %755 = vector.shape_cast %752 : vector<1x128xf32> to vector<1x1x128xf32>
      tpu.vector_store %arg17[%c0_125, %c0_126, %c0_127], %755 {strides = array<i32>} : memref<1x18x128xf32, #tpu.memory_space<vmem>>, vector<1x1x128xf32>,
      %c0_128 = arith.constant 0 : index
      %c128_129 = arith.constant 128 : index
      %756 = vector.load %arg18[%c0_128, %c128_129] : memref<1x1920xf32, #tpu.memory_space<vmem>>, vector<1x128xf32>
      %cst_130 = arith.constant dense<0.000000e+00> : vector<128xf32>
      %757 = vector.multi_reduction <add>, %756, %cst_130 [0] : vector<1x128xf32> to vector<128xf32>
      %758 = vector.shape_cast %757 : vector<128xf32> to vector<1x128xf32>
      %c0_131 = arith.constant 0 : index
      %c1 = arith.constant 1 : index
      %c0_132 = arith.constant 0 : index
      %759 = vector.load %arg17[%c0_131, %c1, %c0_132] : memref<1x18x128xf32, #tpu.memory_space<vmem>>, vector<1x1x128xf32>
      %760 = vector.shape_cast %759 : vector<1x1x128xf32> to vector<1x128xf32>
      %761 = vector.shape_cast %758 : vector<1x128xf32> to vector<1x1x128xf32>
      tpu.vector_store %arg17[%c0_131, %c1, %c0_132], %761 {strides = array<i32>} : memref<1x18x128xf32, #tpu.memory_space<vmem>>, vector<1x1x128xf32>,
      %c0_133 = arith.constant 0 : index
      %c256_134 = arith.constant 256 : index
      %762 = vector.load %arg18[%c0_133, %c256_134] : memref<1x1920xf32, #tpu.memory_space<vmem>>, vector<1x128xf32>
      %cst_135 = arith.constant dense<0.000000e+00> : vector<128xf32>
      %763 = vector.multi_reduction <add>, %762, %cst_135 [0] : vector<1x128xf32> to vector<128xf32>
      %764 = vector.shape_cast %763 : vector<128xf32> to vector<1x128xf32>
      %c0_136 = arith.constant 0 : index
      %c2 = arith.constant 2 : index
      %c0_137 = arith.constant 0 : index
      %765 = vector.load %arg17[%c0_136, %c2, %c0_137] : memref<1x18x128xf32, #tpu.memory_space<vmem>>, vector<1x1x128xf32>
      %766 = vector.shape_cast %765 : vector<1x1x128xf32> to vector<1x128xf32>
      %767 = vector.shape_cast %764 : vector<1x128xf32> to vector<1x1x128xf32>
      tpu.vector_store %arg17[%c0_136, %c2, %c0_137], %767 {strides = array<i32>} : memref<1x18x128xf32, #tpu.memory_space<vmem>>, vector<1x1x128xf32>,
      %c0_138 = arith.constant 0 : index
      %c384_139 = arith.constant 384 : index
      %768 = vector.load %arg18[%c0_138, %c384_139] : memref<1x1920xf32, #tpu.memory_space<vmem>>, vector<1x128xf32>
      %cst_140 = arith.constant dense<0.000000e+00> : vector<128xf32>
      %769 = vector.multi_reduction <add>, %768, %cst_140 [0] : vector<1x128xf32> to vector<128xf32>
      %770 = vector.shape_cast %769 : vector<128xf32> to vector<1x128xf32>
      %c0_141 = arith.constant 0 : index
      %c3 = arith.constant 3 : index
      %c0_142 = arith.constant 0 : index
      %771 = vector.load %arg17[%c0_141, %c3, %c0_142] : memref<1x18x128xf32, #tpu.memory_space<vmem>>, vector<1x1x128xf32>
      %772 = vector.shape_cast %771 : vector<1x1x128xf32> to vector<1x128xf32>
      %773 = vector.shape_cast %770 : vector<1x128xf32> to vector<1x1x128xf32>
      tpu.vector_store %arg17[%c0_141, %c3, %c0_142], %773 {strides = array<i32>} : memref<1x18x128xf32, #tpu.memory_space<vmem>>, vector<1x1x128xf32>,
      %c0_143 = arith.constant 0 : index
      %c512_144 = arith.constant 512 : index
      %774 = vector.load %arg18[%c0_143, %c512_144] : memref<1x1920xf32, #tpu.memory_space<vmem>>, vector<1x128xf32>
      %cst_145 = arith.constant dense<0.000000e+00> : vector<128xf32>
      %775 = vector.multi_reduction <add>, %774, %cst_145 [0] : vector<1x128xf32> to vector<128xf32>
      %776 = vector.shape_cast %775 : vector<128xf32> to vector<1x128xf32>
      %c0_146 = arith.constant 0 : index
      %c4 = arith.constant 4 : index
      %c0_147 = arith.constant 0 : index
      %777 = vector.load %arg17[%c0_146, %c4, %c0_147] : memref<1x18x128xf32, #tpu.memory_space<vmem>>, vector<1x1x128xf32>
      %778 = vector.shape_cast %777 : vector<1x1x128xf32> to vector<1x128xf32>
      %779 = vector.shape_cast %776 : vector<1x128xf32> to vector<1x1x128xf32>
      tpu.vector_store %arg17[%c0_146, %c4, %c0_147], %779 {strides = array<i32>} : memref<1x18x128xf32, #tpu.memory_space<vmem>>, vector<1x1x128xf32>,
      %c0_148 = arith.constant 0 : index
      %c640_149 = arith.constant 640 : index
      %780 = vector.load %arg18[%c0_148, %c640_149] : memref<1x1920xf32, #tpu.memory_space<vmem>>, vector<1x128xf32>
      %cst_150 = arith.constant dense<0.000000e+00> : vector<128xf32>
      %781 = vector.multi_reduction <add>, %780, %cst_150 [0] : vector<1x128xf32> to vector<128xf32>
      %782 = vector.shape_cast %781 : vector<128xf32> to vector<1x128xf32>
      %c0_151 = arith.constant 0 : index
      %c5 = arith.constant 5 : index
      %c0_152 = arith.constant 0 : index
      %783 = vector.load %arg17[%c0_151, %c5, %c0_152] : memref<1x18x128xf32, #tpu.memory_space<vmem>>, vector<1x1x128xf32>
      %784 = vector.shape_cast %783 : vector<1x1x128xf32> to vector<1x128xf32>
      %785 = vector.shape_cast %782 : vector<1x128xf32> to vector<1x1x128xf32>
      tpu.vector_store %arg17[%c0_151, %c5, %c0_152], %785 {strides = array<i32>} : memref<1x18x128xf32, #tpu.memory_space<vmem>>, vector<1x1x128xf32>,
      %c0_153 = arith.constant 0 : index
      %c768_154 = arith.constant 768 : index
      %786 = vector.load %arg18[%c0_153, %c768_154] : memref<1x1920xf32, #tpu.memory_space<vmem>>, vector<1x128xf32>
      %cst_155 = arith.constant dense<0.000000e+00> : vector<128xf32>
      %787 = vector.multi_reduction <add>, %786, %cst_155 [0] : vector<1x128xf32> to vector<128xf32>
      %788 = vector.shape_cast %787 : vector<128xf32> to vector<1x128xf32>
      %c0_156 = arith.constant 0 : index
      %c6 = arith.constant 6 : index
      %c0_157 = arith.constant 0 : index
      %789 = vector.load %arg17[%c0_156, %c6, %c0_157] : memref<1x18x128xf32, #tpu.memory_space<vmem>>, vector<1x1x128xf32>
      %790 = vector.shape_cast %789 : vector<1x1x128xf32> to vector<1x128xf32>
      %791 = vector.shape_cast %788 : vector<1x128xf32> to vector<1x1x128xf32>
      tpu.vector_store %arg17[%c0_156, %c6, %c0_157], %791 {strides = array<i32>} : memref<1x18x128xf32, #tpu.memory_space<vmem>>, vector<1x1x128xf32>,
      %c0_158 = arith.constant 0 : index
      %c896_159 = arith.constant 896 : index
      %792 = vector.load %arg18[%c0_158, %c896_159] : memref<1x1920xf32, #tpu.memory_space<vmem>>, vector<1x128xf32>
      %cst_160 = arith.constant dense<0.000000e+00> : vector<128xf32>
      %793 = vector.multi_reduction <add>, %792, %cst_160 [0] : vector<1x128xf32> to vector<128xf32>
      %794 = vector.shape_cast %793 : vector<128xf32> to vector<1x128xf32>
      %c0_161 = arith.constant 0 : index
      %c7 = arith.constant 7 : index
      %c0_162 = arith.constant 0 : index
      %795 = vector.load %arg17[%c0_161, %c7, %c0_162] : memref<1x18x128xf32, #tpu.memory_space<vmem>>, vector<1x1x128xf32>
      %796 = vector.shape_cast %795 : vector<1x1x128xf32> to vector<1x128xf32>
      %797 = vector.shape_cast %794 : vector<1x128xf32> to vector<1x1x128xf32>
      tpu.vector_store %arg17[%c0_161, %c7, %c0_162], %797 {strides = array<i32>} : memref<1x18x128xf32, #tpu.memory_space<vmem>>, vector<1x1x128xf32>,
      %c0_163 = arith.constant 0 : index
      %c1024_164 = arith.constant 1024 : index
      %798 = vector.load %arg18[%c0_163, %c1024_164] : memref<1x1920xf32, #tpu.memory_space<vmem>>, vector<1x128xf32>
      %cst_165 = arith.constant dense<0.000000e+00> : vector<128xf32>
      %799 = vector.multi_reduction <add>, %798, %cst_165 [0] : vector<1x128xf32> to vector<128xf32>
      %800 = vector.shape_cast %799 : vector<128xf32> to vector<1x128xf32>
      %c0_166 = arith.constant 0 : index
      %c8 = arith.constant 8 : index
      %c0_167 = arith.constant 0 : index
      %801 = vector.load %arg17[%c0_166, %c8, %c0_167] : memref<1x18x128xf32, #tpu.memory_space<vmem>>, vector<1x1x128xf32>
      %802 = vector.shape_cast %801 : vector<1x1x128xf32> to vector<1x128xf32>
      %803 = vector.shape_cast %800 : vector<1x128xf32> to vector<1x1x128xf32>
      tpu.vector_store %arg17[%c0_166, %c8, %c0_167], %803 {strides = array<i32>} : memref<1x18x128xf32, #tpu.memory_space<vmem>>, vector<1x1x128xf32>,
      %c0_168 = arith.constant 0 : index
      %c1152_169 = arith.constant 1152 : index
      %804 = vector.load %arg18[%c0_168, %c1152_169] : memref<1x1920xf32, #tpu.memory_space<vmem>>, vector<1x128xf32>
      %cst_170 = arith.constant dense<0.000000e+00> : vector<128xf32>
      %805 = vector.multi_reduction <add>, %804, %cst_170 [0] : vector<1x128xf32> to vector<128xf32>
      %806 = vector.shape_cast %805 : vector<128xf32> to vector<1x128xf32>
      %c0_171 = arith.constant 0 : index
      %c9 = arith.constant 9 : index
      %c0_172 = arith.constant 0 : index
      %807 = vector.load %arg17[%c0_171, %c9, %c0_172] : memref<1x18x128xf32, #tpu.memory_space<vmem>>, vector<1x1x128xf32>
      %808 = vector.shape_cast %807 : vector<1x1x128xf32> to vector<1x128xf32>
      %809 = vector.shape_cast %806 : vector<1x128xf32> to vector<1x1x128xf32>
      tpu.vector_store %arg17[%c0_171, %c9, %c0_172], %809 {strides = array<i32>} : memref<1x18x128xf32, #tpu.memory_space<vmem>>, vector<1x1x128xf32>,
      %c0_173 = arith.constant 0 : index
      %c1280_174 = arith.constant 1280 : index
      %810 = vector.load %arg18[%c0_173, %c1280_174] : memref<1x1920xf32, #tpu.memory_space<vmem>>, vector<1x128xf32>
      %cst_175 = arith.constant dense<0.000000e+00> : vector<128xf32>
      %811 = vector.multi_reduction <add>, %810, %cst_175 [0] : vector<1x128xf32> to vector<128xf32>
      %812 = vector.shape_cast %811 : vector<128xf32> to vector<1x128xf32>
      %c0_176 = arith.constant 0 : index
      %c10 = arith.constant 10 : index
      %c0_177 = arith.constant 0 : index
      %813 = vector.load %arg17[%c0_176, %c10, %c0_177] : memref<1x18x128xf32, #tpu.memory_space<vmem>>, vector<1x1x128xf32>
      %814 = vector.shape_cast %813 : vector<1x1x128xf32> to vector<1x128xf32>
      %815 = vector.shape_cast %812 : vector<1x128xf32> to vector<1x1x128xf32>
      tpu.vector_store %arg17[%c0_176, %c10, %c0_177], %815 {strides = array<i32>} : memref<1x18x128xf32, #tpu.memory_space<vmem>>, vector<1x1x128xf32>,
      %c0_178 = arith.constant 0 : index
      %c1408_179 = arith.constant 1408 : index
      %816 = vector.load %arg18[%c0_178, %c1408_179] : memref<1x1920xf32, #tpu.memory_space<vmem>>, vector<1x128xf32>
      %cst_180 = arith.constant dense<0.000000e+00> : vector<128xf32>
      %817 = vector.multi_reduction <add>, %816, %cst_180 [0] : vector<1x128xf32> to vector<128xf32>
      %818 = vector.shape_cast %817 : vector<128xf32> to vector<1x128xf32>
      %c0_181 = arith.constant 0 : index
      %c11 = arith.constant 11 : index
      %c0_182 = arith.constant 0 : index
      %819 = vector.load %arg17[%c0_181, %c11, %c0_182] : memref<1x18x128xf32, #tpu.memory_space<vmem>>, vector<1x1x128xf32>
      %820 = vector.shape_cast %819 : vector<1x1x128xf32> to vector<1x128xf32>
      %821 = vector.shape_cast %818 : vector<1x128xf32> to vector<1x1x128xf32>
      tpu.vector_store %arg17[%c0_181, %c11, %c0_182], %821 {strides = array<i32>} : memref<1x18x128xf32, #tpu.memory_space<vmem>>, vector<1x1x128xf32>,
      %c0_183 = arith.constant 0 : index
      %c1536_184 = arith.constant 1536 : index
      %822 = vector.load %arg18[%c0_183, %c1536_184] : memref<1x1920xf32, #tpu.memory_space<vmem>>, vector<1x128xf32>
      %cst_185 = arith.constant dense<0.000000e+00> : vector<128xf32>
      %823 = vector.multi_reduction <add>, %822, %cst_185 [0] : vector<1x128xf32> to vector<128xf32>
      %824 = vector.shape_cast %823 : vector<128xf32> to vector<1x128xf32>
      %c0_186 = arith.constant 0 : index
      %c12 = arith.constant 12 : index
      %c0_187 = arith.constant 0 : index
      %825 = vector.load %arg17[%c0_186, %c12, %c0_187] : memref<1x18x128xf32, #tpu.memory_space<vmem>>, vector<1x1x128xf32>
      %826 = vector.shape_cast %825 : vector<1x1x128xf32> to vector<1x128xf32>
      %827 = vector.shape_cast %824 : vector<1x128xf32> to vector<1x1x128xf32>
      tpu.vector_store %arg17[%c0_186, %c12, %c0_187], %827 {strides = array<i32>} : memref<1x18x128xf32, #tpu.memory_space<vmem>>, vector<1x1x128xf32>,
      %c0_188 = arith.constant 0 : index
      %c1664_189 = arith.constant 1664 : index
      %828 = vector.load %arg18[%c0_188, %c1664_189] : memref<1x1920xf32, #tpu.memory_space<vmem>>, vector<1x128xf32>
      %cst_190 = arith.constant dense<0.000000e+00> : vector<128xf32>
      %829 = vector.multi_reduction <add>, %828, %cst_190 [0] : vector<1x128xf32> to vector<128xf32>
      %830 = vector.shape_cast %829 : vector<128xf32> to vector<1x128xf32>
      %c0_191 = arith.constant 0 : index
      %c13 = arith.constant 13 : index
      %c0_192 = arith.constant 0 : index
      %831 = vector.load %arg17[%c0_191, %c13, %c0_192] : memref<1x18x128xf32, #tpu.memory_space<vmem>>, vector<1x1x128xf32>
      %832 = vector.shape_cast %831 : vector<1x1x128xf32> to vector<1x128xf32>
      %833 = vector.shape_cast %830 : vector<1x128xf32> to vector<1x1x128xf32>
      tpu.vector_store %arg17[%c0_191, %c13, %c0_192], %833 {strides = array<i32>} : memref<1x18x128xf32, #tpu.memory_space<vmem>>, vector<1x1x128xf32>,
      %c0_193 = arith.constant 0 : index
      %c1792_194 = arith.constant 1792 : index
      %834 = vector.load %arg18[%c0_193, %c1792_194] : memref<1x1920xf32, #tpu.memory_space<vmem>>, vector<1x128xf32>
      %cst_195 = arith.constant dense<0.000000e+00> : vector<128xf32>
      %835 = vector.multi_reduction <add>, %834, %cst_195 [0] : vector<1x128xf32> to vector<128xf32>
      %836 = vector.shape_cast %835 : vector<128xf32> to vector<1x128xf32>
      %c0_196 = arith.constant 0 : index
      %c14 = arith.constant 14 : index
      %c0_197 = arith.constant 0 : index
      %837 = vector.load %arg17[%c0_196, %c14, %c0_197] : memref<1x18x128xf32, #tpu.memory_space<vmem>>, vector<1x1x128xf32>
      %838 = vector.shape_cast %837 : vector<1x1x128xf32> to vector<1x128xf32>
      %839 = vector.shape_cast %836 : vector<1x128xf32> to vector<1x1x128xf32>
      tpu.vector_store %arg17[%c0_196, %c14, %c0_197], %839 {strides = array<i32>} : memref<1x18x128xf32, #tpu.memory_space<vmem>>, vector<1x1x128xf32>,
      %c0_198 = arith.constant 0 : index
      %c0_199 = arith.constant 0 : index
      %840 = vector.load %arg13[%c0_198, %c0_199] : memref<2x8xf32, #tpu.memory_space<vmem>>, vector<2x8xf32>
      %cst_200 = arith.constant dense<0.000000e+00> : vector<2xf32>
      %841 = vector.multi_reduction <add>, %840, %cst_200 [1] : vector<2x8xf32> to vector<2xf32>
      %842 = vector.shape_cast %841 : vector<2xf32> to vector<2x1xf32>
      %c0_201 = arith.constant 0 : index
      %c0_202 = arith.constant 0 : index
      %c0_203 = arith.constant 0 : index
      %843 = vector.load %arg11[%c0_201, %c0_202, %c0_203] : memref<2x2x8xf32, #tpu.memory_space<vmem>>, vector<1x2x8xf32>
      %844 = vector.shape_cast %843 : vector<1x2x8xf32> to vector<2x8xf32>
      %c0_204 = arith.constant 0 : index
      %c0_205 = arith.constant 0 : index
      %c0_206 = arith.constant 0 : index
      %845 = vector.load %arg12[%c0_204, %c0_205, %c0_206] : memref<2x2x8xf32, #tpu.memory_space<vmem>>, vector<1x2x8xf32>
      %846 = vector.shape_cast %845 : vector<1x2x8xf32> to vector<2x8xf32>
      %847 = arith.addf %844, %846 : vector<2x8xf32>
      %cst_207 = arith.constant 5.000000e-01 : f32
      %848 = vector.broadcast %cst_207 : f32 to vector<2x8xf32>
      %849 = arith.mulf %847, %848 : vector<2x8xf32>
      %850 = arith.subf %844, %849 : vector<2x8xf32>
      %851 = arith.mulf %850, %850 : vector<2x8xf32>
      %852 = arith.subf %846, %849 : vector<2x8xf32>
      %853 = arith.mulf %852, %852 : vector<2x8xf32>
      %854 = arith.addf %851, %853 : vector<2x8xf32>
      %855 = arith.mulf %840, %854 : vector<2x8xf32>
      %cst_208 = arith.constant 9.99999974E-5 : f32
      %856 = vector.broadcast %cst_208 : f32 to vector<2x1xf32>
      %857 = arith.addf %842, %856 : vector<2x1xf32>
      %858 = vector.broadcast %857 : vector<2x1xf32> to vector<2x8xf32>
      %859 = arith.divf %855, %858 : vector<2x8xf32>
      %860 = vector.shape_cast %859 : vector<2x8xf32> to vector<1x2x8xf32>
      %cst_209 = arith.constant dense<0.000000e+00> : vector<1xf32>
      %861 = vector.multi_reduction <add>, %860, %cst_209 [1, 2] : vector<1x2x8xf32> to vector<1xf32>
      %862 = vector.shape_cast %861 : vector<1xf32> to vector<1x1x1xf32>
      %863 = vector.extract %862[0, 0, 0] : f32 from vector<1x1x1xf32>
      %cst_210 = arith.constant 0.000000e+00 : f32
      %864 = arith.addf %cst_210, %863 : f32
      %865 = vector.shape_cast %849 : vector<2x8xf32> to vector<2x1x8xf32>
      %866 = vector.shape_cast %849 : vector<2x8xf32> to vector<2x8x1xf32>
      %867 = vector.broadcast %865 : vector<2x1x8xf32> to vector<2x8x8xf32>
      %868 = vector.broadcast %866 : vector<2x8x1xf32> to vector<2x8x8xf32>
      %869 = arith.subf %867, %868 : vector<2x8x8xf32>
      %870 = math.absf %869 : vector<2x8x8xf32>
      %cst_211 = arith.constant 1.000000e+00 : f32
      %871 = vector.broadcast %cst_211 : f32 to vector<2x8x8xf32>
      %872 = arith.subf %871, %870 : vector<2x8x8xf32>
      %cst_212 = arith.constant 0.000000e+00 : f32
      %873 = vector.broadcast %cst_212 : f32 to vector<2x8x8xf32>
      %874 = arith.maximumf %872, %873 : vector<2x8x8xf32>
      %875 = vector.shape_cast %842 : vector<2x1xf32> to vector<2x1x1xf32>
      %cst_213 = arith.constant 9.99999974E-5 : f32
      %876 = vector.broadcast %cst_213 : f32 to vector<2x1x1xf32>
      %877 = arith.addf %875, %876 : vector<2x1x1xf32>
      %cst_214 = arith.constant 1.000000e+00 : f32
      %878 = vector.broadcast %cst_214 : f32 to vector<2x1x1xf32>
      %879 = arith.divf %878, %877 : vector<2x1x1xf32>
      %880 = vector.broadcast %879 : vector<2x1x1xf32> to vector<2x8x8xf32>
      %881 = arith.subf %874, %880 : vector<2x8x8xf32>
      %cst_215 = arith.constant 1.000000e+00 : f32
      %882 = vector.broadcast %cst_215 : f32 to vector<2x1x1xf32>
      %883 = arith.subf %875, %882 : vector<2x1x1xf32>
      %884 = arith.mulf %883, %875 : vector<2x1x1xf32>
      %cst_216 = arith.constant 9.99999974E-5 : f32
      %885 = vector.broadcast %cst_216 : f32 to vector<2x1x1xf32>
      %886 = arith.addf %884, %885 : vector<2x1x1xf32>
      %887 = vector.broadcast %886 : vector<2x1x1xf32> to vector<2x8x8xf32>
      %888 = arith.divf %881, %887 : vector<2x8x8xf32>
      %889 = vector.shape_cast %840 : vector<2x8xf32> to vector<2x8x1xf32>
      %890 = vector.shape_cast %840 : vector<2x8xf32> to vector<2x1x8xf32>
      %891 = vector.broadcast %889 : vector<2x8x1xf32> to vector<2x8x8xf32>
      %892 = vector.broadcast %890 : vector<2x1x8xf32> to vector<2x8x8xf32>
      %893 = arith.mulf %891, %892 : vector<2x8x8xf32>
      %cst_217 = arith.constant 0.000000e+00 : f32
      %894 = vector.broadcast %cst_217 : f32 to vector<2x8x8xf32>
      %895 = arith.cmpf ogt, %893, %894 : vector<2x8x8xf32>
      %cst_218 = arith.constant 0.000000e+00 : f32
      %896 = vector.broadcast %cst_218 : f32 to vector<2x8x8xf32>
      %897 = arith.select %895, %888, %896 : vector<2x8x8xi1>, vector<2x8x8xf32>
      %898 = vector.shape_cast %897 : vector<2x8x8xf32> to vector<1x2x8x8xf32>
      %cst_219 = arith.constant dense<0.000000e+00> : vector<1xf32>
      %899 = vector.multi_reduction <add>, %898, %cst_219 [1, 2, 3] : vector<1x2x8x8xf32> to vector<1xf32>
      %900 = vector.shape_cast %899 : vector<1xf32> to vector<1x1x1x1xf32>
      %901 = vector.extract %900[0, 0, 0, 0] : f32 from vector<1x1x1x1xf32>
      %cst_220 = arith.constant 0.000000e+00 : f32
      %902 = arith.addf %cst_220, %901 : f32
      %c1_221 = arith.constant 1 : index
      %c0_222 = arith.constant 0 : index
      %c0_223 = arith.constant 0 : index
      %903 = vector.load %arg11[%c1_221, %c0_222, %c0_223] : memref<2x2x8xf32, #tpu.memory_space<vmem>>, vector<1x2x8xf32>
      %904 = vector.shape_cast %903 : vector<1x2x8xf32> to vector<2x8xf32>
      %c1_224 = arith.constant 1 : index
      %c0_225 = arith.constant 0 : index
      %c0_226 = arith.constant 0 : index
      %905 = vector.load %arg12[%c1_224, %c0_225, %c0_226] : memref<2x2x8xf32, #tpu.memory_space<vmem>>, vector<1x2x8xf32>
      %906 = vector.shape_cast %905 : vector<1x2x8xf32> to vector<2x8xf32>
      %907 = arith.addf %904, %906 : vector<2x8xf32>
      %cst_227 = arith.constant 5.000000e-01 : f32
      %908 = vector.broadcast %cst_227 : f32 to vector<2x8xf32>
      %909 = arith.mulf %907, %908 : vector<2x8xf32>
      %910 = arith.subf %904, %909 : vector<2x8xf32>
      %911 = arith.mulf %910, %910 : vector<2x8xf32>
      %912 = arith.subf %906, %909 : vector<2x8xf32>
      %913 = arith.mulf %912, %912 : vector<2x8xf32>
      %914 = arith.addf %911, %913 : vector<2x8xf32>
      %915 = arith.mulf %840, %914 : vector<2x8xf32>
      %cst_228 = arith.constant 9.99999974E-5 : f32
      %916 = vector.broadcast %cst_228 : f32 to vector<2x1xf32>
      %917 = arith.addf %842, %916 : vector<2x1xf32>
      %918 = vector.broadcast %917 : vector<2x1xf32> to vector<2x8xf32>
      %919 = arith.divf %915, %918 : vector<2x8xf32>
      %920 = vector.shape_cast %919 : vector<2x8xf32> to vector<1x2x8xf32>
      %cst_229 = arith.constant dense<0.000000e+00> : vector<1xf32>
      %921 = vector.multi_reduction <add>, %920, %cst_229 [1, 2] : vector<1x2x8xf32> to vector<1xf32>
      %922 = vector.shape_cast %921 : vector<1xf32> to vector<1x1x1xf32>
      %923 = vector.extract %922[0, 0, 0] : f32 from vector<1x1x1xf32>
      %924 = arith.addf %864, %923 : f32
      %925 = vector.shape_cast %909 : vector<2x8xf32> to vector<2x1x8xf32>
      %926 = vector.shape_cast %909 : vector<2x8xf32> to vector<2x8x1xf32>
      %927 = vector.broadcast %925 : vector<2x1x8xf32> to vector<2x8x8xf32>
      %928 = vector.broadcast %926 : vector<2x8x1xf32> to vector<2x8x8xf32>
      %929 = arith.subf %927, %928 : vector<2x8x8xf32>
      %930 = math.absf %929 : vector<2x8x8xf32>
      %cst_230 = arith.constant 1.000000e+00 : f32
      %931 = vector.broadcast %cst_230 : f32 to vector<2x8x8xf32>
      %932 = arith.subf %931, %930 : vector<2x8x8xf32>
      %cst_231 = arith.constant 0.000000e+00 : f32
      %933 = vector.broadcast %cst_231 : f32 to vector<2x8x8xf32>
      %934 = arith.maximumf %932, %933 : vector<2x8x8xf32>
      %935 = vector.shape_cast %842 : vector<2x1xf32> to vector<2x1x1xf32>
      %cst_232 = arith.constant 9.99999974E-5 : f32
      %936 = vector.broadcast %cst_232 : f32 to vector<2x1x1xf32>
      %937 = arith.addf %935, %936 : vector<2x1x1xf32>
      %cst_233 = arith.constant 1.000000e+00 : f32
      %938 = vector.broadcast %cst_233 : f32 to vector<2x1x1xf32>
      %939 = arith.divf %938, %937 : vector<2x1x1xf32>
      %940 = vector.broadcast %939 : vector<2x1x1xf32> to vector<2x8x8xf32>
      %941 = arith.subf %934, %940 : vector<2x8x8xf32>
      %cst_234 = arith.constant 1.000000e+00 : f32
      %942 = vector.broadcast %cst_234 : f32 to vector<2x1x1xf32>
      %943 = arith.subf %935, %942 : vector<2x1x1xf32>
      %944 = arith.mulf %943, %935 : vector<2x1x1xf32>
      %cst_235 = arith.constant 9.99999974E-5 : f32
      %945 = vector.broadcast %cst_235 : f32 to vector<2x1x1xf32>
      %946 = arith.addf %944, %945 : vector<2x1x1xf32>
      %947 = vector.broadcast %946 : vector<2x1x1xf32> to vector<2x8x8xf32>
      %948 = arith.divf %941, %947 : vector<2x8x8xf32>
      %949 = vector.shape_cast %840 : vector<2x8xf32> to vector<2x8x1xf32>
      %950 = vector.shape_cast %840 : vector<2x8xf32> to vector<2x1x8xf32>
      %951 = vector.broadcast %949 : vector<2x8x1xf32> to vector<2x8x8xf32>
      %952 = vector.broadcast %950 : vector<2x1x8xf32> to vector<2x8x8xf32>
      %953 = arith.mulf %951, %952 : vector<2x8x8xf32>
      %cst_236 = arith.constant 0.000000e+00 : f32
      %954 = vector.broadcast %cst_236 : f32 to vector<2x8x8xf32>
      %955 = arith.cmpf ogt, %953, %954 : vector<2x8x8xf32>
      %cst_237 = arith.constant 0.000000e+00 : f32
      %956 = vector.broadcast %cst_237 : f32 to vector<2x8x8xf32>
      %957 = arith.select %955, %948, %956 : vector<2x8x8xi1>, vector<2x8x8xf32>
      %958 = vector.shape_cast %957 : vector<2x8x8xf32> to vector<1x2x8x8xf32>
      %cst_238 = arith.constant dense<0.000000e+00> : vector<1xf32>
      %959 = vector.multi_reduction <add>, %958, %cst_238 [1, 2, 3] : vector<1x2x8x8xf32> to vector<1xf32>
      %960 = vector.shape_cast %959 : vector<1xf32> to vector<1x1x1x1xf32>
      %961 = vector.extract %960[0, 0, 0, 0] : f32 from vector<1x1x1x1xf32>
      %962 = arith.addf %902, %961 : f32
      %c0_239 = arith.constant 0 : index
      %c0_240 = arith.constant 0 : index
      %963 = vector.load %arg14[%c0_239, %c0_240] : memref<2x16xf32, #tpu.memory_space<vmem>>, vector<2x16xf32>
      %964 = vector.shape_cast %840 : vector<2x8xf32> to vector<1x2x8xf32>
      %cst_241 = arith.constant dense<0.000000e+00> : vector<1xf32>
      %965 = vector.multi_reduction <add>, %964, %cst_241 [1, 2] : vector<1x2x8xf32> to vector<1xf32>
      %966 = vector.shape_cast %965 : vector<1xf32> to vector<1x1x1xf32>
      %967 = vector.extract %966[0, 0, 0] : f32 from vector<1x1x1xf32>
      %c0_242 = arith.constant 0 : index
      %c0_243 = arith.constant 0 : index
      %c0_244 = arith.constant 0 : index
      %968 = vector.load %arg15[%c0_242, %c0_243, %c0_244] : memref<6x2x16xf32, #tpu.memory_space<vmem>>, vector<1x2x16xf32>
      %969 = vector.shape_cast %968 : vector<1x2x16xf32> to vector<2x16xf32>
      %c0_245 = arith.constant 0 : index
      %c0_246 = arith.constant 0 : index
      %c0_247 = arith.constant 0 : index
      %970 = vector.load %arg16[%c0_245, %c0_246, %c0_247] : memref<3x2x16xf32, #tpu.memory_space<vmem>>, vector<1x2x16xf32>
      %971 = vector.shape_cast %970 : vector<1x2x16xf32> to vector<2x16xf32>
      %972 = arith.subf %969, %971 : vector<2x16xf32>
      %973 = math.absf %972 : vector<2x16xf32>
      %cst_248 = arith.constant 1.000000e+00 : f32
      %974 = vector.broadcast %cst_248 : f32 to vector<2x16xf32>
      %975 = arith.cmpf olt, %973, %974 : vector<2x16xf32>
      %cst_249 = arith.constant 5.000000e-01 : f32
      %976 = vector.broadcast %cst_249 : f32 to vector<2x16xf32>
      %977 = arith.mulf %976, %972 : vector<2x16xf32>
      %978 = arith.mulf %977, %972 : vector<2x16xf32>
      %cst_250 = arith.constant 5.000000e-01 : f32
      %979 = vector.broadcast %cst_250 : f32 to vector<2x16xf32>
      %980 = arith.subf %973, %979 : vector<2x16xf32>
      %981 = arith.select %975, %978, %980 : vector<2x16xi1>, vector<2x16xf32>
      %982 = arith.mulf %981, %963 : vector<2x16xf32>
      %983 = vector.shape_cast %982 : vector<2x16xf32> to vector<1x2x16xf32>
      %cst_251 = arith.constant dense<0.000000e+00> : vector<1xf32>
      %984 = vector.multi_reduction <add>, %983, %cst_251 [1, 2] : vector<1x2x16xf32> to vector<1xf32>
      %985 = vector.shape_cast %984 : vector<1xf32> to vector<1x1x1xf32>
      %986 = vector.extract %985[0, 0, 0] : f32 from vector<1x1x1xf32>
      %cst_252 = arith.constant 0.000000e+00 : f32
      %987 = arith.addf %cst_252, %986 : f32
      %c1_253 = arith.constant 1 : index
      %c0_254 = arith.constant 0 : index
      %c0_255 = arith.constant 0 : index
      %988 = vector.load %arg15[%c1_253, %c0_254, %c0_255] : memref<6x2x16xf32, #tpu.memory_space<vmem>>, vector<1x2x16xf32>
      %989 = vector.shape_cast %988 : vector<1x2x16xf32> to vector<2x16xf32>
      %c0_256 = arith.constant 0 : index
      %c0_257 = arith.constant 0 : index
      %c0_258 = arith.constant 0 : index
      %990 = vector.load %arg16[%c0_256, %c0_257, %c0_258] : memref<3x2x16xf32, #tpu.memory_space<vmem>>, vector<1x2x16xf32>
      %991 = vector.shape_cast %990 : vector<1x2x16xf32> to vector<2x16xf32>
      %992 = arith.subf %989, %991 : vector<2x16xf32>
      %993 = math.absf %992 : vector<2x16xf32>
      %cst_259 = arith.constant 1.000000e+00 : f32
      %994 = vector.broadcast %cst_259 : f32 to vector<2x16xf32>
      %995 = arith.cmpf olt, %993, %994 : vector<2x16xf32>
      %cst_260 = arith.constant 5.000000e-01 : f32
      %996 = vector.broadcast %cst_260 : f32 to vector<2x16xf32>
      %997 = arith.mulf %996, %992 : vector<2x16xf32>
      %998 = arith.mulf %997, %992 : vector<2x16xf32>
      %cst_261 = arith.constant 5.000000e-01 : f32
      %999 = vector.broadcast %cst_261 : f32 to vector<2x16xf32>
      %1000 = arith.subf %993, %999 : vector<2x16xf32>
      %1001 = arith.select %995, %998, %1000 : vector<2x16xi1>, vector<2x16xf32>
      %1002 = arith.mulf %1001, %963 : vector<2x16xf32>
      %1003 = vector.shape_cast %1002 : vector<2x16xf32> to vector<1x2x16xf32>
      %cst_262 = arith.constant dense<0.000000e+00> : vector<1xf32>
      %1004 = vector.multi_reduction <add>, %1003, %cst_262 [1, 2] : vector<1x2x16xf32> to vector<1xf32>
      %1005 = vector.shape_cast %1004 : vector<1xf32> to vector<1x1x1xf32>
      %1006 = vector.extract %1005[0, 0, 0] : f32 from vector<1x1x1xf32>
      %1007 = arith.addf %987, %1006 : f32
      %c2_263 = arith.constant 2 : index
      %c0_264 = arith.constant 0 : index
      %c0_265 = arith.constant 0 : index
      %1008 = vector.load %arg15[%c2_263, %c0_264, %c0_265] : memref<6x2x16xf32, #tpu.memory_space<vmem>>, vector<1x2x16xf32>
      %1009 = vector.shape_cast %1008 : vector<1x2x16xf32> to vector<2x16xf32>
      %c1_266 = arith.constant 1 : index
      %c0_267 = arith.constant 0 : index
      %c0_268 = arith.constant 0 : index
      %1010 = vector.load %arg16[%c1_266, %c0_267, %c0_268] : memref<3x2x16xf32, #tpu.memory_space<vmem>>, vector<1x2x16xf32>
      %1011 = vector.shape_cast %1010 : vector<1x2x16xf32> to vector<2x16xf32>
      %1012 = arith.subf %1009, %1011 : vector<2x16xf32>
      %1013 = math.absf %1012 : vector<2x16xf32>
      %cst_269 = arith.constant 1.000000e+00 : f32
      %1014 = vector.broadcast %cst_269 : f32 to vector<2x16xf32>
      %1015 = arith.cmpf olt, %1013, %1014 : vector<2x16xf32>
      %cst_270 = arith.constant 5.000000e-01 : f32
      %1016 = vector.broadcast %cst_270 : f32 to vector<2x16xf32>
      %1017 = arith.mulf %1016, %1012 : vector<2x16xf32>
      %1018 = arith.mulf %1017, %1012 : vector<2x16xf32>
      %cst_271 = arith.constant 5.000000e-01 : f32
      %1019 = vector.broadcast %cst_271 : f32 to vector<2x16xf32>
      %1020 = arith.subf %1013, %1019 : vector<2x16xf32>
      %1021 = arith.select %1015, %1018, %1020 : vector<2x16xi1>, vector<2x16xf32>
      %1022 = arith.mulf %1021, %963 : vector<2x16xf32>
      %1023 = vector.shape_cast %1022 : vector<2x16xf32> to vector<1x2x16xf32>
      %cst_272 = arith.constant dense<0.000000e+00> : vector<1xf32>
      %1024 = vector.multi_reduction <add>, %1023, %cst_272 [1, 2] : vector<1x2x16xf32> to vector<1xf32>
      %1025 = vector.shape_cast %1024 : vector<1xf32> to vector<1x1x1xf32>
      %1026 = vector.extract %1025[0, 0, 0] : f32 from vector<1x1x1xf32>
      %1027 = arith.addf %1007, %1026 : f32
      %c3_273 = arith.constant 3 : index
      %c0_274 = arith.constant 0 : index
      %c0_275 = arith.constant 0 : index
      %1028 = vector.load %arg15[%c3_273, %c0_274, %c0_275] : memref<6x2x16xf32, #tpu.memory_space<vmem>>, vector<1x2x16xf32>
      %1029 = vector.shape_cast %1028 : vector<1x2x16xf32> to vector<2x16xf32>
      %c1_276 = arith.constant 1 : index
      %c0_277 = arith.constant 0 : index
      %c0_278 = arith.constant 0 : index
      %1030 = vector.load %arg16[%c1_276, %c0_277, %c0_278] : memref<3x2x16xf32, #tpu.memory_space<vmem>>, vector<1x2x16xf32>
      %1031 = vector.shape_cast %1030 : vector<1x2x16xf32> to vector<2x16xf32>
      %1032 = arith.subf %1029, %1031 : vector<2x16xf32>
      %1033 = math.absf %1032 : vector<2x16xf32>
      %cst_279 = arith.constant 1.000000e+00 : f32
      %1034 = vector.broadcast %cst_279 : f32 to vector<2x16xf32>
      %1035 = arith.cmpf olt, %1033, %1034 : vector<2x16xf32>
      %cst_280 = arith.constant 5.000000e-01 : f32
      %1036 = vector.broadcast %cst_280 : f32 to vector<2x16xf32>
      %1037 = arith.mulf %1036, %1032 : vector<2x16xf32>
      %1038 = arith.mulf %1037, %1032 : vector<2x16xf32>
      %cst_281 = arith.constant 5.000000e-01 : f32
      %1039 = vector.broadcast %cst_281 : f32 to vector<2x16xf32>
      %1040 = arith.subf %1033, %1039 : vector<2x16xf32>
      %1041 = arith.select %1035, %1038, %1040 : vector<2x16xi1>, vector<2x16xf32>
      %1042 = arith.mulf %1041, %963 : vector<2x16xf32>
      %1043 = vector.shape_cast %1042 : vector<2x16xf32> to vector<1x2x16xf32>
      %cst_282 = arith.constant dense<0.000000e+00> : vector<1xf32>
      %1044 = vector.multi_reduction <add>, %1043, %cst_282 [1, 2] : vector<1x2x16xf32> to vector<1xf32>
      %1045 = vector.shape_cast %1044 : vector<1xf32> to vector<1x1x1xf32>
      %1046 = vector.extract %1045[0, 0, 0] : f32 from vector<1x1x1xf32>
      %1047 = arith.addf %1027, %1046 : f32
      %c4_283 = arith.constant 4 : index
      %c0_284 = arith.constant 0 : index
      %c0_285 = arith.constant 0 : index
      %1048 = vector.load %arg15[%c4_283, %c0_284, %c0_285] : memref<6x2x16xf32, #tpu.memory_space<vmem>>, vector<1x2x16xf32>
      %1049 = vector.shape_cast %1048 : vector<1x2x16xf32> to vector<2x16xf32>
      %c2_286 = arith.constant 2 : index
      %c0_287 = arith.constant 0 : index
      %c0_288 = arith.constant 0 : index
      %1050 = vector.load %arg16[%c2_286, %c0_287, %c0_288] : memref<3x2x16xf32, #tpu.memory_space<vmem>>, vector<1x2x16xf32>
      %1051 = vector.shape_cast %1050 : vector<1x2x16xf32> to vector<2x16xf32>
      %1052 = arith.subf %1049, %1051 : vector<2x16xf32>
      %1053 = math.absf %1052 : vector<2x16xf32>
      %cst_289 = arith.constant 1.000000e+00 : f32
      %1054 = vector.broadcast %cst_289 : f32 to vector<2x16xf32>
      %1055 = arith.cmpf olt, %1053, %1054 : vector<2x16xf32>
      %cst_290 = arith.constant 5.000000e-01 : f32
      %1056 = vector.broadcast %cst_290 : f32 to vector<2x16xf32>
      %1057 = arith.mulf %1056, %1052 : vector<2x16xf32>
      %1058 = arith.mulf %1057, %1052 : vector<2x16xf32>
      %cst_291 = arith.constant 5.000000e-01 : f32
      %1059 = vector.broadcast %cst_291 : f32 to vector<2x16xf32>
      %1060 = arith.subf %1053, %1059 : vector<2x16xf32>
      %1061 = arith.select %1055, %1058, %1060 : vector<2x16xi1>, vector<2x16xf32>
      %1062 = arith.mulf %1061, %963 : vector<2x16xf32>
      %1063 = vector.shape_cast %1062 : vector<2x16xf32> to vector<1x2x16xf32>
      %cst_292 = arith.constant dense<0.000000e+00> : vector<1xf32>
      %1064 = vector.multi_reduction <add>, %1063, %cst_292 [1, 2] : vector<1x2x16xf32> to vector<1xf32>
      %1065 = vector.shape_cast %1064 : vector<1xf32> to vector<1x1x1xf32>
      %1066 = vector.extract %1065[0, 0, 0] : f32 from vector<1x1x1xf32>
      %1067 = arith.addf %1047, %1066 : f32
      %c5_293 = arith.constant 5 : index
      %c0_294 = arith.constant 0 : index
      %c0_295 = arith.constant 0 : index
      %1068 = vector.load %arg15[%c5_293, %c0_294, %c0_295] : memref<6x2x16xf32, #tpu.memory_space<vmem>>, vector<1x2x16xf32>
      %1069 = vector.shape_cast %1068 : vector<1x2x16xf32> to vector<2x16xf32>
      %c2_296 = arith.constant 2 : index
      %c0_297 = arith.constant 0 : index
      %c0_298 = arith.constant 0 : index
      %1070 = vector.load %arg16[%c2_296, %c0_297, %c0_298] : memref<3x2x16xf32, #tpu.memory_space<vmem>>, vector<1x2x16xf32>
      %1071 = vector.shape_cast %1070 : vector<1x2x16xf32> to vector<2x16xf32>
      %1072 = arith.subf %1069, %1071 : vector<2x16xf32>
      %1073 = math.absf %1072 : vector<2x16xf32>
      %cst_299 = arith.constant 1.000000e+00 : f32
      %1074 = vector.broadcast %cst_299 : f32 to vector<2x16xf32>
      %1075 = arith.cmpf olt, %1073, %1074 : vector<2x16xf32>
      %cst_300 = arith.constant 5.000000e-01 : f32
      %1076 = vector.broadcast %cst_300 : f32 to vector<2x16xf32>
      %1077 = arith.mulf %1076, %1072 : vector<2x16xf32>
      %1078 = arith.mulf %1077, %1072 : vector<2x16xf32>
      %cst_301 = arith.constant 5.000000e-01 : f32
      %1079 = vector.broadcast %cst_301 : f32 to vector<2x16xf32>
      %1080 = arith.subf %1073, %1079 : vector<2x16xf32>
      %1081 = arith.select %1075, %1078, %1080 : vector<2x16xi1>, vector<2x16xf32>
      %1082 = arith.mulf %1081, %963 : vector<2x16xf32>
      %1083 = vector.shape_cast %1082 : vector<2x16xf32> to vector<1x2x16xf32>
      %cst_302 = arith.constant dense<0.000000e+00> : vector<1xf32>
      %1084 = vector.multi_reduction <add>, %1083, %cst_302 [1, 2] : vector<1x2x16xf32> to vector<1xf32>
      %1085 = vector.shape_cast %1084 : vector<1xf32> to vector<1x1x1xf32>
      %1086 = vector.extract %1085[0, 0, 0] : f32 from vector<1x1x1xf32>
      %1087 = arith.addf %1067, %1086 : f32
      %cst_303 = arith.constant 9.99999974E-5 : f32
      %1088 = arith.addf %967, %cst_303 : f32
      %1089 = arith.divf %1087, %1088 : f32
      %1090 = vector.broadcast %924 : f32 to vector<1x128xf32>
      %c0_304 = arith.constant 0 : index
      %c15 = arith.constant 15 : index
      %c0_305 = arith.constant 0 : index
      %1091 = vector.load %arg17[%c0_304, %c15, %c0_305] : memref<1x18x128xf32, #tpu.memory_space<vmem>>, vector<1x1x128xf32>
      %1092 = vector.shape_cast %1091 : vector<1x1x128xf32> to vector<1x128xf32>
      %1093 = vector.shape_cast %1090 : vector<1x128xf32> to vector<1x1x128xf32>
      tpu.vector_store %arg17[%c0_304, %c15, %c0_305], %1093 {strides = array<i32>} : memref<1x18x128xf32, #tpu.memory_space<vmem>>, vector<1x1x128xf32>,
      %1094 = vector.broadcast %962 : f32 to vector<1x128xf32>
      %c0_306 = arith.constant 0 : index
      %c16 = arith.constant 16 : index
      %c0_307 = arith.constant 0 : index
      %1095 = vector.load %arg17[%c0_306, %c16, %c0_307] : memref<1x18x128xf32, #tpu.memory_space<vmem>>, vector<1x1x128xf32>
      %1096 = vector.shape_cast %1095 : vector<1x1x128xf32> to vector<1x128xf32>
      %1097 = vector.shape_cast %1094 : vector<1x128xf32> to vector<1x1x128xf32>
      tpu.vector_store %arg17[%c0_306, %c16, %c0_307], %1097 {strides = array<i32>} : memref<1x18x128xf32, #tpu.memory_space<vmem>>, vector<1x1x128xf32>,
      %1098 = vector.broadcast %1089 : f32 to vector<1x128xf32>
      %c0_308 = arith.constant 0 : index
      %c17 = arith.constant 17 : index
      %c0_309 = arith.constant 0 : index
      %1099 = vector.load %arg17[%c0_308, %c17, %c0_309] : memref<1x18x128xf32, #tpu.memory_space<vmem>>, vector<1x1x128xf32>
      %1100 = vector.shape_cast %1099 : vector<1x1x128xf32> to vector<1x128xf32>
      %1101 = vector.shape_cast %1098 : vector<1x128xf32> to vector<1x1x128xf32>
      tpu.vector_store %arg17[%c0_308, %c17, %c0_309], %1101 {strides = array<i32>} : memref<1x18x128xf32, #tpu.memory_space<vmem>>, vector<1x1x128xf32>,
    } else {
    }
    return
  }
  func.func @transform_0(%arg0: i32, %arg1: i32) -> (i32, i32) {
    %c1_i32 = arith.constant 1 : i32
    %0 = arith.muli %arg0, %c1_i32 : i32
    %1 = arith.addi %0, %arg1 : i32
    %c0_i32 = arith.constant 0 : i32
    %c0_i32_0 = arith.constant 0 : i32
    return %1, %c0_i32 : i32, i32
  }
  func.func @transform_1(%arg0: i32, %arg1: i32) -> (i32, i32) {
    %c1_i32 = arith.constant 1 : i32
    %0 = arith.muli %arg0, %c1_i32 : i32
    %1 = arith.addi %0, %arg1 : i32
    %c0_i32 = arith.constant 0 : i32
    %c0_i32_0 = arith.constant 0 : i32
    return %1, %c0_i32 : i32, i32
  }
  func.func @transform_2(%arg0: i32, %arg1: i32) -> (i32, i32) {
    %c1_i32 = arith.constant 1 : i32
    %0 = arith.muli %arg0, %c1_i32 : i32
    %1 = arith.addi %0, %arg1 : i32
    %c0_i32 = arith.constant 0 : i32
    %c0_i32_0 = arith.constant 0 : i32
    return %1, %c0_i32 : i32, i32
  }
  func.func @transform_3(%arg0: i32, %arg1: i32) -> (i32, i32) {
    %c1_i32 = arith.constant 1 : i32
    %0 = arith.muli %arg0, %c1_i32 : i32
    %1 = arith.addi %0, %arg1 : i32
    %c0_i32 = arith.constant 0 : i32
    %c0_i32_0 = arith.constant 0 : i32
    return %1, %c0_i32 : i32, i32
  }
  func.func @transform_4(%arg0: i32, %arg1: i32) -> (i32, i32) {
    %c1_i32 = arith.constant 1 : i32
    %0 = arith.muli %arg0, %c1_i32 : i32
    %1 = arith.addi %0, %arg1 : i32
    %c0_i32 = arith.constant 0 : i32
    %c0_i32_0 = arith.constant 0 : i32
    return %1, %c0_i32 : i32, i32
  }
  func.func @transform_5(%arg0: i32, %arg1: i32) -> (i32, i32) {
    %c1_i32 = arith.constant 1 : i32
    %0 = arith.muli %arg0, %c1_i32 : i32
    %1 = arith.addi %0, %arg1 : i32
    %c0_i32 = arith.constant 0 : i32
    %c0_i32_0 = arith.constant 0 : i32
    return %1, %c0_i32 : i32, i32
  }
  func.func @transform_6(%arg0: i32, %arg1: i32) -> (i32, i32) {
    %c1_i32 = arith.constant 1 : i32
    %0 = arith.muli %arg0, %c1_i32 : i32
    %1 = arith.addi %0, %arg1 : i32
    %c0_i32 = arith.constant 0 : i32
    %c0_i32_0 = arith.constant 0 : i32
    return %1, %c0_i32 : i32, i32
  }
  func.func @transform_7(%arg0: i32, %arg1: i32) -> (i32, i32) {
    %c1_i32 = arith.constant 1 : i32
    %0 = arith.muli %arg0, %c1_i32 : i32
    %1 = arith.addi %0, %arg1 : i32
    %c0_i32 = arith.constant 0 : i32
    %c0_i32_0 = arith.constant 0 : i32
    return %1, %c0_i32 : i32, i32
  }
  func.func @transform_8(%arg0: i32, %arg1: i32) -> (i32, i32) {
    %c1_i32 = arith.constant 1 : i32
    %0 = arith.muli %arg0, %c1_i32 : i32
    %1 = arith.addi %0, %arg1 : i32
    %c0_i32 = arith.constant 0 : i32
    %c0_i32_0 = arith.constant 0 : i32
    return %1, %c0_i32 : i32, i32
  }
  func.func @transform_9(%arg0: i32, %arg1: i32) -> (i32, i32, i32) {
    %c0_i32 = arith.constant 0 : i32
    %c0_i32_0 = arith.constant 0 : i32
    %c0_i32_1 = arith.constant 0 : i32
    %c0_i32_2 = arith.constant 0 : i32
    return %c0_i32, %c0_i32_0, %c0_i32_1 : i32, i32, i32
  }
  func.func @transform_10(%arg0: i32, %arg1: i32) -> (i32, i32, i32) {
    %c0_i32 = arith.constant 0 : i32
    %c0_i32_0 = arith.constant 0 : i32
    %c0_i32_1 = arith.constant 0 : i32
    %c0_i32_2 = arith.constant 0 : i32
    return %c0_i32, %c0_i32_0, %c0_i32_1 : i32, i32, i32
  }
  func.func @transform_11(%arg0: i32, %arg1: i32) -> (i32, i32) {
    %c0_i32 = arith.constant 0 : i32
    %c0_i32_0 = arith.constant 0 : i32
    %c0_i32_1 = arith.constant 0 : i32
    return %c0_i32, %c0_i32_0 : i32, i32
  }
  func.func @transform_12(%arg0: i32, %arg1: i32) -> (i32, i32) {
    %c0_i32 = arith.constant 0 : i32
    %c0_i32_0 = arith.constant 0 : i32
    %c0_i32_1 = arith.constant 0 : i32
    return %c0_i32, %c0_i32_0 : i32, i32
  }
  func.func @transform_13(%arg0: i32, %arg1: i32) -> (i32, i32, i32) {
    %c0_i32 = arith.constant 0 : i32
    %c0_i32_0 = arith.constant 0 : i32
    %c0_i32_1 = arith.constant 0 : i32
    %c0_i32_2 = arith.constant 0 : i32
    return %c0_i32, %c0_i32_0, %c0_i32_1 : i32, i32, i32
  }
  func.func @transform_14(%arg0: i32, %arg1: i32) -> (i32, i32, i32) {
    %c0_i32 = arith.constant 0 : i32
    %c0_i32_0 = arith.constant 0 : i32
    %c0_i32_1 = arith.constant 0 : i32
    %c0_i32_2 = arith.constant 0 : i32
    return %c0_i32, %c0_i32_0, %c0_i32_1 : i32, i32, i32
  }
  func.func @transform_15(%arg0: i32, %arg1: i32) -> (i32, i32, i32) {
    %c0_i32 = arith.constant 0 : i32
    %c0_i32_0 = arith.constant 0 : i32
    %c0_i32_1 = arith.constant 0 : i32
    return %arg0, %c0_i32, %c0_i32_0 : i32, i32, i32
  }
}

</mosaic_0001>

<llo_original>
// kernel: tpu_custom_call.1
$region0: #{tpu_custom_call.1}
  #allocation0 [shape = 'u32[]', space=smem, size = 0x4, offset = 0x4, fixed_abs, tag = 'smem constant byte address 0x4 - core index']
  #allocation1 [shape = 'u32[144,128]{1,0:T(1,128)}', space=vmem, size = 0x12000, scoped, tag = 'internal scratch']
  #allocation2 [shape = 'f32[1,1920]{1,0:T(1,128)}', space=vmem, size = 0x1e00, scoped, tag = 'scratch operand']
  %s0 = inlined_call_operand.hbm [shape: f32[1,2048], index: 0, kind: input, shape index: {}]
  %s1 = inlined_call_operand.hbm [shape: f32[1,2048], index: 1, kind: input, shape index: {}]
  %s2 = inlined_call_operand.hbm [shape: f32[1,2048], index: 2, kind: input, shape index: {}]
  %s3 = inlined_call_operand.hbm [shape: f32[1,2048], index: 3, kind: input, shape index: {}]
  %s4 = inlined_call_operand.hbm [shape: f32[1,2048], index: 4, kind: input, shape index: {}]
  %s5 = inlined_call_operand.hbm [shape: f32[1,2048], index: 5, kind: input, shape index: {}]
  %s6 = inlined_call_operand.hbm [shape: f32[1,2048], index: 6, kind: input, shape index: {}]
  %s7 = inlined_call_operand.hbm [shape: f32[1,2048], index: 7, kind: input, shape index: {}]
  %s8 = inlined_call_operand.hbm [shape: f32[1,2048], index: 8, kind: input, shape index: {}]
  %s9 = inlined_call_operand.vmem [shape: f32[2,2,8], index: 9, kind: input, shape index: {}]
  %s10 = inlined_call_operand.hbm [shape: f32[2,2,8], index: 10, kind: input, shape index: {}]
  %s11 = inlined_call_operand.hbm [shape: f32[2,8], index: 11, kind: input, shape index: {}]
  %s12 = inlined_call_operand.hbm [shape: f32[2,16], index: 12, kind: input, shape index: {}]
  %s13 = inlined_call_operand.vmem [shape: f32[6,2,16], index: 13, kind: input, shape index: {}]
  %s14 = inlined_call_operand.vmem [shape: f32[3,2,16], index: 14, kind: input, shape index: {}]
  %s15 = inlined_call_operand.vmem [shape: f32[1,18,128], index: 15, kind: output, shape index: {}]
  %s16 = sld [smem:[#allocation0]]
  $region126: #{tpu_custom_call.1} parent=0
    _
  %s18 = ssub.s32 1, %s16
  %s19 = scalar_select 0, %s18, %s16
  $region1: #{tpu_custom_call.1} parent=0
    #allocation3 [shape = 'u8[8192]{0}', space=vmem, size = 0x2000, scoped, tag = 'input window, operand 0, single buffered']
    #allocation4 [shape = 's32[1]{0}', space=sflag, size = 0x4, scoped, tag = 'scoped memory for tpu_custom_call.1']
    #allocation5 [shape = 'u8[8192]{0}', space=vmem, size = 0x2000, scoped, tag = 'input window, operand 1, single buffered']
    #allocation6 [shape = 's32[1]{0}', space=sflag, size = 0x4, scoped, tag = 'scoped memory for tpu_custom_call.1']
    #allocation7 [shape = 'u8[8192]{0}', space=vmem, size = 0x2000, scoped, tag = 'input window, operand 2, single buffered']
    #allocation8 [shape = 'u8[8192]{0}', space=vmem, size = 0x2000, scoped, tag = 'input window, operand 3, single buffered']
    #allocation9 [shape = 's32[1]{0}', space=sflag, size = 0x4, scoped, tag = 'scoped memory for tpu_custom_call.1']
    #allocation10 [shape = 'u8[8192]{0}', space=vmem, size = 0x2000, scoped, tag = 'input window, operand 4, single buffered']
    #allocation11 [shape = 'u8[8192]{0}', space=vmem, size = 0x2000, scoped, tag = 'input window, operand 5, single buffered']
    #allocation12 [shape = 's32[1]{0}', space=sflag, size = 0x4, scoped, tag = 'scoped memory for tpu_custom_call.1']
    #allocation13 [shape = 'u8[8192]{0}', space=vmem, size = 0x2000, scoped, tag = 'input window, operand 6, single buffered']
    #allocation14 [shape = 'u8[8192]{0}', space=vmem, size = 0x2000, scoped, tag = 'input window, operand 7, single buffered']
    #allocation15 [shape = 's32[1]{0}', space=sflag, size = 0x4, scoped, tag = 'scoped memory for tpu_custom_call.1']
    #allocation16 [shape = 'u8[8192]{0}', space=vmem, size = 0x2000, scoped, tag = 'input window, operand 8, single buffered']
    #allocation17 [shape = 'u8[2048]{0}', space=vmem, size = 0x800, scoped, tag = 'input window, operand 10, single buffered']
    #allocation18 [shape = 's32[1]{0}', space=sflag, size = 0x4, scoped, tag = 'scoped memory for tpu_custom_call.1']
    #allocation19 [shape = 'u8[1024]{0}', space=vmem, size = 0x400, scoped, tag = 'input window, operand 11, single buffered']
    #allocation20 [shape = 'u8[1024]{0}', space=vmem, size = 0x400, scoped, tag = 'input window, operand 12, single buffered']
    #allocation21 [shape = 's32[1]{0}', space=sflag, size = 0x4, scoped, tag = 'scoped memory for tpu_custom_call.1']
    %20 = vsyncpa [#allocation4], 0
    %21 = vsyncpa [#allocation6], 0
    %22 = vsyncpa [#allocation9], 0
    %23 = vsyncpa [#allocation12], 0
    %24 = vsyncpa [#allocation15], 0
    %25 = vsyncpa [#allocation18], 0
    %26 = vsyncpa [#allocation21], 0
    // Predicated region
    $region2: #{tpu_custom_call.1} parent=1 // pred_check
      _
    $region3: #{tpu_custom_call.1} parent=1 // pred_check_branch
      %28 = sbr.rel (0) target = $region5
    $region4: #{tpu_custom_call.1} parent=1 // pred_region
      %s29 = sadd.s32 0, 0
      %s31 = ssub.s32 256, 256
      %32 = vsyncadd [#allocation4], %s31
      %s33 = smul.addr %s29, 16
      %s34 = smul.addr %s33, 16
      %s35 = scalar_lea.hbm %s0, %s34
      %s37 = sshll.u32 [#allocation3], 4
      %s38 = int_to_ptr.vmem [resolvable:$true] %s37
      %40 = dma.hbm_to_vmem [thread:$0]  %s35, 256, %s38, [#allocation4]
    $region5: #{tpu_custom_call.1} parent=1 // pred_fallthru
      _
    // Predicated region
    $region6: #{tpu_custom_call.1} parent=1 // pred_check
      _
    $region7: #{tpu_custom_call.1} parent=1 // pred_check_branch
      %42 = sbr.rel (0) target = $region9
    $region8: #{tpu_custom_call.1} parent=1 // pred_region
      %s43 = sadd.s32 0, 0
      %s45 = ssub.s32 256, 256
      %46 = vsyncadd [#allocation6], %s45
      %s47 = smul.addr %s43, 16
      %s48 = smul.addr %s47, 16
      %s49 = scalar_lea.hbm %s1, %s48
      %s51 = sshll.u32 [#allocation5], 4
      %s52 = int_to_ptr.vmem [resolvable:$true] %s51
      %54 = dma.hbm_to_vmem [thread:$0]  %s49, 256, %s52, [#allocation6]
    $region9: #{tpu_custom_call.1} parent=1 // pred_fallthru
      _
    // Predicated region
    $region10: #{tpu_custom_call.1} parent=1 // pred_check
      _
    $region11: #{tpu_custom_call.1} parent=1 // pred_check_branch
      %56 = sbr.rel (0) target = $region13
    $region12: #{tpu_custom_call.1} parent=1 // pred_region
      %s57 = sadd.s32 0, 0
      %s59 = ssub.s32 256, 256
      %60 = vsyncadd [#allocation6], %s59
      %s61 = smul.addr %s57, 16
      %s62 = smul.addr %s61, 16
      %s63 = scalar_lea.hbm %s2, %s62
      %s65 = sshll.u32 [#allocation7], 4
      %s66 = int_to_ptr.vmem [resolvable:$true] %s65
      %68 = dma.hbm_to_vmem [thread:$0]  %s63, 256, %s66, [#allocation6]
    $region13: #{tpu_custom_call.1} parent=1 // pred_fallthru
      _
    // Predicated region
    $region14: #{tpu_custom_call.1} parent=1 // pred_check
      _
    $region15: #{tpu_custom_call.1} parent=1 // pred_check_branch
      %70 = sbr.rel (0) target = $region17
    $region16: #{tpu_custom_call.1} parent=1 // pred_region
      %s71 = sadd.s32 0, 0
      %s73 = ssub.s32 256, 256
      %74 = vsyncadd [#allocation9], %s73
      %s75 = smul.addr %s71, 16
      %s76 = smul.addr %s75, 16
      %s77 = scalar_lea.hbm %s3, %s76
      %s79 = sshll.u32 [#allocation8], 4
      %s80 = int_to_ptr.vmem [resolvable:$true] %s79
      %82 = dma.hbm_to_vmem [thread:$0]  %s77, 256, %s80, [#allocation9]
    $region17: #{tpu_custom_call.1} parent=1 // pred_fallthru
      _
    // Predicated region
    $region18: #{tpu_custom_call.1} parent=1 // pred_check
      _
    $region19: #{tpu_custom_call.1} parent=1 // pred_check_branch
      %84 = sbr.rel (0) target = $region21
    $region20: #{tpu_custom_call.1} parent=1 // pred_region
      %s85 = sadd.s32 0, 0
      %s87 = ssub.s32 256, 256
      %88 = vsyncadd [#allocation9], %s87
      %s89 = smul.addr %s85, 16
      %s90 = smul.addr %s89, 16
      %s91 = scalar_lea.hbm %s4, %s90
      %s93 = sshll.u32 [#allocation10], 4
      %s94 = int_to_ptr.vmem [resolvable:$true] %s93
      %96 = dma.hbm_to_vmem [thread:$0]  %s91, 256, %s94, [#allocation9]
    $region21: #{tpu_custom_call.1} parent=1 // pred_fallthru
      _
    // Predicated region
    $region22: #{tpu_custom_call.1} parent=1 // pred_check
      _
    $region23: #{tpu_custom_call.1} parent=1 // pred_check_branch
      %98 = sbr.rel (0) target = $region25
    $region24: #{tpu_custom_call.1} parent=1 // pred_region
      %s99 = sadd.s32 0, 0
      %s101 = ssub.s32 256, 256
      %102 = vsyncadd [#allocation12], %s101
      %s103 = smul.addr %s99, 16
      %s104 = smul.addr %s103, 16
      %s105 = scalar_lea.hbm %s5, %s104
      %s107 = sshll.u32 [#allocation11], 4
      %s108 = int_to_ptr.vmem [resolvable:$true] %s107
      %110 = dma.hbm_to_vmem [thread:$0]  %s105, 256, %s108, [#allocation12]
    $region25: #{tpu_custom_call.1} parent=1 // pred_fallthru
      _
    // Predicated region
    $region26: #{tpu_custom_call.1} parent=1 // pred_check
      _
    $region27: #{tpu_custom_call.1} parent=1 // pred_check_branch
      %112 = sbr.rel (0) target = $region29
    $region28: #{tpu_custom_call.1} parent=1 // pred_region
      %s113 = sadd.s32 0, 0
      %s115 = ssub.s32 256, 256
      %116 = vsyncadd [#allocation12], %s115
      %s117 = smul.addr %s113, 16
      %s118 = smul.addr %s117, 16
      %s119 = scalar_lea.hbm %s6, %s118
      %s121 = sshll.u32 [#allocation13], 4
      %s122 = int_to_ptr.vmem [resolvable:$true] %s121
      %124 = dma.hbm_to_vmem [thread:$0]  %s119, 256, %s122, [#allocation12]
    $region29: #{tpu_custom_call.1} parent=1 // pred_fallthru
      _
    // Predicated region
    $region30: #{tpu_custom_call.1} parent=1 // pred_check
      _
    $region31: #{tpu_custom_call.1} parent=1 // pred_check_branch
      %126 = sbr.rel (0) target = $region33
    $region32: #{tpu_custom_call.1} parent=1 // pred_region
      %s127 = sadd.s32 0, 0
      %s129 = ssub.s32 256, 256
      %130 = vsyncadd [#allocation15], %s129
      %s131 = smul.addr %s127, 16
      %s132 = smul.addr %s131, 16
      %s133 = scalar_lea.hbm %s7, %s132
      %s135 = sshll.u32 [#allocation14], 4
      %s136 = int_to_ptr.vmem [resolvable:$true] %s135
      %138 = dma.hbm_to_vmem [thread:$0]  %s133, 256, %s136, [#allocation15]
    $region33: #{tpu_custom_call.1} parent=1 // pred_fallthru
      _
    // Predicated region
    $region34: #{tpu_custom_call.1} parent=1 // pred_check
      _
    $region35: #{tpu_custom_call.1} parent=1 // pred_check_branch
      %140 = sbr.rel (0) target = $region37
    $region36: #{tpu_custom_call.1} parent=1 // pred_region
      %s141 = sadd.s32 0, 0
      %s143 = ssub.s32 256, 256
      %144 = vsyncadd [#allocation15], %s143
      %s145 = smul.addr %s141, 16
      %s146 = smul.addr %s145, 16
      %s147 = scalar_lea.hbm %s8, %s146
      %s149 = sshll.u32 [#allocation16], 4
      %s150 = int_to_ptr.vmem [resolvable:$true] %s149
      %152 = dma.hbm_to_vmem [thread:$0]  %s147, 256, %s150, [#allocation15]
    $region37: #{tpu_custom_call.1} parent=1 // pred_fallthru
      _
    // Predicated region
    $region38: #{tpu_custom_call.1} parent=1 // pred_check
      _
    $region39: #{tpu_custom_call.1} parent=1 // pred_check_branch
      %154 = sbr.rel (0) target = $region41
    $region40: #{tpu_custom_call.1} parent=1 // pred_region
      _
    $region41: #{tpu_custom_call.1} parent=1 // pred_fallthru
      _
    // Predicated region
    $region42: #{tpu_custom_call.1} parent=1 // pred_check
      _
    $region43: #{tpu_custom_call.1} parent=1 // pred_check_branch
      %156 = sbr.rel (0) target = $region45
    $region44: #{tpu_custom_call.1} parent=1 // pred_region
      %s158 = ssub.s32 64, 64
      %159 = vsyncadd [#allocation18], %s158
      %s160 = sshll.u32 [#allocation17], 4
      %s161 = int_to_ptr.vmem [resolvable:$true] %s160
      %166 = dma.hbm_to_vmem [thread:$0]  %s10, 64, %s161, [#allocation18], 32, 32, 2
    $region45: #{tpu_custom_call.1} parent=1 // pred_fallthru
      _
    // Predicated region
    $region46: #{tpu_custom_call.1} parent=1 // pred_check
      _
    $region47: #{tpu_custom_call.1} parent=1 // pred_check_branch
      %168 = sbr.rel (0) target = $region49
    $region48: #{tpu_custom_call.1} parent=1 // pred_region
      %s170 = ssub.s32 32, 32
      %171 = vsyncadd [#allocation18], %s170
      %s173 = sshll.u32 [#allocation19], 4
      %s174 = int_to_ptr.vmem [resolvable:$true] %s173
      %176 = dma.hbm_to_vmem [thread:$0]  %s11, 32, %s174, [#allocation18]
    $region49: #{tpu_custom_call.1} parent=1 // pred_fallthru
      _
    // Predicated region
    $region50: #{tpu_custom_call.1} parent=1 // pred_check
      _
    $region51: #{tpu_custom_call.1} parent=1 // pred_check_branch
      %178 = sbr.rel (0) target = $region53
    $region52: #{tpu_custom_call.1} parent=1 // pred_region
      %s180 = ssub.s32 32, 32
      %181 = vsyncadd [#allocation21], %s180
      %s183 = sshll.u32 [#allocation20], 4
      %s184 = int_to_ptr.vmem [resolvable:$true] %s183
      %186 = dma.hbm_to_vmem [thread:$0]  %s12, 32, %s184, [#allocation21]
    $region53: #{tpu_custom_call.1} parent=1 // pred_fallthru
      _
    // Predicated region
    $region54: #{tpu_custom_call.1} parent=1 // pred_check
      _
    $region55: #{tpu_custom_call.1} parent=1 // pred_check_branch
      %188 = sbr.rel (0) target = $region57
    $region56: #{tpu_custom_call.1} parent=1 // pred_region
      _
    $region57: #{tpu_custom_call.1} parent=1 // pred_fallthru
      _
    // Predicated region
    $region58: #{tpu_custom_call.1} parent=1 // pred_check
      _
    $region59: #{tpu_custom_call.1} parent=1 // pred_check_branch
      %190 = sbr.rel (0) target = $region61
    $region60: #{tpu_custom_call.1} parent=1 // pred_region
      _
    $region61: #{tpu_custom_call.1} parent=1 // pred_fallthru
      _
    // Predicated region
    $region62: #{tpu_custom_call.1} parent=1 // pred_check
      _
    $region63: #{tpu_custom_call.1} parent=1 // pred_check_branch
      %192 = sbr.rel (0) target = $region65
    $region64: #{tpu_custom_call.1} parent=1 // pred_region
      %193 = dma.done [#allocation4], 256
    $region65: #{tpu_custom_call.1} parent=1 // pred_fallthru
      _
    // Predicated region
    $region66: #{tpu_custom_call.1} parent=1 // pred_check
      _
    $region67: #{tpu_custom_call.1} parent=1 // pred_check_branch
      %195 = sbr.rel (0) target = $region69
    $region68: #{tpu_custom_call.1} parent=1 // pred_region
      %196 = dma.done [#allocation6], 256
    $region69: #{tpu_custom_call.1} parent=1 // pred_fallthru
      _
    // Predicated region
    $region70: #{tpu_custom_call.1} parent=1 // pred_check
      _
    $region71: #{tpu_custom_call.1} parent=1 // pred_check_branch
      %198 = sbr.rel (0) target = $region73
    $region72: #{tpu_custom_call.1} parent=1 // pred_region
      %199 = dma.done [#allocation6], 256
    $region73: #{tpu_custom_call.1} parent=1 // pred_fallthru
      _
    // Predicated region
    $region74: #{tpu_custom_call.1} parent=1 // pred_check
      _
    $region75: #{tpu_custom_call.1} parent=1 // pred_check_branch
      %201 = sbr.rel (0) target = $region77
    $region76: #{tpu_custom_call.1} parent=1 // pred_region
      %202 = dma.done [#allocation9], 256
    $region77: #{tpu_custom_call.1} parent=1 // pred_fallthru
      _
    // Predicated region
    $region78: #{tpu_custom_call.1} parent=1 // pred_check
      _
    $region79: #{tpu_custom_call.1} parent=1 // pred_check_branch
      %204 = sbr.rel (0) target = $region81
    $region80: #{tpu_custom_call.1} parent=1 // pred_region
      %205 = dma.done [#allocation9], 256
    $region81: #{tpu_custom_call.1} parent=1 // pred_fallthru
      _
    // Predicated region
    $region82: #{tpu_custom_call.1} parent=1 // pred_check
      _
    $region83: #{tpu_custom_call.1} parent=1 // pred_check_branch
      %207 = sbr.rel (0) target = $region85
    $region84: #{tpu_custom_call.1} parent=1 // pred_region
      %208 = dma.done [#allocation12], 256
    $region85: #{tpu_custom_call.1} parent=1 // pred_fallthru
      _
    // Predicated region
    $region86: #{tpu_custom_call.1} parent=1 // pred_check
      _
    $region87: #{tpu_custom_call.1} parent=1 // pred_check_branch
      %210 = sbr.rel (0) target = $region89
    $region88: #{tpu_custom_call.1} parent=1 // pred_region
      %211 = dma.done [#allocation12], 256
    $region89: #{tpu_custom_call.1} parent=1 // pred_fallthru
      _
    // Predicated region
    $region90: #{tpu_custom_call.1} parent=1 // pred_check
      _
    $region91: #{tpu_custom_call.1} parent=1 // pred_check_branch
      %213 = sbr.rel (0) target = $region93
    $region92: #{tpu_custom_call.1} parent=1 // pred_region
      %214 = dma.done [#allocation15], 256
    $region93: #{tpu_custom_call.1} parent=1 // pred_fallthru
      _
    // Predicated region
    $region94: #{tpu_custom_call.1} parent=1 // pred_check
      _
    $region95: #{tpu_custom_call.1} parent=1 // pred_check_branch
      %216 = sbr.rel (0) target = $region97
    $region96: #{tpu_custom_call.1} parent=1 // pred_region
      %217 = dma.done [#allocation15], 256
    $region97: #{tpu_custom_call.1} parent=1 // pred_fallthru
      _
    // Predicated region
    $region98: #{tpu_custom_call.1} parent=1 // pred_check
      _
    $region99: #{tpu_custom_call.1} parent=1 // pred_check_branch
      %219 = sbr.rel (0) target = $region101
    $region100: #{tpu_custom_call.1} parent=1 // pred_region
      %220 = dma.done [#allocation18], 64
    $region101: #{tpu_custom_call.1} parent=1 // pred_fallthru
      _
    // Predicated region
    $region102: #{tpu_custom_call.1} parent=1 // pred_check
      _
    $region103: #{tpu_custom_call.1} parent=1 // pred_check_branch
      %222 = sbr.rel (0) target = $region105
    $region104: #{tpu_custom_call.1} parent=1 // pred_region
      %223 = dma.done [#allocation18], 32
    $region105: #{tpu_custom_call.1} parent=1 // pred_fallthru
      _
    // Predicated region
    $region106: #{tpu_custom_call.1} parent=1 // pred_check
      _
    $region107: #{tpu_custom_call.1} parent=1 // pred_check_branch
      %225 = sbr.rel (0) target = $region109
    $region108: #{tpu_custom_call.1} parent=1 // pred_region
      %226 = dma.done [#allocation21], 32
    $region109: #{tpu_custom_call.1} parent=1 // pred_fallthru
      _
    %s227 = sadd.s32 0, 0
    %s228 = sadd.s32 0, 0
    %s229 = sadd.s32 0, 0
    %s230 = sadd.s32 0, 0
    %s231 = sadd.s32 0, 0
    %s232 = sadd.s32 0, 0
    %s233 = sadd.s32 0, 0
    %s234 = sadd.s32 0, 0
    %s235 = sadd.s32 0, 0
    %p236 = scmp.eq.s32.totalorder 0, 0
    // Predicated region
    $region110: #{tpu_custom_call.1} parent=1 // pred_check
      %p237 = pneg %p236
    $region111: #{tpu_custom_call.1} parent=1 // pred_check_branch
      %239 = sbr.rel (%p237) target = $region113
    $region112: #{tpu_custom_call.1} parent=1 // pred_region
      %240 = vst [vmem:[#allocation2] sm:$0xff] 0.0
      %v241 = vlaneseq
      %vm242 = vcmp.ge.s32.totalorder %v241, 0
      %vm243 = vcmp.lt.s32.totalorder %v241, 896
      %vm244 = vmand %vm242, %vm243
      %245 = vst.msk [vmem:[#allocation2 + $0x8] sm:$0x7f] %vm244, 0.0
    $region113: #{tpu_custom_call.1} parent=1 // pred_fallthru
      _
    %v246 = vld [vmem:[#allocation13] sm:$0xff]
    %v247 = vld [vmem:[#allocation13 + $0x8] sm:$0xff]
    %vm248 = vcmp.eq.f32.partialorder %v246, 1.0
    %vm249 = vcmp.eq.f32.partialorder %v247, 1.0
    %v250 = vsel %vm248, 1, 0
    %v251 = vsel %vm249, 1, 0
    %v252 = vcvt.s32.f32 %v250
    %v253 = vcvt.s32.f32 %v251
    %vm254 = vcmp.lt.f32.partialorder %v246, 1.0
    %vm255 = vcmp.lt.f32.partialorder %v247, 1.0
    %v256 = vsel %vm254, 1, 0
    %v257 = vsel %vm255, 1, 0
    %v258 = vcvt.s32.f32 %v256
    %v259 = vcvt.s32.f32 %v257
    %v260 = vsub.f32 1.0, %v246
    %v261 = vsub.f32 1.0, %v247
    %v262 = vmul.f32 %v260, %v260
    %v263 = vmul.f32 %v261, %v261
    %v264 = vmul.f32 %v262, %v262
    %v265 = vmul.f32 %v263, %v263
    %v266 = vmul.f32 %v264, %v258
    %v267 = vmul.f32 %v265, %v259
    %v269 = vrot.slane %v252, 1
    %v271 = vadd.f32 %v252, %v269
    %v272 = vrot.slane %v252, 2
    %v274 = vrot.slane %v252, 3
    %v276 = vadd.f32 %v272, %v274
    %v277 = vrot.slane %v252, 4
    %v279 = vrot.slane %v252, 5
    %v281 = vadd.f32 %v277, %v279
    %v282 = vrot.slane %v252, 6
    %v284 = vrot.slane %v252, 7
    %v286 = vadd.f32 %v282, %v284
    %v288 = vrot.slane %v253, 1
    %v290 = vadd.f32 %v253, %v288
    %v291 = vrot.slane %v253, 2
    %v293 = vrot.slane %v253, 3
    %v295 = vadd.f32 %v291, %v293
    %v296 = vrot.slane %v253, 4
    %v298 = vrot.slane %v253, 5
    %v300 = vadd.f32 %v296, %v298
    %v301 = vrot.slane %v253, 6
    %v303 = vrot.slane %v253, 7
    %v305 = vadd.f32 %v301, %v303
    %v306 = vadd.f32 %v271, %v276
    %v307 = vadd.f32 %v281, %v286
    %v308 = vadd.f32 %v290, %v295
    %v309 = vadd.f32 %v300, %v305
    %v310 = vadd.f32 %v306, %v307
    %v311 = vadd.f32 %v308, %v309
    %v312 = vadd.f32 %v310, %v311
    %v313 = vld [vmem:[#allocation2 + $0xc] sm:$0x1]
    %v314 = vadd.f32 %v313, %v312
    %v315 = vlaneseq
    %vm316 = vcmp.ge.s32.totalorder %v315, 0
    %vm317 = vcmp.lt.s32.totalorder %v315, 128
    %vm318 = vmand %vm316, %vm317
    %319 = vst.msk [vmem:[#allocation2 + $0xc] sm:$0x1] %vm318, %v314
    %v320 = vld [vmem:[#allocation3] sm:$0xff]
    %v321 = vld [vmem:[#allocation3 + $0x8] sm:$0xff]
    %v322 = vand.u32 2147483647, %v320
    %v323 = vand.u32 2147483647, %v321
    %v324 = vsub.f32 0.0, %v322
    %v325 = vsub.f32 0.0, %v323
    %v326 = vmul.f32 %v324, 1.442695
    %v327 = vpow.pop %v326
    %v328 = vmul.f32 %v325, 1.442695
    %v329 = vpow.pop %v328
    %v330 = vadd.f32 %v327, 1.0
    %v331 = vadd.f32 %v329, 1.0
    %v332 = vlog2.pop %v330
    %v333 = vmul.f32 %v332, 0.6931472
    %v334 = vlog2.pop %v331
    %v335 = vmul.f32 %v334, 0.6931472
    %v336 = vrcp.pop %v330
    %v337 = vrcp.pop %v331
    %v338 = vmul.f32 %v327, %v336
    %v339 = vmul.f32 %v329, %v337
    %vm340 = vcmp.ge.f32.partialorder %v320, 0.0
    %vm341 = vcmp.ge.f32.partialorder %v321, 0.0
    %v342 = vsel %vm340, %v336, %v338
    %v343 = vsel %vm341, %v337, %v339
    %v344 = vsel %vm340, %v338, %v336
    %v345 = vsel %vm341, %v339, %v337
    %v346 = vmin.f32 %v320, 0.0
    %v347 = vmin.f32 %v321, 0.0
    %v348 = vsub.f32 %v346, %v333
    %v349 = vsub.f32 %v347, %v335
    %v350 = vmax.f32 %v348, -9.2103405
    %v351 = vmax.f32 %v349, -9.2103405
    %v352 = vmax.f32 %v320, 0.0
    %v353 = vmax.f32 %v321, 0.0
    %v354 = vsub.f32 0.0, %v352
    %v355 = vsub.f32 0.0, %v353
    %v356 = vsub.f32 %v354, %v333
    %v357 = vsub.f32 %v355, %v335
    %v358 = vmax.f32 %v356, -9.2103405
    %v359 = vmax.f32 %v357, -9.2103405
    %v360 = vmul.f32 %v344, %v344
    %v361 = vmul.f32 %v345, %v345
    %v362 = vmul.f32 %v350, %v360
    %v363 = vmul.f32 %v351, %v361
    %v364 = vmul.f32 %v362, %v252
    %v365 = vmul.f32 %v363, %v253
    %v366 = vmul.f32 %v342, %v342
    %v367 = vmul.f32 %v343, %v343
    %v368 = vmul.f32 %v358, %v366
    %v369 = vmul.f32 %v359, %v367
    %v370 = vmul.f32 %v368, %v266
    %v371 = vmul.f32 %v369, %v267
    %v373 = vrot.slane %v364, 1
    %v375 = vadd.f32 %v364, %v373
    %v376 = vrot.slane %v364, 2
    %v378 = vrot.slane %v364, 3
    %v380 = vadd.f32 %v376, %v378
    %v381 = vrot.slane %v364, 4
    %v383 = vrot.slane %v364, 5
    %v385 = vadd.f32 %v381, %v383
    %v386 = vrot.slane %v364, 6
    %v388 = vrot.slane %v364, 7
    %v390 = vadd.f32 %v386, %v388
    %v392 = vrot.slane %v365, 1
    %v394 = vadd.f32 %v365, %v392
    %v395 = vrot.slane %v365, 2
    %v397 = vrot.slane %v365, 3
    %v399 = vadd.f32 %v395, %v397
    %v400 = vrot.slane %v365, 4
    %v402 = vrot.slane %v365, 5
    %v404 = vadd.f32 %v400, %v402
    %v405 = vrot.slane %v365, 6
    %v407 = vrot.slane %v365, 7
    %v409 = vadd.f32 %v405, %v407
    %v410 = vadd.f32 %v375, %v380
    %v411 = vadd.f32 %v385, %v390
    %v412 = vadd.f32 %v394, %v399
    %v413 = vadd.f32 %v404, %v409
    %v414 = vadd.f32 %v410, %v411
    %v415 = vadd.f32 %v412, %v413
    %v416 = vadd.f32 %v414, %v415
    %v417 = vld [vmem:[#allocation2] sm:$0x1]
    %v418 = vadd.f32 %v417, %v416
    %419 = vst.msk [vmem:[#allocation2] sm:$0x1] %vm318, %v418
    %v421 = vrot.slane %v370, 1
    %v423 = vadd.f32 %v370, %v421
    %v424 = vrot.slane %v370, 2
    %v426 = vrot.slane %v370, 3
    %v428 = vadd.f32 %v424, %v426
    %v429 = vrot.slane %v370, 4
    %v431 = vrot.slane %v370, 5
    %v433 = vadd.f32 %v429, %v431
    %v434 = vrot.slane %v370, 6
    %v436 = vrot.slane %v370, 7
    %v438 = vadd.f32 %v434, %v436
    %v440 = vrot.slane %v371, 1
    %v442 = vadd.f32 %v371, %v440
    %v443 = vrot.slane %v371, 2
    %v445 = vrot.slane %v371, 3
    %v447 = vadd.f32 %v443, %v445
    %v448 = vrot.slane %v371, 4
    %v450 = vrot.slane %v371, 5
    %v452 = vadd.f32 %v448, %v450
    %v453 = vrot.slane %v371, 6
    %v455 = vrot.slane %v371, 7
    %v457 = vadd.f32 %v453, %v455
    %v458 = vadd.f32 %v423, %v428
    %v459 = vadd.f32 %v433, %v438
    %v460 = vadd.f32 %v442, %v447
    %v461 = vadd.f32 %v452, %v457
    %v462 = vadd.f32 %v458, %v459
    %v463 = vadd.f32 %v460, %v461
    %v464 = vadd.f32 %v462, %v463
    %v465 = vld [vmem:[#allocation2 + $0x1] sm:$0x1]
    %v466 = vadd.f32 %v465, %v464
    %467 = vst.msk [vmem:[#allocation2 + $0x1] sm:$0x1] %vm318, %v466
    %v468 = vld [vmem:[#allocation5] sm:$0xff]
    %v469 = vld [vmem:[#allocation5 + $0x8] sm:$0xff]
    %v470 = vand.u32 2147483647, %v468
    %v471 = vand.u32 2147483647, %v469
    %v472 = vsub.f32 0.0, %v470
    %v473 = vsub.f32 0.0, %v471
    %v474 = vmul.f32 %v472, 1.442695
    %v475 = vpow.pop %v474
    %v476 = vmul.f32 %v473, 1.442695
    %v477 = vpow.pop %v476
    %v478 = vadd.f32 %v475, 1.0
    %v479 = vadd.f32 %v477, 1.0
    %v480 = vlog2.pop %v478
    %v481 = vmul.f32 %v480, 0.6931472
    %v482 = vlog2.pop %v479
    %v483 = vmul.f32 %v482, 0.6931472
    %v484 = vrcp.pop %v478
    %v485 = vrcp.pop %v479
    %v486 = vmul.f32 %v475, %v484
    %v487 = vmul.f32 %v477, %v485
    %vm488 = vcmp.ge.f32.partialorder %v468, 0.0
    %vm489 = vcmp.ge.f32.partialorder %v469, 0.0
    %v490 = vsel %vm488, %v484, %v486
    %v491 = vsel %vm489, %v485, %v487
    %v492 = vsel %vm488, %v486, %v484
    %v493 = vsel %vm489, %v487, %v485
    %v494 = vmin.f32 %v468, 0.0
    %v495 = vmin.f32 %v469, 0.0
    %v496 = vsub.f32 %v494, %v481
    %v497 = vsub.f32 %v495, %v483
    %v498 = vmax.f32 %v496, -9.2103405
    %v499 = vmax.f32 %v497, -9.2103405
    %v500 = vmax.f32 %v468, 0.0
    %v501 = vmax.f32 %v469, 0.0
    %v502 = vsub.f32 0.0, %v500
    %v503 = vsub.f32 0.0, %v501
    %v504 = vsub.f32 %v502, %v481
    %v505 = vsub.f32 %v503, %v483
    %v506 = vmax.f32 %v504, -9.2103405
    %v507 = vmax.f32 %v505, -9.2103405
    %v508 = vmul.f32 %v492, %v492
    %v509 = vmul.f32 %v493, %v493
    %v510 = vmul.f32 %v498, %v508
    %v511 = vmul.f32 %v499, %v509
    %v512 = vmul.f32 %v510, %v252
    %v513 = vmul.f32 %v511, %v253
    %v514 = vmul.f32 %v490, %v490
    %v515 = vmul.f32 %v491, %v491
    %v516 = vmul.f32 %v506, %v514
    %v517 = vmul.f32 %v507, %v515
    %v518 = vmul.f32 %v516, %v266
    %v519 = vmul.f32 %v517, %v267
    %v521 = vrot.slane %v512, 1
    %v523 = vadd.f32 %v512, %v521
    %v524 = vrot.slane %v512, 2
    %v526 = vrot.slane %v512, 3
    %v528 = vadd.f32 %v524, %v526
    %v529 = vrot.slane %v512, 4
    %v531 = vrot.slane %v512, 5
    %v533 = vadd.f32 %v529, %v531
    %v534 = vrot.slane %v512, 6
    %v536 = vrot.slane %v512, 7
    %v538 = vadd.f32 %v534, %v536
    %v540 = vrot.slane %v513, 1
    %v542 = vadd.f32 %v513, %v540
    %v543 = vrot.slane %v513, 2
    %v545 = vrot.slane %v513, 3
    %v547 = vadd.f32 %v543, %v545
    %v548 = vrot.slane %v513, 4
    %v550 = vrot.slane %v513, 5
    %v552 = vadd.f32 %v548, %v550
    %v553 = vrot.slane %v513, 6
    %v555 = vrot.slane %v513, 7
    %v557 = vadd.f32 %v553, %v555
    %v558 = vadd.f32 %v523, %v528
    %v559 = vadd.f32 %v533, %v538
    %v560 = vadd.f32 %v542, %v547
    %v561 = vadd.f32 %v552, %v557
    %v562 = vadd.f32 %v558, %v559
    %v563 = vadd.f32 %v560, %v561
    %v564 = vadd.f32 %v562, %v563
    %v565 = vld [vmem:[#allocation2 + $0x2] sm:$0x1]
    %v566 = vadd.f32 %v565, %v564
    %567 = vst.msk [vmem:[#allocation2 + $0x2] sm:$0x1] %vm318, %v566
    %v569 = vrot.slane %v518, 1
    %v571 = vadd.f32 %v518, %v569
    %v572 = vrot.slane %v518, 2
    %v574 = vrot.slane %v518, 3
    %v576 = vadd.f32 %v572, %v574
    %v577 = vrot.slane %v518, 4
    %v579 = vrot.slane %v518, 5
    %v581 = vadd.f32 %v577, %v579
    %v582 = vrot.slane %v518, 6
    %v584 = vrot.slane %v518, 7
    %v586 = vadd.f32 %v582, %v584
    %v588 = vrot.slane %v519, 1
    %v590 = vadd.f32 %v519, %v588
    %v591 = vrot.slane %v519, 2
    %v593 = vrot.slane %v519, 3
    %v595 = vadd.f32 %v591, %v593
    %v596 = vrot.slane %v519, 4
    %v598 = vrot.slane %v519, 5
    %v600 = vadd.f32 %v596, %v598
    %v601 = vrot.slane %v519, 6
    %v603 = vrot.slane %v519, 7
    %v605 = vadd.f32 %v601, %v603
    %v606 = vadd.f32 %v571, %v576
    %v607 = vadd.f32 %v581, %v586
    %v608 = vadd.f32 %v590, %v595
    %v609 = vadd.f32 %v600, %v605
    %v610 = vadd.f32 %v606, %v607
    %v611 = vadd.f32 %v608, %v609
    %v612 = vadd.f32 %v610, %v611
    %v613 = vld [vmem:[#allocation2 + $0x3] sm:$0x1]
    %v614 = vadd.f32 %v613, %v612
    %615 = vst.msk [vmem:[#allocation2 + $0x3] sm:$0x1] %vm318, %v614
    %v616 = vld [vmem:[#allocation14] sm:$0xff]
    %v617 = vld [vmem:[#allocation14 + $0x8] sm:$0xff]
    %vm618 = vcmp.eq.f32.partialorder %v616, 1.0
    %vm619 = vcmp.eq.f32.partialorder %v617, 1.0
    %v620 = vsel %vm618, 1, 0
    %v621 = vsel %vm619, 1, 0
    %v622 = vcvt.s32.f32 %v620
    %v623 = vcvt.s32.f32 %v621
    %vm624 = vcmp.lt.f32.partialorder %v616, 1.0
    %vm625 = vcmp.lt.f32.partialorder %v617, 1.0
    %v626 = vsel %vm624, 1, 0
    %v627 = vsel %vm625, 1, 0
    %v628 = vcvt.s32.f32 %v626
    %v629 = vcvt.s32.f32 %v627
    %v630 = vsub.f32 1.0, %v616
    %v631 = vsub.f32 1.0, %v617
    %v632 = vmul.f32 %v630, %v630
    %v633 = vmul.f32 %v631, %v631
    %v634 = vmul.f32 %v632, %v632
    %v635 = vmul.f32 %v633, %v633
    %v636 = vmul.f32 %v634, %v628
    %v637 = vmul.f32 %v635, %v629
    %v639 = vrot.slane %v622, 1
    %v641 = vadd.f32 %v622, %v639
    %v642 = vrot.slane %v622, 2
    %v644 = vrot.slane %v622, 3
    %v646 = vadd.f32 %v642, %v644
    %v647 = vrot.slane %v622, 4
    %v649 = vrot.slane %v622, 5
    %v651 = vadd.f32 %v647, %v649
    %v652 = vrot.slane %v622, 6
    %v654 = vrot.slane %v622, 7
    %v656 = vadd.f32 %v652, %v654
    %v658 = vrot.slane %v623, 1
    %v660 = vadd.f32 %v623, %v658
    %v661 = vrot.slane %v623, 2
    %v663 = vrot.slane %v623, 3
    %v665 = vadd.f32 %v661, %v663
    %v666 = vrot.slane %v623, 4
    %v668 = vrot.slane %v623, 5
    %v670 = vadd.f32 %v666, %v668
    %v671 = vrot.slane %v623, 6
    %v673 = vrot.slane %v623, 7
    %v675 = vadd.f32 %v671, %v673
    %v676 = vadd.f32 %v641, %v646
    %v677 = vadd.f32 %v651, %v656
    %v678 = vadd.f32 %v660, %v665
    %v679 = vadd.f32 %v670, %v675
    %v680 = vadd.f32 %v676, %v677
    %v681 = vadd.f32 %v678, %v679
    %v682 = vadd.f32 %v680, %v681
    %v683 = vld [vmem:[#allocation2 + $0xd] sm:$0x1]
    %v684 = vadd.f32 %v683, %v682
    %685 = vst.msk [vmem:[#allocation2 + $0xd] sm:$0x1] %vm318, %v684
    %v686 = vld [vmem:[#allocation7] sm:$0xff]
    %v687 = vld [vmem:[#allocation7 + $0x8] sm:$0xff]
    %v688 = vand.u32 2147483647, %v686
    %v689 = vand.u32 2147483647, %v687
    %v690 = vsub.f32 0.0, %v688
    %v691 = vsub.f32 0.0, %v689
    %v692 = vmul.f32 %v690, 1.442695
    %v693 = vpow.pop %v692
    %v694 = vmul.f32 %v691, 1.442695
    %v695 = vpow.pop %v694
    %v696 = vadd.f32 %v693, 1.0
    %v697 = vadd.f32 %v695, 1.0
    %v698 = vlog2.pop %v696
    %v699 = vmul.f32 %v698, 0.6931472
    %v700 = vlog2.pop %v697
    %v701 = vmul.f32 %v700, 0.6931472
    %v702 = vrcp.pop %v696
    %v703 = vrcp.pop %v697
    %v704 = vmul.f32 %v693, %v702
    %v705 = vmul.f32 %v695, %v703
    %vm706 = vcmp.ge.f32.partialorder %v686, 0.0
    %vm707 = vcmp.ge.f32.partialorder %v687, 0.0
    %v708 = vsel %vm706, %v702, %v704
    %v709 = vsel %vm707, %v703, %v705
    %v710 = vsel %vm706, %v704, %v702
    %v711 = vsel %vm707, %v705, %v703
    %v712 = vmin.f32 %v686, 0.0
    %v713 = vmin.f32 %v687, 0.0
    %v714 = vsub.f32 %v712, %v699
    %v715 = vsub.f32 %v713, %v701
    %v716 = vmax.f32 %v714, -9.2103405
    %v717 = vmax.f32 %v715, -9.2103405
    %v718 = vmax.f32 %v686, 0.0
    %v719 = vmax.f32 %v687, 0.0
    %v720 = vsub.f32 0.0, %v718
    %v721 = vsub.f32 0.0, %v719
    %v722 = vsub.f32 %v720, %v699
    %v723 = vsub.f32 %v721, %v701
    %v724 = vmax.f32 %v722, -9.2103405
    %v725 = vmax.f32 %v723, -9.2103405
    %v726 = vmul.f32 %v710, %v710
    %v727 = vmul.f32 %v711, %v711
    %v728 = vmul.f32 %v716, %v726
    %v729 = vmul.f32 %v717, %v727
    %v730 = vmul.f32 %v728, %v622
    %v731 = vmul.f32 %v729, %v623
    %v732 = vmul.f32 %v708, %v708
    %v733 = vmul.f32 %v709, %v709
    %v734 = vmul.f32 %v724, %v732
    %v735 = vmul.f32 %v725, %v733
    %v736 = vmul.f32 %v734, %v636
    %v737 = vmul.f32 %v735, %v637
    %v739 = vrot.slane %v730, 1
    %v741 = vadd.f32 %v730, %v739
    %v742 = vrot.slane %v730, 2
    %v744 = vrot.slane %v730, 3
    %v746 = vadd.f32 %v742, %v744
    %v747 = vrot.slane %v730, 4
    %v749 = vrot.slane %v730, 5
    %v751 = vadd.f32 %v747, %v749
    %v752 = vrot.slane %v730, 6
    %v754 = vrot.slane %v730, 7
    %v756 = vadd.f32 %v752, %v754
    %v758 = vrot.slane %v731, 1
    %v760 = vadd.f32 %v731, %v758
    %v761 = vrot.slane %v731, 2
    %v763 = vrot.slane %v731, 3
    %v765 = vadd.f32 %v761, %v763
    %v766 = vrot.slane %v731, 4
    %v768 = vrot.slane %v731, 5
    %v770 = vadd.f32 %v766, %v768
    %v771 = vrot.slane %v731, 6
    %v773 = vrot.slane %v731, 7
    %v775 = vadd.f32 %v771, %v773
    %v776 = vadd.f32 %v741, %v746
    %v777 = vadd.f32 %v751, %v756
    %v778 = vadd.f32 %v760, %v765
    %v779 = vadd.f32 %v770, %v775
    %v780 = vadd.f32 %v776, %v777
    %v781 = vadd.f32 %v778, %v779
    %v782 = vadd.f32 %v780, %v781
    %v783 = vld [vmem:[#allocation2 + $0x4] sm:$0x1]
    %v784 = vadd.f32 %v783, %v782
    %785 = vst.msk [vmem:[#allocation2 + $0x4] sm:$0x1] %vm318, %v784
    %v787 = vrot.slane %v736, 1
    %v789 = vadd.f32 %v736, %v787
    %v790 = vrot.slane %v736, 2
    %v792 = vrot.slane %v736, 3
    %v794 = vadd.f32 %v790, %v792
    %v795 = vrot.slane %v736, 4
    %v797 = vrot.slane %v736, 5
    %v799 = vadd.f32 %v795, %v797
    %v800 = vrot.slane %v736, 6
    %v802 = vrot.slane %v736, 7
    %v804 = vadd.f32 %v800, %v802
    %v806 = vrot.slane %v737, 1
    %v808 = vadd.f32 %v737, %v806
    %v809 = vrot.slane %v737, 2
    %v811 = vrot.slane %v737, 3
    %v813 = vadd.f32 %v809, %v811
    %v814 = vrot.slane %v737, 4
    %v816 = vrot.slane %v737, 5
    %v818 = vadd.f32 %v814, %v816
    %v819 = vrot.slane %v737, 6
    %v821 = vrot.slane %v737, 7
    %v823 = vadd.f32 %v819, %v821
    %v824 = vadd.f32 %v789, %v794
    %v825 = vadd.f32 %v799, %v804
    %v826 = vadd.f32 %v808, %v813
    %v827 = vadd.f32 %v818, %v823
    %v828 = vadd.f32 %v824, %v825
    %v829 = vadd.f32 %v826, %v827
    %v830 = vadd.f32 %v828, %v829
    %v831 = vld [vmem:[#allocation2 + $0x5] sm:$0x1]
    %v832 = vadd.f32 %v831, %v830
    %833 = vst.msk [vmem:[#allocation2 + $0x5] sm:$0x1] %vm318, %v832
    %v834 = vld [vmem:[#allocation8] sm:$0xff]
    %v835 = vld [vmem:[#allocation8 + $0x8] sm:$0xff]
    %v836 = vand.u32 2147483647, %v834
    %v837 = vand.u32 2147483647, %v835
    %v838 = vsub.f32 0.0, %v836
    %v839 = vsub.f32 0.0, %v837
    %v840 = vmul.f32 %v838, 1.442695
    %v841 = vpow.pop %v840
    %v842 = vmul.f32 %v839, 1.442695
    %v843 = vpow.pop %v842
    %v844 = vadd.f32 %v841, 1.0
    %v845 = vadd.f32 %v843, 1.0
    %v846 = vlog2.pop %v844
    %v847 = vmul.f32 %v846, 0.6931472
    %v848 = vlog2.pop %v845
    %v849 = vmul.f32 %v848, 0.6931472
    %v850 = vrcp.pop %v844
    %v851 = vrcp.pop %v845
    %v852 = vmul.f32 %v841, %v850
    %v853 = vmul.f32 %v843, %v851
    %vm854 = vcmp.ge.f32.partialorder %v834, 0.0
    %vm855 = vcmp.ge.f32.partialorder %v835, 0.0
    %v856 = vsel %vm854, %v850, %v852
    %v857 = vsel %vm855, %v851, %v853
    %v858 = vsel %vm854, %v852, %v850
    %v859 = vsel %vm855, %v853, %v851
    %v860 = vmin.f32 %v834, 0.0
    %v861 = vmin.f32 %v835, 0.0
    %v862 = vsub.f32 %v860, %v847
    %v863 = vsub.f32 %v861, %v849
    %v864 = vmax.f32 %v862, -9.2103405
    %v865 = vmax.f32 %v863, -9.2103405
    %v866 = vmax.f32 %v834, 0.0
    %v867 = vmax.f32 %v835, 0.0
    %v868 = vsub.f32 0.0, %v866
    %v869 = vsub.f32 0.0, %v867
    %v870 = vsub.f32 %v868, %v847
    %v871 = vsub.f32 %v869, %v849
    %v872 = vmax.f32 %v870, -9.2103405
    %v873 = vmax.f32 %v871, -9.2103405
    %v874 = vmul.f32 %v858, %v858
    %v875 = vmul.f32 %v859, %v859
    %v876 = vmul.f32 %v864, %v874
    %v877 = vmul.f32 %v865, %v875
    %v878 = vmul.f32 %v876, %v622
    %v879 = vmul.f32 %v877, %v623
    %v880 = vmul.f32 %v856, %v856
    %v881 = vmul.f32 %v857, %v857
    %v882 = vmul.f32 %v872, %v880
    %v883 = vmul.f32 %v873, %v881
    %v884 = vmul.f32 %v882, %v636
    %v885 = vmul.f32 %v883, %v637
    %v887 = vrot.slane %v878, 1
    %v889 = vadd.f32 %v878, %v887
    %v890 = vrot.slane %v878, 2
    %v892 = vrot.slane %v878, 3
    %v894 = vadd.f32 %v890, %v892
    %v895 = vrot.slane %v878, 4
    %v897 = vrot.slane %v878, 5
    %v899 = vadd.f32 %v895, %v897
    %v900 = vrot.slane %v878, 6
    %v902 = vrot.slane %v878, 7
    %v904 = vadd.f32 %v900, %v902
    %v906 = vrot.slane %v879, 1
    %v908 = vadd.f32 %v879, %v906
    %v909 = vrot.slane %v879, 2
    %v911 = vrot.slane %v879, 3
    %v913 = vadd.f32 %v909, %v911
    %v914 = vrot.slane %v879, 4
    %v916 = vrot.slane %v879, 5
    %v918 = vadd.f32 %v914, %v916
    %v919 = vrot.slane %v879, 6
    %v921 = vrot.slane %v879, 7
    %v923 = vadd.f32 %v919, %v921
    %v924 = vadd.f32 %v889, %v894
    %v925 = vadd.f32 %v899, %v904
    %v926 = vadd.f32 %v908, %v913
    %v927 = vadd.f32 %v918, %v923
    %v928 = vadd.f32 %v924, %v925
    %v929 = vadd.f32 %v926, %v927
    %v930 = vadd.f32 %v928, %v929
    %v931 = vld [vmem:[#allocation2 + $0x6] sm:$0x1]
    %v932 = vadd.f32 %v931, %v930
    %933 = vst.msk [vmem:[#allocation2 + $0x6] sm:$0x1] %vm318, %v932
    %v935 = vrot.slane %v884, 1
    %v937 = vadd.f32 %v884, %v935
    %v938 = vrot.slane %v884, 2
    %v940 = vrot.slane %v884, 3
    %v942 = vadd.f32 %v938, %v940
    %v943 = vrot.slane %v884, 4
    %v945 = vrot.slane %v884, 5
    %v947 = vadd.f32 %v943, %v945
    %v948 = vrot.slane %v884, 6
    %v950 = vrot.slane %v884, 7
    %v952 = vadd.f32 %v948, %v950
    %v954 = vrot.slane %v885, 1
    %v956 = vadd.f32 %v885, %v954
    %v957 = vrot.slane %v885, 2
    %v959 = vrot.slane %v885, 3
    %v961 = vadd.f32 %v957, %v959
    %v962 = vrot.slane %v885, 4
    %v964 = vrot.slane %v885, 5
    %v966 = vadd.f32 %v962, %v964
    %v967 = vrot.slane %v885, 6
    %v969 = vrot.slane %v885, 7
    %v971 = vadd.f32 %v967, %v969
    %v972 = vadd.f32 %v937, %v942
    %v973 = vadd.f32 %v947, %v952
    %v974 = vadd.f32 %v956, %v961
    %v975 = vadd.f32 %v966, %v971
    %v976 = vadd.f32 %v972, %v973
    %v977 = vadd.f32 %v974, %v975
    %v978 = vadd.f32 %v976, %v977
    %v979 = vld [vmem:[#allocation2 + $0x7] sm:$0x1]
    %v980 = vadd.f32 %v979, %v978
    %981 = vst.msk [vmem:[#allocation2 + $0x7] sm:$0x1] %vm318, %v980
    %v982 = vld [vmem:[#allocation16] sm:$0xff]
    %v983 = vld [vmem:[#allocation16 + $0x8] sm:$0xff]
    %vm984 = vcmp.eq.f32.partialorder %v982, 1.0
    %vm985 = vcmp.eq.f32.partialorder %v983, 1.0
    %v986 = vsel %vm984, 1, 0
    %v987 = vsel %vm985, 1, 0
    %v988 = vcvt.s32.f32 %v986
    %v989 = vcvt.s32.f32 %v987
    %vm990 = vcmp.lt.f32.partialorder %v982, 1.0
    %vm991 = vcmp.lt.f32.partialorder %v983, 1.0
    %v992 = vsel %vm990, 1, 0
    %v993 = vsel %vm991, 1, 0
    %v994 = vcvt.s32.f32 %v992
    %v995 = vcvt.s32.f32 %v993
    %v996 = vsub.f32 1.0, %v982
    %v997 = vsub.f32 1.0, %v983
    %v998 = vmul.f32 %v996, %v996
    %v999 = vmul.f32 %v997, %v997
    %v1000 = vmul.f32 %v998, %v998
    %v1001 = vmul.f32 %v999, %v999
    %v1002 = vmul.f32 %v1000, %v994
    %v1003 = vmul.f32 %v1001, %v995
    %v1005 = vrot.slane %v988, 1
    %v1007 = vadd.f32 %v988, %v1005
    %v1008 = vrot.slane %v988, 2
    %v1010 = vrot.slane %v988, 3
    %v1012 = vadd.f32 %v1008, %v1010
    %v1013 = vrot.slane %v988, 4
    %v1015 = vrot.slane %v988, 5
    %v1017 = vadd.f32 %v1013, %v1015
    %v1018 = vrot.slane %v988, 6
    %v1020 = vrot.slane %v988, 7
    %v1022 = vadd.f32 %v1018, %v1020
    %v1024 = vrot.slane %v989, 1
    %v1026 = vadd.f32 %v989, %v1024
    %v1027 = vrot.slane %v989, 2
    %v1029 = vrot.slane %v989, 3
    %v1031 = vadd.f32 %v1027, %v1029
    %v1032 = vrot.slane %v989, 4
    %v1034 = vrot.slane %v989, 5
    %v1036 = vadd.f32 %v1032, %v1034
    %v1037 = vrot.slane %v989, 6
    %v1039 = vrot.slane %v989, 7
    %v1041 = vadd.f32 %v1037, %v1039
    %v1042 = vadd.f32 %v1007, %v1012
    %v1043 = vadd.f32 %v1017, %v1022
    %v1044 = vadd.f32 %v1026, %v1031
    %v1045 = vadd.f32 %v1036, %v1041
    %v1046 = vadd.f32 %v1042, %v1043
    %v1047 = vadd.f32 %v1044, %v1045
    %v1048 = vadd.f32 %v1046, %v1047
    %v1049 = vld [vmem:[#allocation2 + $0xe] sm:$0x1]
    %v1050 = vadd.f32 %v1049, %v1048
    %1051 = vst.msk [vmem:[#allocation2 + $0xe] sm:$0x1] %vm318, %v1050
    %v1052 = vld [vmem:[#allocation10] sm:$0xff]
    %v1053 = vld [vmem:[#allocation10 + $0x8] sm:$0xff]
    %v1054 = vand.u32 2147483647, %v1052
    %v1055 = vand.u32 2147483647, %v1053
    %v1056 = vsub.f32 0.0, %v1054
    %v1057 = vsub.f32 0.0, %v1055
    %v1058 = vmul.f32 %v1056, 1.442695
    %v1059 = vpow.pop %v1058
    %v1060 = vmul.f32 %v1057, 1.442695
    %v1061 = vpow.pop %v1060
    %v1062 = vadd.f32 %v1059, 1.0
    %v1063 = vadd.f32 %v1061, 1.0
    %v1064 = vlog2.pop %v1062
    %v1065 = vmul.f32 %v1064, 0.6931472
    %v1066 = vlog2.pop %v1063
    %v1067 = vmul.f32 %v1066, 0.6931472
    %v1068 = vrcp.pop %v1062
    %v1069 = vrcp.pop %v1063
    %v1070 = vmul.f32 %v1059, %v1068
    %v1071 = vmul.f32 %v1061, %v1069
    %vm1072 = vcmp.ge.f32.partialorder %v1052, 0.0
    %vm1073 = vcmp.ge.f32.partialorder %v1053, 0.0
    %v1074 = vsel %vm1072, %v1068, %v1070
    %v1075 = vsel %vm1073, %v1069, %v1071
    %v1076 = vsel %vm1072, %v1070, %v1068
    %v1077 = vsel %vm1073, %v1071, %v1069
    %v1078 = vmin.f32 %v1052, 0.0
    %v1079 = vmin.f32 %v1053, 0.0
    %v1080 = vsub.f32 %v1078, %v1065
    %v1081 = vsub.f32 %v1079, %v1067
    %v1082 = vmax.f32 %v1080, -9.2103405
    %v1083 = vmax.f32 %v1081, -9.2103405
    %v1084 = vmax.f32 %v1052, 0.0
    %v1085 = vmax.f32 %v1053, 0.0
    %v1086 = vsub.f32 0.0, %v1084
    %v1087 = vsub.f32 0.0, %v1085
    %v1088 = vsub.f32 %v1086, %v1065
    %v1089 = vsub.f32 %v1087, %v1067
    %v1090 = vmax.f32 %v1088, -9.2103405
    %v1091 = vmax.f32 %v1089, -9.2103405
    %v1092 = vmul.f32 %v1076, %v1076
    %v1093 = vmul.f32 %v1077, %v1077
    %v1094 = vmul.f32 %v1082, %v1092
    %v1095 = vmul.f32 %v1083, %v1093
    %v1096 = vmul.f32 %v1094, %v988
    %v1097 = vmul.f32 %v1095, %v989
    %v1098 = vmul.f32 %v1074, %v1074
    %v1099 = vmul.f32 %v1075, %v1075
    %v1100 = vmul.f32 %v1090, %v1098
    %v1101 = vmul.f32 %v1091, %v1099
    %v1102 = vmul.f32 %v1100, %v1002
    %v1103 = vmul.f32 %v1101, %v1003
    %v1105 = vrot.slane %v1096, 1
    %v1107 = vadd.f32 %v1096, %v1105
    %v1108 = vrot.slane %v1096, 2
    %v1110 = vrot.slane %v1096, 3
    %v1112 = vadd.f32 %v1108, %v1110
    %v1113 = vrot.slane %v1096, 4
    %v1115 = vrot.slane %v1096, 5
    %v1117 = vadd.f32 %v1113, %v1115
    %v1118 = vrot.slane %v1096, 6
    %v1120 = vrot.slane %v1096, 7
    %v1122 = vadd.f32 %v1118, %v1120
    %v1124 = vrot.slane %v1097, 1
    %v1126 = vadd.f32 %v1097, %v1124
    %v1127 = vrot.slane %v1097, 2
    %v1129 = vrot.slane %v1097, 3
    %v1131 = vadd.f32 %v1127, %v1129
    %v1132 = vrot.slane %v1097, 4
    %v1134 = vrot.slane %v1097, 5
    %v1136 = vadd.f32 %v1132, %v1134
    %v1137 = vrot.slane %v1097, 6
    %v1139 = vrot.slane %v1097, 7
    %v1141 = vadd.f32 %v1137, %v1139
    %v1142 = vadd.f32 %v1107, %v1112
    %v1143 = vadd.f32 %v1117, %v1122
    %v1144 = vadd.f32 %v1126, %v1131
    %v1145 = vadd.f32 %v1136, %v1141
    %v1146 = vadd.f32 %v1142, %v1143
    %v1147 = vadd.f32 %v1144, %v1145
    %v1148 = vadd.f32 %v1146, %v1147
    %v1149 = vld [vmem:[#allocation2 + $0x8] sm:$0x1]
    %v1150 = vadd.f32 %v1149, %v1148
    %1151 = vst.msk [vmem:[#allocation2 + $0x8] sm:$0x1] %vm318, %v1150
    %v1153 = vrot.slane %v1102, 1
    %v1155 = vadd.f32 %v1102, %v1153
    %v1156 = vrot.slane %v1102, 2
    %v1158 = vrot.slane %v1102, 3
    %v1160 = vadd.f32 %v1156, %v1158
    %v1161 = vrot.slane %v1102, 4
    %v1163 = vrot.slane %v1102, 5
    %v1165 = vadd.f32 %v1161, %v1163
    %v1166 = vrot.slane %v1102, 6
    %v1168 = vrot.slane %v1102, 7
    %v1170 = vadd.f32 %v1166, %v1168
    %v1172 = vrot.slane %v1103, 1
    %v1174 = vadd.f32 %v1103, %v1172
    %v1175 = vrot.slane %v1103, 2
    %v1177 = vrot.slane %v1103, 3
    %v1179 = vadd.f32 %v1175, %v1177
    %v1180 = vrot.slane %v1103, 4
    %v1182 = vrot.slane %v1103, 5
    %v1184 = vadd.f32 %v1180, %v1182
    %v1185 = vrot.slane %v1103, 6
    %v1187 = vrot.slane %v1103, 7
    %v1189 = vadd.f32 %v1185, %v1187
    %v1190 = vadd.f32 %v1155, %v1160
    %v1191 = vadd.f32 %v1165, %v1170
    %v1192 = vadd.f32 %v1174, %v1179
    %v1193 = vadd.f32 %v1184, %v1189
    %v1194 = vadd.f32 %v1190, %v1191
    %v1195 = vadd.f32 %v1192, %v1193
    %v1196 = vadd.f32 %v1194, %v1195
    %v1197 = vld [vmem:[#allocation2 + $0x9] sm:$0x1]
    %v1198 = vadd.f32 %v1197, %v1196
    %1199 = vst.msk [vmem:[#allocation2 + $0x9] sm:$0x1] %vm318, %v1198
    %v1200 = vld [vmem:[#allocation11] sm:$0xff]
    %v1201 = vld [vmem:[#allocation11 + $0x8] sm:$0xff]
    %v1202 = vand.u32 2147483647, %v1200
    %v1203 = vand.u32 2147483647, %v1201
    %v1204 = vsub.f32 0.0, %v1202
    %v1205 = vsub.f32 0.0, %v1203
    %v1206 = vmul.f32 %v1204, 1.442695
    %v1207 = vpow.pop %v1206
    %v1208 = vmul.f32 %v1205, 1.442695
    %v1209 = vpow.pop %v1208
    %v1210 = vadd.f32 %v1207, 1.0
    %v1211 = vadd.f32 %v1209, 1.0
    %v1212 = vlog2.pop %v1210
    %v1213 = vmul.f32 %v1212, 0.6931472
    %v1214 = vlog2.pop %v1211
    %v1215 = vmul.f32 %v1214, 0.6931472
    %v1216 = vrcp.pop %v1210
    %v1217 = vrcp.pop %v1211
    %v1218 = vmul.f32 %v1207, %v1216
    %v1219 = vmul.f32 %v1209, %v1217
    %vm1220 = vcmp.ge.f32.partialorder %v1200, 0.0
    %vm1221 = vcmp.ge.f32.partialorder %v1201, 0.0
    %v1222 = vsel %vm1220, %v1216, %v1218
    %v1223 = vsel %vm1221, %v1217, %v1219
    %v1224 = vsel %vm1220, %v1218, %v1216
    %v1225 = vsel %vm1221, %v1219, %v1217
    %v1226 = vmin.f32 %v1200, 0.0
    %v1227 = vmin.f32 %v1201, 0.0
    %v1228 = vsub.f32 %v1226, %v1213
    %v1229 = vsub.f32 %v1227, %v1215
    %v1230 = vmax.f32 %v1228, -9.2103405
    %v1231 = vmax.f32 %v1229, -9.2103405
    %v1232 = vmax.f32 %v1200, 0.0
    %v1233 = vmax.f32 %v1201, 0.0
    %v1234 = vsub.f32 0.0, %v1232
    %v1235 = vsub.f32 0.0, %v1233
    %v1236 = vsub.f32 %v1234, %v1213
    %v1237 = vsub.f32 %v1235, %v1215
    %v1238 = vmax.f32 %v1236, -9.2103405
    %v1239 = vmax.f32 %v1237, -9.2103405
    %v1240 = vmul.f32 %v1224, %v1224
    %v1241 = vmul.f32 %v1225, %v1225
    %v1242 = vmul.f32 %v1230, %v1240
    %v1243 = vmul.f32 %v1231, %v1241
    %v1244 = vmul.f32 %v1242, %v988
    %v1245 = vmul.f32 %v1243, %v989
    %v1246 = vmul.f32 %v1222, %v1222
    %v1247 = vmul.f32 %v1223, %v1223
    %v1248 = vmul.f32 %v1238, %v1246
    %v1249 = vmul.f32 %v1239, %v1247
    %v1250 = vmul.f32 %v1248, %v1002
    %v1251 = vmul.f32 %v1249, %v1003
    %v1253 = vrot.slane %v1244, 1
    %v1255 = vadd.f32 %v1244, %v1253
    %v1256 = vrot.slane %v1244, 2
    %v1258 = vrot.slane %v1244, 3
    %v1260 = vadd.f32 %v1256, %v1258
    %v1261 = vrot.slane %v1244, 4
    %v1263 = vrot.slane %v1244, 5
    %v1265 = vadd.f32 %v1261, %v1263
    %v1266 = vrot.slane %v1244, 6
    %v1268 = vrot.slane %v1244, 7
    %v1270 = vadd.f32 %v1266, %v1268
    %v1272 = vrot.slane %v1245, 1
    %v1274 = vadd.f32 %v1245, %v1272
    %v1275 = vrot.slane %v1245, 2
    %v1277 = vrot.slane %v1245, 3
    %v1279 = vadd.f32 %v1275, %v1277
    %v1280 = vrot.slane %v1245, 4
    %v1282 = vrot.slane %v1245, 5
    %v1284 = vadd.f32 %v1280, %v1282
    %v1285 = vrot.slane %v1245, 6
    %v1287 = vrot.slane %v1245, 7
    %v1289 = vadd.f32 %v1285, %v1287
    %v1290 = vadd.f32 %v1255, %v1260
    %v1291 = vadd.f32 %v1265, %v1270
    %v1292 = vadd.f32 %v1274, %v1279
    %v1293 = vadd.f32 %v1284, %v1289
    %v1294 = vadd.f32 %v1290, %v1291
    %v1295 = vadd.f32 %v1292, %v1293
    %v1296 = vadd.f32 %v1294, %v1295
    %v1297 = vld [vmem:[#allocation2 + $0xa] sm:$0x1]
    %v1298 = vadd.f32 %v1297, %v1296
    %1299 = vst.msk [vmem:[#allocation2 + $0xa] sm:$0x1] %vm318, %v1298
    %v1301 = vrot.slane %v1250, 1
    %v1303 = vadd.f32 %v1250, %v1301
    %v1304 = vrot.slane %v1250, 2
    %v1306 = vrot.slane %v1250, 3
    %v1308 = vadd.f32 %v1304, %v1306
    %v1309 = vrot.slane %v1250, 4
    %v1311 = vrot.slane %v1250, 5
    %v1313 = vadd.f32 %v1309, %v1311
    %v1314 = vrot.slane %v1250, 6
    %v1316 = vrot.slane %v1250, 7
    %v1318 = vadd.f32 %v1314, %v1316
    %v1320 = vrot.slane %v1251, 1
    %v1322 = vadd.f32 %v1251, %v1320
    %v1323 = vrot.slane %v1251, 2
    %v1325 = vrot.slane %v1251, 3
    %v1327 = vadd.f32 %v1323, %v1325
    %v1328 = vrot.slane %v1251, 4
    %v1330 = vrot.slane %v1251, 5
    %v1332 = vadd.f32 %v1328, %v1330
    %v1333 = vrot.slane %v1251, 6
    %v1335 = vrot.slane %v1251, 7
    %v1337 = vadd.f32 %v1333, %v1335
    %v1338 = vadd.f32 %v1303, %v1308
    %v1339 = vadd.f32 %v1313, %v1318
    %v1340 = vadd.f32 %v1322, %v1327
    %v1341 = vadd.f32 %v1332, %v1337
    %v1342 = vadd.f32 %v1338, %v1339
    %v1343 = vadd.f32 %v1340, %v1341
    %v1344 = vadd.f32 %v1342, %v1343
    %v1345 = vld [vmem:[#allocation2 + $0xb] sm:$0x1]
    %v1346 = vadd.f32 %v1345, %v1344
    %1347 = vst.msk [vmem:[#allocation2 + $0xb] sm:$0x1] %vm318, %v1346
    // Predicated region
    $region114: #{tpu_custom_call.1} parent=1 // pred_check
      %p1348 = pneg %p236
    $region115: #{tpu_custom_call.1} parent=1 // pred_check_branch
      %1350 = sbr.rel (%p1348) target = $region117
    $region116: #{tpu_custom_call.1} parent=1 // pred_region
      %v1351 = vld [vmem:[#allocation2] sm:$0x1]
      %v1352 = vadd.f32 %v1351, 0.0
      %1353 = vst [vmem:[%s15] sm:$0x1] %v1352
      %v1354 = vld [vmem:[#allocation2 + $0x1] sm:$0x1]
      %v1355 = vadd.f32 %v1354, 0.0
      %1356 = vst [vmem:[%s15 + $0x1] sm:$0x1] %v1355
      %v1357 = vld [vmem:[#allocation2 + $0x2] sm:$0x1]
      %v1358 = vadd.f32 %v1357, 0.0
      %1359 = vst [vmem:[%s15 + $0x2] sm:$0x1] %v1358
      %v1360 = vld [vmem:[#allocation2 + $0x3] sm:$0x1]
      %v1361 = vadd.f32 %v1360, 0.0
      %1362 = vst [vmem:[%s15 + $0x3] sm:$0x1] %v1361
      %v1363 = vld [vmem:[#allocation2 + $0x4] sm:$0x1]
      %v1364 = vadd.f32 %v1363, 0.0
      %1365 = vst [vmem:[%s15 + $0x4] sm:$0x1] %v1364
      %v1366 = vld [vmem:[#allocation2 + $0x5] sm:$0x1]
      %v1367 = vadd.f32 %v1366, 0.0
      %1368 = vst [vmem:[%s15 + $0x5] sm:$0x1] %v1367
      %v1369 = vld [vmem:[#allocation2 + $0x6] sm:$0x1]
      %v1370 = vadd.f32 %v1369, 0.0
      %1371 = vst [vmem:[%s15 + $0x6] sm:$0x1] %v1370
      %v1372 = vld [vmem:[#allocation2 + $0x7] sm:$0x1]
      %v1373 = vadd.f32 %v1372, 0.0
      %1374 = vst [vmem:[%s15 + $0x7] sm:$0x1] %v1373
      %v1375 = vld [vmem:[#allocation2 + $0x8] sm:$0x1]
      %v1376 = vadd.f32 %v1375, 0.0
      %1377 = vst [vmem:[%s15 + $0x8] sm:$0x1] %v1376
      %v1378 = vld [vmem:[#allocation2 + $0x9] sm:$0x1]
      %v1379 = vadd.f32 %v1378, 0.0
      %1380 = vst [vmem:[%s15 + $0x9] sm:$0x1] %v1379
      %v1381 = vld [vmem:[#allocation2 + $0xa] sm:$0x1]
      %v1382 = vadd.f32 %v1381, 0.0
      %1383 = vst [vmem:[%s15 + $0xa] sm:$0x1] %v1382
      %v1384 = vld [vmem:[#allocation2 + $0xb] sm:$0x1]
      %v1385 = vadd.f32 %v1384, 0.0
      %1386 = vst [vmem:[%s15 + $0xb] sm:$0x1] %v1385
      %v1387 = vld [vmem:[#allocation2 + $0xc] sm:$0x1]
      %v1388 = vadd.f32 %v1387, 0.0
      %1389 = vst [vmem:[%s15 + $0xc] sm:$0x1] %v1388
      %v1390 = vld [vmem:[#allocation2 + $0xd] sm:$0x1]
      %v1391 = vadd.f32 %v1390, 0.0
      %1392 = vst [vmem:[%s15 + $0xd] sm:$0x1] %v1391
      %v1393 = vld [vmem:[#allocation2 + $0xe] sm:$0x1]
      %v1394 = vadd.f32 %v1393, 0.0
      %1395 = vst [vmem:[%s15 + $0xe] sm:$0x1] %v1394
      %v1396 = vld [vmem:[#allocation19] sm:$0x3]
      %vm1397 = vcmask 58368
      %v1398 = vsel %vm1397, %v1396, 0.0
      %1399 = vadd.xlane.f32.xlu0 %v1398
      %v1400 = vpop.xlane.xlu0 %1399
      %v1401 = vld [vmem:[%s9] sm:$0x3]
      %v1402 = vld [vmem:[#allocation17] sm:$0x3]
      %v1403 = vadd.f32 %v1401, %v1402
      %v1404 = vmul.f32 %v1403, 0.5
      %v1405 = vsub.f32 %v1401, %v1404
      %v1406 = vmul.f32 %v1405, %v1405
      %v1407 = vsub.f32 %v1402, %v1404
      %v1408 = vmul.f32 %v1407, %v1407
      %v1409 = vadd.f32 %v1406, %v1408
      %v1410 = vmul.f32 %v1396, %v1409
      %v1411 = vadd.f32 %v1400, 0.0001
      %v1412 = vrcp.pop %v1411
      %v1413 = vmul.f32 %v1410, %v1412
      %v1414 = vsel %vm1397, %v1413, 0.0
      %1415 = vadd.xlane.f32.xlu0 %v1414
      %v1416 = vpop.xlane.xlu0 %1415
      %v1417 = vrot.slane %v1416, 4
      %v1418 = vadd.f32 %v1416, %v1417
      %v1419 = vrot.slane %v1418, 2
      %v1420 = vadd.f32 %v1418, %v1419
      %v1421 = vrot.slane %v1420, 1
      %v1422 = vadd.f32 %v1420, %v1421
      %s1423 = vtos %v1422
      %s1424 = sadd.f32 %s1423, 0.0
      %v1427 = vunpack.c.l.s4 1966171168
      %v1428 = vunpack.c.0.s8 %v1427
      %v1429 = vlaneseq
      %v1430 = vshrl.u32 %v1429, 7
      %v1431 = vsub.s32 %v1428, %v1430
      %v1432 = vrot.slane %v1404, %v1431
      %v1433 = vcombine.high %v1432, %v1432
      %v1435 = vunpack.c.l.s4 1966171168
      %v1436 = vunpack.c.0.s8 %v1435
      %v1437 = vlaneseq
      %v1438 = vshrl.u32 %v1437, 7
      %v1439 = vsub.s32 %v1436, %v1438
      %v1440 = vrot.slane %v1432, %v1439
      %v1442 = vunpack.c.l.s4 1966171168
      %v1443 = vunpack.c.0.s8 %v1442
      %v1444 = vlaneseq
      %v1445 = vshrl.u32 %v1444, 7
      %v1446 = vsub.s32 %v1443, %v1445
      %v1447 = vrot.slane %v1433, %v1446
      %v1448 = vlaneseq
      %v1449 = vshrl.u32 %v1448, 7
      %v1450 = vsub.s32 0, %v1449
      %v1451 = vrot.slane %v1404, %v1450
      %1453 = vbcast.lane.b32.xlu0 %v1451, 256
      %v1454 = vpop.permute.xlu0 %1453
      %v1455 = vlaneseq
      %v1456 = vshrl.u32 %v1455, 7
      %v1457 = vsub.s32 1, %v1456
      %v1458 = vrot.slane %v1404, %v1457
      %1460 = vbcast.lane.b32.xlu0 %v1458, 256
      %v1461 = vpop.permute.xlu0 %1460
      %v1462 = vlaneseq
      %v1463 = vshrl.u32 %v1462, 7
      %v1464 = vsub.s32 0, %v1463
      %v1465 = vrot.slane %v1440, %v1464
      %v1466 = vlaneseq
      %v1467 = vshrl.u32 %v1466, 7
      %v1468 = vsub.s32 0, %v1467
      %v1469 = vrot.slane %v1447, %v1468
      %v1472 = vsub.f32 %v1465, %v1454
      %v1473 = vsub.f32 %v1469, %v1461
      %v1474 = vand.u32 2147483647, %v1472
      %v1475 = vand.u32 2147483647, %v1473
      %v1476 = vsub.f32 1.0, %v1474
      %v1477 = vsub.f32 1.0, %v1475
      %v1478 = vmax.f32 %v1476, 0.0
      %v1479 = vmax.f32 %v1477, 0.0
      %v1481 = vlaneseq
      %v1482 = vshrl.u32 %v1481, 7
      %v1483 = vsub.s32 0, %v1482
      %v1484 = vrot.slane %v1400, %v1483
      %v1485 = vlaneseq
      %v1486 = vshrl.u32 %v1485, 7
      %v1487 = vsub.s32 1, %v1486
      %v1488 = vrot.slane %v1400, %v1487
      %v1491 = vadd.f32 %v1484, 0.0001
      %v1492 = vadd.f32 %v1488, 0.0001
      %v1493 = vrcp.pop %v1491
      %v1494 = vmul.f32 1.0, %v1493
      %v1495 = vrcp.pop %v1492
      %v1496 = vmul.f32 1.0, %v1495
      %v1497 = vsub.f32 %v1478, %v1494
      %v1498 = vsub.f32 %v1479, %v1496
      %v1499 = vsub.f32 %v1484, 1.0
      %v1500 = vsub.f32 %v1488, 1.0
      %v1501 = vmul.f32 %v1499, %v1484
      %v1502 = vmul.f32 %v1500, %v1488
      %v1503 = vadd.f32 %v1501, 0.0001
      %v1504 = vadd.f32 %v1502, 0.0001
      %v1505 = vrcp.pop %v1503
      %v1506 = vmul.f32 %v1497, %v1505
      %v1507 = vrcp.pop %v1504
      %v1508 = vmul.f32 %v1498, %v1507
      %v1509 = vlaneseq
      %v1510 = vshrl.u32 %v1509, 7
      %v1511 = vsub.s32 0, %v1510
      %v1512 = vrot.slane %v1396, %v1511
      %1514 = vbcast.lane.b32.xlu0 %v1512, 256
      %v1515 = vpop.permute.xlu0 %1514
      %v1516 = vlaneseq
      %v1517 = vshrl.u32 %v1516, 7
      %v1518 = vsub.s32 1, %v1517
      %v1519 = vrot.slane %v1396, %v1518
      %1521 = vbcast.lane.b32.xlu0 %v1519, 256
      %v1522 = vpop.permute.xlu0 %1521
      %v1525 = vunpack.c.l.s4 1966171168
      %v1526 = vunpack.c.0.s8 %v1525
      %v1527 = vlaneseq
      %v1528 = vshrl.u32 %v1527, 7
      %v1529 = vsub.s32 %v1526, %v1528
      %v1530 = vrot.slane %v1396, %v1529
      %v1531 = vcombine.high %v1530, %v1530
      %v1533 = vunpack.c.l.s4 1966171168
      %v1534 = vunpack.c.0.s8 %v1533
      %v1535 = vlaneseq
      %v1536 = vshrl.u32 %v1535, 7
      %v1537 = vsub.s32 %v1534, %v1536
      %v1538 = vrot.slane %v1530, %v1537
      %v1540 = vunpack.c.l.s4 1966171168
      %v1541 = vunpack.c.0.s8 %v1540
      %v1542 = vlaneseq
      %v1543 = vshrl.u32 %v1542, 7
      %v1544 = vsub.s32 %v1541, %v1543
      %v1545 = vrot.slane %v1531, %v1544
      %v1546 = vlaneseq
      %v1547 = vshrl.u32 %v1546, 7
      %v1548 = vsub.s32 0, %v1547
      %v1549 = vrot.slane %v1538, %v1548
      %v1550 = vlaneseq
      %v1551 = vshrl.u32 %v1550, 7
      %v1552 = vsub.s32 0, %v1551
      %v1553 = vrot.slane %v1545, %v1552
      %v1556 = vmul.f32 %v1515, %v1549
      %v1557 = vmul.f32 %v1522, %v1553
      %vm1558 = vcmp.gt.f32.partialorder %v1556, 0.0
      %vm1559 = vcmp.gt.f32.partialorder %v1557, 0.0
      %v1560 = vsel %vm1558, %v1506, 0.0
      %v1561 = vsel %vm1559, %v1508, 0.0
      %vm1562 = vcmask 64512
      %v1563 = vsel %vm1562, %v1560, 0.0
      %v1564 = vsel %vm1562, %v1561, 0.0
      %v1565 = vadd.f32 %v1563, %v1564
      %1566 = vadd.xlane.f32.xlu0 %v1565
      %v1567 = vpop.xlane.xlu0 %1566
      %v1568 = vrot.slane %v1567, 4
      %v1569 = vadd.f32 %v1567, %v1568
      %v1570 = vrot.slane %v1569, 2
      %v1571 = vadd.f32 %v1569, %v1570
      %v1572 = vrot.slane %v1571, 1
      %v1573 = vadd.f32 %v1571, %v1572
      %s1574 = vtos %v1573
      %s1575 = sadd.f32 %s1574, 0.0
      %s1576 = scalar_lea.vmem %s9, 2
      %v1577 = vld [vmem:[%s1576] sm:$0x3]
      %s1578 = scalar_lea.vmem [#allocation17], 2
      %v1579 = vld [vmem:[%s1578] sm:$0x3]
      %v1580 = vadd.f32 %v1577, %v1579
      %v1581 = vmul.f32 %v1580, 0.5
      %v1582 = vsub.f32 %v1577, %v1581
      %v1583 = vmul.f32 %v1582, %v1582
      %v1584 = vsub.f32 %v1579, %v1581
      %v1585 = vmul.f32 %v1584, %v1584
      %v1586 = vadd.f32 %v1583, %v1585
      %v1587 = vmul.f32 %v1396, %v1586
      %v1588 = vmul.f32 %v1587, %v1412
      %v1589 = vsel %vm1397, %v1588, 0.0
      %1590 = vadd.xlane.f32.xlu0 %v1589
      %v1591 = vpop.xlane.xlu0 %1590
      %v1592 = vrot.slane %v1591, 4
      %v1593 = vadd.f32 %v1591, %v1592
      %v1594 = vrot.slane %v1593, 2
      %v1595 = vadd.f32 %v1593, %v1594
      %v1596 = vrot.slane %v1595, 1
      %v1597 = vadd.f32 %v1595, %v1596
      %s1598 = vtos %v1597
      %s1599 = sadd.f32 %s1424, %s1598
      %v1602 = vunpack.c.l.s4 1966171168
      %v1603 = vunpack.c.0.s8 %v1602
      %v1604 = vlaneseq
      %v1605 = vshrl.u32 %v1604, 7
      %v1606 = vsub.s32 %v1603, %v1605
      %v1607 = vrot.slane %v1581, %v1606
      %v1608 = vcombine.high %v1607, %v1607
      %v1610 = vunpack.c.l.s4 1966171168
      %v1611 = vunpack.c.0.s8 %v1610
      %v1612 = vlaneseq
      %v1613 = vshrl.u32 %v1612, 7
      %v1614 = vsub.s32 %v1611, %v1613
      %v1615 = vrot.slane %v1607, %v1614
      %v1617 = vunpack.c.l.s4 1966171168
      %v1618 = vunpack.c.0.s8 %v1617
      %v1619 = vlaneseq
      %v1620 = vshrl.u32 %v1619, 7
      %v1621 = vsub.s32 %v1618, %v1620
      %v1622 = vrot.slane %v1608, %v1621
      %v1623 = vlaneseq
      %v1624 = vshrl.u32 %v1623, 7
      %v1625 = vsub.s32 0, %v1624
      %v1626 = vrot.slane %v1581, %v1625
      %1628 = vbcast.lane.b32.xlu0 %v1626, 256
      %v1629 = vpop.permute.xlu0 %1628
      %v1630 = vlaneseq
      %v1631 = vshrl.u32 %v1630, 7
      %v1632 = vsub.s32 1, %v1631
      %v1633 = vrot.slane %v1581, %v1632
      %1635 = vbcast.lane.b32.xlu0 %v1633, 256
      %v1636 = vpop.permute.xlu0 %1635
      %v1637 = vlaneseq
      %v1638 = vshrl.u32 %v1637, 7
      %v1639 = vsub.s32 0, %v1638
      %v1640 = vrot.slane %v1615, %v1639
      %v1641 = vlaneseq
      %v1642 = vshrl.u32 %v1641, 7
      %v1643 = vsub.s32 0, %v1642
      %v1644 = vrot.slane %v1622, %v1643
      %v1647 = vsub.f32 %v1640, %v1629
      %v1648 = vsub.f32 %v1644, %v1636
      %v1649 = vand.u32 2147483647, %v1647
      %v1650 = vand.u32 2147483647, %v1648
      %v1651 = vsub.f32 1.0, %v1649
      %v1652 = vsub.f32 1.0, %v1650
      %v1653 = vmax.f32 %v1651, 0.0
      %v1654 = vmax.f32 %v1652, 0.0
      %v1655 = vsub.f32 %v1653, %v1494
      %v1656 = vsub.f32 %v1654, %v1496
      %v1657 = vmul.f32 %v1655, %v1505
      %v1658 = vmul.f32 %v1656, %v1507
      %v1659 = vsel %vm1558, %v1657, 0.0
      %v1660 = vsel %vm1559, %v1658, 0.0
      %v1661 = vsel %vm1562, %v1659, 0.0
      %v1662 = vsel %vm1562, %v1660, 0.0
      %v1663 = vadd.f32 %v1661, %v1662
      %1664 = vadd.xlane.f32.xlu0 %v1663
      %v1665 = vpop.xlane.xlu0 %1664
      %v1666 = vrot.slane %v1665, 4
      %v1667 = vadd.f32 %v1665, %v1666
      %v1668 = vrot.slane %v1667, 2
      %v1669 = vadd.f32 %v1667, %v1668
      %v1670 = vrot.slane %v1669, 1
      %v1671 = vadd.f32 %v1669, %v1670
      %s1672 = vtos %v1671
      %s1673 = sadd.f32 %s1575, %s1672
      %v1674 = vld [vmem:[#allocation20] sm:$0x3]
      %v1675 = vrot.slane %v1400, 4
      %v1676 = vadd.f32 %v1400, %v1675
      %v1677 = vrot.slane %v1676, 2
      %v1678 = vadd.f32 %v1676, %v1677
      %v1679 = vrot.slane %v1678, 1
      %v1680 = vadd.f32 %v1678, %v1679
      %s1681 = vtos %v1680
      %v1682 = vld [vmem:[%s13] sm:$0x3]
      %v1683 = vld [vmem:[%s14] sm:$0x3]
      %v1684 = vsub.f32 %v1682, %v1683
      %v1685 = vand.u32 2147483647, %v1684
      %vm1686 = vcmp.lt.f32.partialorder %v1685, 1.0
      %v1687 = vmul.f32 %v1684, 0.5
      %v1688 = vmul.f32 %v1687, %v1684
      %v1689 = vsub.f32 %v1685, 0.5
      %v1690 = vsel %vm1686, %v1688, %v1689
      %v1691 = vmul.f32 %v1690, %v1674
      %vm1692 = vcmask 123904
      %v1693 = vsel %vm1692, %v1691, 0.0
      %1694 = vadd.xlane.f32.xlu0 %v1693
      %v1695 = vpop.xlane.xlu0 %1694
      %v1696 = vrot.slane %v1695, 4
      %v1697 = vadd.f32 %v1695, %v1696
      %v1698 = vrot.slane %v1697, 2
      %v1699 = vadd.f32 %v1697, %v1698
      %v1700 = vrot.slane %v1699, 1
      %v1701 = vadd.f32 %v1699, %v1700
      %s1702 = vtos %v1701
      %s1703 = sadd.f32 %s1702, 0.0
      %s1704 = scalar_lea.vmem %s13, 2
      %v1705 = vld [vmem:[%s1704] sm:$0x3]
      %v1706 = vsub.f32 %v1705, %v1683
      %v1707 = vand.u32 2147483647, %v1706
      %vm1708 = vcmp.lt.f32.partialorder %v1707, 1.0
      %v1709 = vmul.f32 %v1706, 0.5
      %v1710 = vmul.f32 %v1709, %v1706
      %v1711 = vsub.f32 %v1707, 0.5
      %v1712 = vsel %vm1708, %v1710, %v1711
      %v1713 = vmul.f32 %v1712, %v1674
      %v1714 = vsel %vm1692, %v1713, 0.0
      %1715 = vadd.xlane.f32.xlu0 %v1714
      %v1716 = vpop.xlane.xlu0 %1715
      %v1717 = vrot.slane %v1716, 4
      %v1718 = vadd.f32 %v1716, %v1717
      %v1719 = vrot.slane %v1718, 2
      %v1720 = vadd.f32 %v1718, %v1719
      %v1721 = vrot.slane %v1720, 1
      %v1722 = vadd.f32 %v1720, %v1721
      %s1723 = vtos %v1722
      %s1724 = sadd.f32 %s1703, %s1723
      %s1725 = scalar_lea.vmem %s13, 4
      %v1726 = vld [vmem:[%s1725] sm:$0x3]
      %s1727 = scalar_lea.vmem %s14, 2
      %v1728 = vld [vmem:[%s1727] sm:$0x3]
      %v1729 = vsub.f32 %v1726, %v1728
      %v1730 = vand.u32 2147483647, %v1729
      %vm1731 = vcmp.lt.f32.partialorder %v1730, 1.0
      %v1732 = vmul.f32 %v1729, 0.5
      %v1733 = vmul.f32 %v1732, %v1729
      %v1734 = vsub.f32 %v1730, 0.5
      %v1735 = vsel %vm1731, %v1733, %v1734
      %v1736 = vmul.f32 %v1735, %v1674
      %v1737 = vsel %vm1692, %v1736, 0.0
      %1738 = vadd.xlane.f32.xlu0 %v1737
      %v1739 = vpop.xlane.xlu0 %1738
      %v1740 = vrot.slane %v1739, 4
      %v1741 = vadd.f32 %v1739, %v1740
      %v1742 = vrot.slane %v1741, 2
      %v1743 = vadd.f32 %v1741, %v1742
      %v1744 = vrot.slane %v1743, 1
      %v1745 = vadd.f32 %v1743, %v1744
      %s1746 = vtos %v1745
      %s1747 = sadd.f32 %s1724, %s1746
      %s1748 = scalar_lea.vmem %s13, 6
      %v1749 = vld [vmem:[%s1748] sm:$0x3]
      %v1750 = vsub.f32 %v1749, %v1728
      %v1751 = vand.u32 2147483647, %v1750
      %vm1752 = vcmp.lt.f32.partialorder %v1751, 1.0
      %v1753 = vmul.f32 %v1750, 0.5
      %v1754 = vmul.f32 %v1753, %v1750
      %v1755 = vsub.f32 %v1751, 0.5
      %v1756 = vsel %vm1752, %v1754, %v1755
      %v1757 = vmul.f32 %v1756, %v1674
      %v1758 = vsel %vm1692, %v1757, 0.0
      %1759 = vadd.xlane.f32.xlu0 %v1758
      %v1760 = vpop.xlane.xlu0 %1759
      %v1761 = vrot.slane %v1760, 4
      %v1762 = vadd.f32 %v1760, %v1761
      %v1763 = vrot.slane %v1762, 2
      %v1764 = vadd.f32 %v1762, %v1763
      %v1765 = vrot.slane %v1764, 1
      %v1766 = vadd.f32 %v1764, %v1765
      %s1767 = vtos %v1766
      %s1768 = sadd.f32 %s1747, %s1767
      %s1769 = scalar_lea.vmem %s13, 8
      %v1770 = vld [vmem:[%s1769] sm:$0x3]
      %s1771 = scalar_lea.vmem %s14, 4
      %v1772 = vld [vmem:[%s1771] sm:$0x3]
      %v1773 = vsub.f32 %v1770, %v1772
      %v1774 = vand.u32 2147483647, %v1773
      %vm1775 = vcmp.lt.f32.partialorder %v1774, 1.0
      %v1776 = vmul.f32 %v1773, 0.5
      %v1777 = vmul.f32 %v1776, %v1773
      %v1778 = vsub.f32 %v1774, 0.5
      %v1779 = vsel %vm1775, %v1777, %v1778
      %v1780 = vmul.f32 %v1779, %v1674
      %v1781 = vsel %vm1692, %v1780, 0.0
      %1782 = vadd.xlane.f32.xlu0 %v1781
      %v1783 = vpop.xlane.xlu0 %1782
      %v1784 = vrot.slane %v1783, 4
      %v1785 = vadd.f32 %v1783, %v1784
      %v1786 = vrot.slane %v1785, 2
      %v1787 = vadd.f32 %v1785, %v1786
      %v1788 = vrot.slane %v1787, 1
      %v1789 = vadd.f32 %v1787, %v1788
      %s1790 = vtos %v1789
      %s1791 = sadd.f32 %s1768, %s1790
      %s1792 = scalar_lea.vmem %s13, 10
      %v1793 = vld [vmem:[%s1792] sm:$0x3]
      %v1794 = vsub.f32 %v1793, %v1772
      %v1795 = vand.u32 2147483647, %v1794
      %vm1796 = vcmp.lt.f32.partialorder %v1795, 1.0
      %v1797 = vmul.f32 %v1794, 0.5
      %v1798 = vmul.f32 %v1797, %v1794
      %v1799 = vsub.f32 %v1795, 0.5
      %v1800 = vsel %vm1796, %v1798, %v1799
      %v1801 = vmul.f32 %v1800, %v1674
      %v1802 = vsel %vm1692, %v1801, 0.0
      %1803 = vadd.xlane.f32.xlu0 %v1802
      %v1804 = vpop.xlane.xlu0 %1803
      %v1805 = vrot.slane %v1804, 4
      %v1806 = vadd.f32 %v1804, %v1805
      %v1807 = vrot.slane %v1806, 2
      %v1808 = vadd.f32 %v1806, %v1807
      %v1809 = vrot.slane %v1808, 1
      %v1810 = vadd.f32 %v1808, %v1809
      %s1811 = vtos %v1810
      %s1812 = sadd.f32 %s1791, %s1811
      %s1813 = sadd.f32 %s1681, 0.0001
      %v1814 = vstv %s1813
      %v1815 = vrcp.pop %v1814
      %s1816 = vtos %v1815
      %s1817 = smul.f32 %s1812, %s1816
      %v1818 = vstv %s1599
      %1819 = vst [vmem:[%s15 + $0xf] sm:$0x1] %v1818
      %v1820 = vstv %s1673
      %1821 = vst [vmem:[%s15 + $0x10] sm:$0x1] %v1820
      %v1822 = vstv %s1817
      %1823 = vst [vmem:[%s15 + $0x11] sm:$0x1] %v1822
    $region117: #{tpu_custom_call.1} parent=1 // pred_fallthru
      _
    // Predicated region
    $region118: #{tpu_custom_call.1} parent=1 // pred_check
      _
    $region119: #{tpu_custom_call.1} parent=1 // pred_check_branch
      %1825 = sbr.rel (0) target = $region121
    $region120: #{tpu_custom_call.1} parent=1 // pred_region
      _
    $region121: #{tpu_custom_call.1} parent=1 // pred_fallthru
      _
    // Predicated region
    $region122: #{tpu_custom_call.1} parent=1 // pred_check
      _
    $region123: #{tpu_custom_call.1} parent=1 // pred_check_branch
      %1827 = sbr.rel (0) target = $region125
    $region124: #{tpu_custom_call.1} parent=1 // pred_region
      _
    $region125: #{tpu_custom_call.1} parent=1 // pred_fallthru
      _
    %1828 = vsyncpa [#allocation4], 1
    %1829 = vsyncpa [#allocation6], 1
    %1830 = vsyncpa [#allocation9], 1
    %1831 = vsyncpa [#allocation12], 1
    %1832 = vsyncpa [#allocation15], 1
    %1833 = vsyncpa [#allocation18], 1
    %1834 = vsyncpa [#allocation21], 1

</llo_original>
